<compile_context>
chip_gen: v5e
topology: v5e:2x2
jax: 0.10.0
libtpu: 0.0.40
codegen_flags: <defaults>
</compile_context>

<pallas_src>
import functools

import jax
import jax.numpy as jnp
from jax.experimental import pallas as pl
from jax.experimental.pallas import tpu as pltpu


# ----------------------------------------------------------------------------
# Model dimensions (deterministic synthetic detector)
# ----------------------------------------------------------------------------
NUM_CLASSES = 5                         # including background (index 0)
POOL = 7                                # RoIAlign output size
POOL_BINS = POOL * POOL                 # 49
FPN_C = 64                              # FPN channels
REPR = 128                              # box-head representation size
NUM_PRED = NUM_CLASSES + NUM_CLASSES * 4   # 25 = cls logits + bbox deltas
PRED_PAD = 128                          # lane-dense predictor output columns
CONV1_COUT = 16
CONV1_PAD = 128                         # lane-dense conv1 output columns
CONV2_COUT = 32
NUM_ROIS = 4
ROI_PAD = 8                             # sublane-padded RoI count
VMEM_LIMIT = 32 * 1024 * 1024           # safe on v5e/v6e/v7x at these sizes


def _cparams(n_axes=1):
    return pltpu.CompilerParams(
        dimension_semantics=("parallel",) * n_axes,
        vmem_limit_bytes=VMEM_LIMIT)


# ----------------------------------------------------------------------------
# Pallas kernel 1: conv1 (im2col GEMM) + bias + ReLU, lane-dense bf16 output
# ----------------------------------------------------------------------------
def _conv1_kernel(p_ref, w_ref, b_ref, o_ref):
    h = jnp.dot(p_ref[...], w_ref[...], preferred_element_type=jnp.float32)
    o_ref[...] = jnp.maximum(h + b_ref[...], 0.0).astype(o_ref.dtype)


def conv1_gemm(patches, w, b, *, tile_m=256):
    M, K = patches.shape
    N = w.shape[1]
    assert M % tile_m == 0
    flops = 2 * M * K * N
    bytes_accessed = 2 * (M * K + K * N + M * N) + 4 * N
    return pl.pallas_call(
        _conv1_kernel,
        out_shape=jax.ShapeDtypeStruct((M, N), jnp.bfloat16),
        grid=(M // tile_m,),
        in_specs=[
            pl.BlockSpec((tile_m, K), lambda i: (i, 0)),
            pl.BlockSpec((K, N), lambda i: (0, 0)),
            pl.BlockSpec((1, N), lambda i: (0, 0)),
        ],
        out_specs=pl.BlockSpec((tile_m, N), lambda i: (i, 0)),
        compiler_params=_cparams(),
        cost_estimate=pl.CostEstimate(flops=flops, transcendentals=0,
                                      bytes_accessed=bytes_accessed),
    )(patches, w, b.reshape(1, N))


# ----------------------------------------------------------------------------
# Pallas kernel 2: conv2 (im2col GEMM) + ReLU + FPN lateral 1x1 conv, fused
# (grid over images; the (S,32) intermediate never leaves VMEM)
# ----------------------------------------------------------------------------
def _conv_fpn_kernel(p_ref, w1_ref, b1_ref, w2_ref, b2_ref, o_ref):
    h = jnp.dot(p_ref[...], w1_ref[...], preferred_element_type=jnp.float32)
    h = jnp.maximum(h + b1_ref[...], 0.0)
    h = jnp.dot(h.astype(jnp.bfloat16), w2_ref[...],
                preferred_element_type=jnp.float32)
    o_ref[...] = (h + b2_ref[...]).astype(o_ref.dtype)


def conv2_fpn(patches, w1, b1, w2, b2, *, n_imgs):
    M, K = patches.shape
    assert M % n_imgs == 0
    S = M // n_imgs
    C1 = w1.shape[1]
    C2 = w2.shape[1]
    flops = 2 * M * (K * C1 + C1 * C2)
    bytes_accessed = 2 * (M * K + K * C1 + C1 * C2 + M * C2) + 4 * (C1 + C2)
    return pl.pallas_call(
        _conv_fpn_kernel,
        out_shape=jax.ShapeDtypeStruct((M, C2), jnp.bfloat16),
        grid=(n_imgs,),
        in_specs=[
            pl.BlockSpec((S, K), lambda b: (b, 0)),
            pl.BlockSpec((K, C1), lambda b: (0, 0)),
            pl.BlockSpec((1, C1), lambda b: (0, 0)),
            pl.BlockSpec((C1, C2), lambda b: (0, 0)),
            pl.BlockSpec((1, C2), lambda b: (0, 0)),
        ],
        out_specs=pl.BlockSpec((S, C2), lambda b: (b, 0)),
        compiler_params=_cparams(),
        cost_estimate=pl.CostEstimate(flops=flops, transcendentals=0,
                                      bytes_accessed=bytes_accessed),
    )(patches, w1, b1.reshape(1, C1), w2, b2.reshape(1, C2))


# ----------------------------------------------------------------------------
# Pallas kernel 3: fused RoIAlign + fc6 -> ReLU -> fc7 -> ReLU -> predictors
# (grid over images; pooled features live only in a VMEM scratch)
# ----------------------------------------------------------------------------
def _roi_head_kernel(feat_ref, wroi_ref, w6_ref, b6_ref, w7_ref, b7_ref,
                     wp_ref, bp_ref, o_ref, pooled_scr, *, pool_bins, roi_pad,
                     chans):
    # RoIAlign for all (padded) RoIs of this image as ONE MXU GEMM:
    #   (pool_bins*roi_pad, fh*fw) @ (fh*fw, C) -> VMEM scratch (never HBM).
    pooled_scr[...] = jnp.dot(wroi_ref[...], feat_ref[...],
                              preferred_element_type=jnp.float32)
    # fc6 contraction over (bin, channel): accumulate one (roi_pad, C) x
    # (C, REPR) GEMM per bin against a statically sliced fc6 row block.
    # This avoids any in-kernel reshape/transpose of pooled into (R, bins*C)
    # layout, which Mosaic would have to relayout through memory.
    acc = jnp.zeros((roi_pad, w6_ref.shape[1]), jnp.float32)
    for p in range(pool_bins):                     # static unroll (49 bins)
        blk = pooled_scr[p * roi_pad:(p + 1) * roi_pad, :].astype(jnp.bfloat16)
        acc = acc + jnp.dot(blk, w6_ref[p * chans:(p + 1) * chans, :],
                            preferred_element_type=jnp.float32)
    h = jnp.maximum(acc + b6_ref[...], 0.0)
    h = jnp.dot(h.astype(jnp.bfloat16), w7_ref[...],
                preferred_element_type=jnp.float32)
    h = jnp.maximum(h + b7_ref[...], 0.0)
    out = jnp.dot(h.astype(jnp.bfloat16), wp_ref[...],
                  preferred_element_type=jnp.float32)
    o_ref[...] = (out + bp_ref[...]).astype(o_ref.dtype)


def roi_box_head(feat, w_roi, w6, b6, w7, b7, wp, bp, *, n_imgs, pool_bins,
                 roi_pad):
    M, C = feat.shape
    assert M % n_imgs == 0
    S = M // n_imgs                     # fh*fw per image
    WR = w_roi.shape[0]                 # pool_bins * roi_pad
    K6, R1 = w6.shape
    NP = wp.shape[1]
    flops = n_imgs * 2 * (WR * S * C + roi_pad * (K6 * R1 + R1 * R1 + R1 * NP))
    bytes_accessed = (2 * (M * C + WR * S + K6 * R1 + R1 * R1 + R1 * NP)
                      + 4 * (n_imgs * roi_pad * NP + 2 * R1 + NP))
    kernel = functools.partial(_roi_head_kernel, pool_bins=pool_bins,
                               roi_pad=roi_pad, chans=C)
    return pl.pallas_call(
        kernel,
        out_shape=jax.ShapeDtypeStruct((n_imgs * roi_pad, NP), jnp.float32),
        grid=(n_imgs,),
        in_specs=[
            pl.BlockSpec((S, C), lambda b: (b, 0)),      # per-image feature
            pl.BlockSpec((WR, S), lambda b: (0, 0)),     # RoIAlign weights
            pl.BlockSpec((K6, R1), lambda b: (0, 0)),    # fc6 (resident)
            pl.BlockSpec((1, R1), lambda b: (0, 0)),
            pl.BlockSpec((R1, R1), lambda b: (0, 0)),    # fc7 (resident)
            pl.BlockSpec((1, R1), lambda b: (0, 0)),
            pl.BlockSpec((R1, NP), lambda b: (0, 0)),    # predictors (padded)
            pl.BlockSpec((1, NP), lambda b: (0, 0)),
        ],
        out_specs=pl.BlockSpec((roi_pad, NP), lambda b: (b, 0)),
        scratch_shapes=[pltpu.VMEM((WR, C), jnp.float32)],
        compiler_params=_cparams(),
        cost_estimate=pl.CostEstimate(flops=flops, transcendentals=0,
                                      bytes_accessed=bytes_accessed),
    )(feat, w_roi, w6, b6.reshape(1, R1), w7, b7.reshape(1, R1), wp,
      bp.reshape(1, NP))


# ----------------------------------------------------------------------------
# Glue: im2col so that convolutions become Pallas GEMMs (dtype preserving)
# TODO(synk): at realistic resolutions move patch formation in-kernel
#             (halo DMA + shifted slices) to avoid the 9x HBM blowup.
# ----------------------------------------------------------------------------
def im2col(x_nhwc, kh, kw, stride, pad):
    x = jnp.pad(x_nhwc, ((0, 0), (pad, pad), (pad, pad), (0, 0)))
    n, h, w, c = x.shape
    ho = (h - kh) // stride + 1
    wo = (w - kw) // stride + 1
    cols = []
    for i in range(kh):
        for j in range(kw):
            cols.append(x[:, i:i + ho * stride:stride,
                          j:j + wo * stride:stride, :])
    patches = jnp.concatenate(cols, axis=-1)          # (N, Ho, Wo, kh*kw*C)
    return patches.reshape(n * ho * wo, kh * kw * c), n, ho, wo


# ----------------------------------------------------------------------------
# Glue: RoIAlign expressed as a bilinear-sampling weight matrix
# ----------------------------------------------------------------------------
def roi_align_weight_matrix(boxes, spatial_scale, out_size, feat_h, feat_w):
    """W of shape (R*out_size*out_size, feat_h*feat_w):
    pooled = W @ feat_flat reproduces bilinear RoIAlign (1 sample per bin)."""
    r = boxes.shape[0]
    x1 = boxes[:, 0] * spatial_scale
    y1 = boxes[:, 1] * spatial_scale
    x2 = boxes[:, 2] * spatial_scale
    y2 = boxes[:, 3] * spatial_scale
    bin_w = (x2 - x1) / out_size
    bin_h = (y2 - y1) / out_size
    grid = jnp.arange(out_size, dtype=jnp.float32) + 0.5
    ys = y1[:, None] + grid[None, :] * bin_h[:, None]
    xs = x1[:, None] + grid[None, :] * bin_w[:, None]
    sy = jnp.clip(jnp.broadcast_to(ys[:, :, None], (r, out_size, out_size)),
                  0.0, feat_h - 1.0)
    sx = jnp.clip(jnp.broadcast_to(xs[:, None, :], (r, out_size, out_size)),
                  0.0, feat_w - 1.0)
    y0 = jnp.floor(sy).astype(jnp.int32)
    x0 = jnp.floor(sx).astype(jnp.int32)
    y1i = jnp.minimum(y0 + 1, feat_h - 1)
    x1i = jnp.minimum(x0 + 1, feat_w - 1)
    ly = sy - y0.astype(jnp.float32)
    lx = sx - x0.astype(jnp.float32)

    def contrib(yi, xi, wgt):
        flat = yi * feat_w + xi
        return wgt[..., None] * jax.nn.one_hot(flat, feat_h * feat_w,
                                               dtype=jnp.float32)

    w = (contrib(y0, x0, (1 - ly) * (1 - lx))
         + contrib(y0, x1i, (1 - ly) * lx)
         + contrib(y1i, x0, ly * (1 - lx))
         + contrib(y1i, x1i, ly * lx))
    return w.reshape(r * out_size * out_size, feat_h * feat_w)


# ----------------------------------------------------------------------------
# Glue: Faster R-CNN box decoding (torchvision BoxCoder weights 10,10,5,5)
# ----------------------------------------------------------------------------
def decode_boxes(proposals, deltas, img_h, img_w):
    wx, wy, ww, wh = 10.0, 10.0, 5.0, 5.0
    widths = proposals[:, 2] - proposals[:, 0]
    heights = proposals[:, 3] - proposals[:, 1]
    ctr_x = proposals[:, 0] + 0.5 * widths
    ctr_y = proposals[:, 1] + 0.5 * heights
    dx = deltas[:, 0] / wx
    dy = deltas[:, 1] / wy
    dw = deltas[:, 2] / ww
    dh = deltas[:, 3] / wh
    clamp = jnp.log(1000.0 / 16.0)
    dw = jnp.minimum(dw, clamp)
    dh = jnp.minimum(dh, clamp)
    px = dx * widths + ctr_x
    py = dy * heights + ctr_y
    pw = jnp.exp(dw) * widths
    ph = jnp.exp(dh) * heights
    boxes = jnp.stack([px - 0.5 * pw, py - 0.5 * ph,
                       px + 0.5 * pw, py + 0.5 * ph], axis=-1)
    return jnp.clip(boxes,
                    jnp.array([0.0, 0.0, 0.0, 0.0]),
                    jnp.array([img_w, img_h, img_w, img_h], jnp.float32))


# ----------------------------------------------------------------------------
# Parameters (deterministic synthetic; weights stored bf16 once, biases f32)
# ----------------------------------------------------------------------------
def init_params(key):
    ks = jax.random.split(key, 8)
    s = 0.05

    def w(k, shape):
        return (s * jax.random.normal(k, shape)).astype(jnp.bfloat16)

    conv1_w = w(ks[0], (3 * 3 * 3, CONV1_COUT))
    conv1_w = jnp.pad(conv1_w, ((0, 0), (0, CONV1_PAD - CONV1_COUT)))
    return {
        # conv1: 3x3 s2, 3 -> 16, lane-padded to 128 output columns
        "conv1_w": conv1_w,
        "conv1_b": jnp.zeros((CONV1_PAD,), jnp.float32),
        # conv2: 3x3 s2, 16 -> 32
        "conv2_w": w(ks[1], (3 * 3 * CONV1_COUT, CONV2_COUT)),
        "conv2_b": jnp.zeros((CONV2_COUT,), jnp.float32),
        # FPN lateral 1x1 conv: 32 -> 64
        "fpn_w": w(ks[2], (CONV2_COUT, FPN_C)),
        "fpn_b": jnp.zeros((FPN_C,), jnp.float32),
        # box head
        "fc6_w": w(ks[3], (POOL_BINS * FPN_C, REPR)),
        "fc6_b": jnp.zeros((REPR,), jnp.float32),
        "fc7_w": w(ks[4], (REPR, REPR)),
        "fc7_b": jnp.zeros((REPR,), jnp.float32),
        # predictors
        "cls_w": w(ks[5], (REPR, NUM_CLASSES)),
        "cls_b": jnp.zeros((NUM_CLASSES,), jnp.float32),
        "bbox_w": w(ks[6], (REPR, NUM_CLASSES * 4)),
        "bbox_b": jnp.zeros((NUM_CLASSES * 4,), jnp.float32),
    }


# ----------------------------------------------------------------------------
# Forward pass (mimics RoIExtractor.forward -> list of per-image detections)
# ----------------------------------------------------------------------------
def roi_extractor_forward(params, x_nchw):
    n, c, img_h, img_w = x_nchw.shape
    assert c == 3

    # GeneralizedRCNNTransform-style normalization + single cast to bf16
    mean = jnp.array([0.485, 0.456, 0.406], jnp.float32).reshape(1, 3, 1, 1)
    std = jnp.array([0.229, 0.224, 0.225], jnp.float32).reshape(1, 3, 1, 1)
    x = ((x_nchw - mean) / std).astype(jnp.bfloat16)
    x = jnp.transpose(x, (0, 2, 3, 1))                       # NCHW -> NHWC

    # backbone conv1 (Pallas GEMM, M-tiled parallel grid, lane-dense output)
    patches1, n1, h1, w1 = im2col(x, 3, 3, stride=2, pad=1)
    f1 = conv1_gemm(patches1, params["conv1_w"], params["conv1_b"])
    f1 = f1[:, :CONV1_COUT].reshape(n1, h1, w1, CONV1_COUT)

    # backbone conv2 + FPN lateral 1x1 conv, fused (per-image parallel grid)
    patches2, n2, fh, fw = im2col(f1, 3, 3, stride=2, pad=1)
    feat = conv2_fpn(patches2, params["conv2_w"], params["conv2_b"],
                     params["fpn_w"], params["fpn_b"], n_imgs=n2)
    # feat: (n * fh*fw, FPN_C) bf16, image-major / spatial row order

    # fixed deterministic proposals (per image, in image coordinates)
    proposals = jnp.array([[2.0, 2.0, 20.0, 20.0],
                           [8.0, 4.0, 30.0, 28.0],
                           [0.0, 0.0, 31.0, 31.0],
                           [10.0, 10.0, 24.0, 26.0]], jnp.float32)
    spatial_scale = fh / float(img_h)

    # RoIAlign bilinear weights, reordered bin-major and RoI-padded (4 -> 8)
    w_roi = roi_align_weight_matrix(proposals, spatial_scale, POOL, fh, fw)
    w_roi = w_roi.reshape(NUM_ROIS, POOL_BINS, fh * fw).transpose(1, 0, 2)
    w_roi = jnp.pad(w_roi, ((0, 0), (0, ROI_PAD - NUM_ROIS), (0, 0)))
    w_roi = w_roi.reshape(POOL_BINS * ROI_PAD, fh * fw).astype(jnp.bfloat16)

    # cls + bbox predictors packed and lane-padded to 128 output columns
    pred_w = jnp.concatenate([params["cls_w"], params["bbox_w"]], axis=1)
    pred_w = jnp.pad(pred_w, ((0, 0), (0, PRED_PAD - NUM_PRED)))
    pred_b = jnp.concatenate([params["cls_b"], params["bbox_b"]])
    pred_b = jnp.pad(pred_b, ((0, PRED_PAD - NUM_PRED),))

    # fused RoIAlign + box head + predictors: ONE pallas_call
    preds = roi_box_head(feat, w_roi, params["fc6_w"], params["fc6_b"],
                         params["fc7_w"], params["fc7_b"], pred_w, pred_b,
                         n_imgs=n, pool_bins=POOL_BINS, roi_pad=ROI_PAD)
    preds = preds.reshape(n, ROI_PAD, PRED_PAD)[:, :NUM_ROIS, :]
    preds = preds.reshape(n * NUM_ROIS, PRED_PAD)
    cls_logits = preds[:, :NUM_CLASSES]
    bbox_deltas = preds[:, NUM_CLASSES:NUM_PRED]

    # postprocess (glue): softmax, per-RoI best foreground class, box decode
    probs = jax.nn.softmax(cls_logits, axis=-1)
    fg_probs = probs[:, 1:]
    labels = jnp.argmax(fg_probs, axis=-1).astype(jnp.int32) + 1
    scores = jnp.take_along_axis(probs, labels[:, None], axis=-1)[:, 0]
    deltas = bbox_deltas.reshape(-1, NUM_CLASSES, 4)
    deltas = jnp.take_along_axis(
        deltas, labels[:, None, None].repeat(4, axis=-1), axis=1)[:, 0, :]

    props_all = jnp.tile(proposals, (n, 1))
    boxes_all = decode_boxes(props_all, deltas, img_h, img_w)

    results = []
    for b in range(n):
        sl = slice(b * NUM_ROIS, (b + 1) * NUM_ROIS)
        results.append({"boxes": boxes_all[sl],
                        "labels": labels[sl],
                        "scores": scores[sl]})
    return results


# ----------------------------------------------------------------------------
if __name__ == "__main__":
    key = jax.random.PRNGKey(0)
    k_in, k_par = jax.random.split(key)
    x = jax.random.uniform(k_in, (2, 3, 32, 32), dtype=jnp.float32)  # NCHW
    params = init_params(k_par)

    fwd = jax.jit(roi_extractor_forward)
    out = fwd(params, x)
    out = jax.block_until_ready(out)

    assert len(out) == 2
    for det in out:
        assert det["boxes"].shape == (NUM_ROIS, 4)
        assert det["labels"].shape == (NUM_ROIS,)
        assert det["scores"].shape == (NUM_ROIS,)
        assert bool(jnp.all(jnp.isfinite(det["boxes"])))
        assert bool(jnp.all(jnp.isfinite(det["scores"])))

    print("KERNEL_OK")
</pallas_src>

<mosaic_0001>
module attributes {stable_mosaic.version = 11 : i64} {
  func.func @_conv1_kernel(%arg0: i32, %arg1: memref<256x27xbf16, #tpu.memory_space<vmem>>, %arg2: memref<27x128xbf16, #tpu.memory_space<vmem>>, %arg3: memref<1x128xf32, #tpu.memory_space<vmem>>, %arg4: memref<256x128xbf16, #tpu.memory_space<vmem>>) attributes {dimension_semantics = [#tpu.dimension_semantics<parallel>], iteration_bounds = array<i64: 2>, scalar_prefetch = 0 : i64, scratch_operands = 0 : i64, tpu.core_type = #tpu.core_type<tc>, window_params = [{transform_indices = @transform_0, window_bounds = array<i64: 256, 27>}, {pipeline_mode = #tpu.pipeline_mode<synchronous>, transform_indices = @transform_1, window_bounds = array<i64: 27, 128>}, {pipeline_mode = #tpu.pipeline_mode<synchronous>, transform_indices = @transform_2, window_bounds = array<i64: 1, 128>}, {transform_indices = @transform_3, window_bounds = array<i64: 256, 128>}]} {
    %c0 = arith.constant 0 : index
    %c0_0 = arith.constant 0 : index
    %0 = vector.load %arg1[%c0, %c0_0] : memref<256x27xbf16, #tpu.memory_space<vmem>>, vector<256x27xbf16>
    %c0_1 = arith.constant 0 : index
    %c0_2 = arith.constant 0 : index
    %1 = vector.load %arg2[%c0_1, %c0_2] : memref<27x128xbf16, #tpu.memory_space<vmem>>, vector<27x128xbf16>
    %cst = arith.constant dense<0.000000e+00> : vector<256x128xf32>
    %2 = tpu.matmul %0, %1, %cst {dimension_numbers = #tpu.dot_dimension_numbers<[1], [0], [0], [1], [0, 0, 1, 1], [], []>} : vector<256x27xbf16>, vector<27x128xbf16>, vector<256x128xf32> -> vector<256x128xf32>
    %c0_3 = arith.constant 0 : index
    %c0_4 = arith.constant 0 : index
    %3 = vector.load %arg3[%c0_3, %c0_4] : memref<1x128xf32, #tpu.memory_space<vmem>>, vector<1x128xf32>
    %4 = vector.broadcast %3 : vector<1x128xf32> to vector<256x128xf32>
    %5 = arith.addf %2, %4 : vector<256x128xf32>
    %cst_5 = arith.constant 0.000000e+00 : f32
    %6 = vector.broadcast %cst_5 : f32 to vector<256x128xf32>
    %7 = arith.maximumf %5, %6 : vector<256x128xf32>
    %8 = arith.truncf %7 : vector<256x128xf32> to vector<256x128xbf16>
    %c0_6 = arith.constant 0 : index
    %c0_7 = arith.constant 0 : index
    %9 = vector.load %arg4[%c0_6, %c0_7] : memref<256x128xbf16, #tpu.memory_space<vmem>>, vector<256x128xbf16>
    tpu.vector_store %arg4[%c0_6, %c0_7], %8 {strides = array<i32>} : memref<256x128xbf16, #tpu.memory_space<vmem>>, vector<256x128xbf16>,
    return
  }
  func.func @transform_0(%arg0: i32) -> (i32, i32) {
    %c0_i32 = arith.constant 0 : i32
    %c0_i32_0 = arith.constant 0 : i32
    return %arg0, %c0_i32 : i32, i32
  }
  func.func @transform_1(%arg0: i32) -> (i32, i32) {
    %c0_i32 = arith.constant 0 : i32
    %c0_i32_0 = arith.constant 0 : i32
    %c0_i32_1 = arith.constant 0 : i32
    return %c0_i32, %c0_i32_0 : i32, i32
  }
  func.func @transform_2(%arg0: i32) -> (i32, i32) {
    %c0_i32 = arith.constant 0 : i32
    %c0_i32_0 = arith.constant 0 : i32
    %c0_i32_1 = arith.constant 0 : i32
    return %c0_i32, %c0_i32_0 : i32, i32
  }
  func.func @transform_3(%arg0: i32) -> (i32, i32) {
    %c0_i32 = arith.constant 0 : i32
    %c0_i32_0 = arith.constant 0 : i32
    return %arg0, %c0_i32 : i32, i32
  }
}

module attributes {stable_mosaic.version = 11 : i64} {
  func.func @_conv_fpn_kernel(%arg0: i32, %arg1: memref<64x144xbf16, #tpu.memory_space<vmem>>, %arg2: memref<144x32xbf16, #tpu.memory_space<vmem>>, %arg3: memref<1x32xf32, #tpu.memory_space<vmem>>, %arg4: memref<32x64xbf16, #tpu.memory_space<vmem>>, %arg5: memref<1x64xf32, #tpu.memory_space<vmem>>, %arg6: memref<64x64xbf16, #tpu.memory_space<vmem>>) attributes {dimension_semantics = [#tpu.dimension_semantics<parallel>], iteration_bounds = array<i64: 2>, scalar_prefetch = 0 : i64, scratch_operands = 0 : i64, tpu.core_type = #tpu.core_type<tc>, window_params = [{transform_indices = @transform_0, window_bounds = array<i64: 64, 144>}, {pipeline_mode = #tpu.pipeline_mode<synchronous>, transform_indices = @transform_1, window_bounds = array<i64: 144, 32>}, {pipeline_mode = #tpu.pipeline_mode<synchronous>, transform_indices = @transform_2, window_bounds = array<i64: 1, 32>}, {pipeline_mode = #tpu.pipeline_mode<synchronous>, transform_indices = @transform_3, window_bounds = array<i64: 32, 64>}, {pipeline_mode = #tpu.pipeline_mode<synchronous>, transform_indices = @transform_4, window_bounds = array<i64: 1, 64>}, {transform_indices = @transform_5, window_bounds = array<i64: 64, 64>}]} {
    %c0 = arith.constant 0 : index
    %c0_0 = arith.constant 0 : index
    %0 = vector.load %arg1[%c0, %c0_0] : memref<64x144xbf16, #tpu.memory_space<vmem>>, vector<64x144xbf16>
    %c0_1 = arith.constant 0 : index
    %c0_2 = arith.constant 0 : index
    %1 = vector.load %arg2[%c0_1, %c0_2] : memref<144x32xbf16, #tpu.memory_space<vmem>>, vector<144x32xbf16>
    %cst = arith.constant dense<0.000000e+00> : vector<64x32xf32>
    %2 = tpu.matmul %0, %1, %cst {dimension_numbers = #tpu.dot_dimension_numbers<[1], [0], [0], [1], [0, 0, 1, 1], [], []>} : vector<64x144xbf16>, vector<144x32xbf16>, vector<64x32xf32> -> vector<64x32xf32>
    %c0_3 = arith.constant 0 : index
    %c0_4 = arith.constant 0 : index
    %3 = vector.load %arg3[%c0_3, %c0_4] : memref<1x32xf32, #tpu.memory_space<vmem>>, vector<1x32xf32>
    %4 = vector.broadcast %3 : vector<1x32xf32> to vector<64x32xf32>
    %5 = arith.addf %2, %4 : vector<64x32xf32>
    %cst_5 = arith.constant 0.000000e+00 : f32
    %6 = vector.broadcast %cst_5 : f32 to vector<64x32xf32>
    %7 = arith.maximumf %5, %6 : vector<64x32xf32>
    %8 = arith.truncf %7 : vector<64x32xf32> to vector<64x32xbf16>
    %c0_6 = arith.constant 0 : index
    %c0_7 = arith.constant 0 : index
    %9 = vector.load %arg4[%c0_6, %c0_7] : memref<32x64xbf16, #tpu.memory_space<vmem>>, vector<32x64xbf16>
    %cst_8 = arith.constant dense<0.000000e+00> : vector<64x64xf32>
    %10 = tpu.matmul %8, %9, %cst_8 {dimension_numbers = #tpu.dot_dimension_numbers<[1], [0], [0], [1], [0, 0, 1, 1], [], []>} : vector<64x32xbf16>, vector<32x64xbf16>, vector<64x64xf32> -> vector<64x64xf32>
    %c0_9 = arith.constant 0 : index
    %c0_10 = arith.constant 0 : index
    %11 = vector.load %arg5[%c0_9, %c0_10] : memref<1x64xf32, #tpu.memory_space<vmem>>, vector<1x64xf32>
    %12 = vector.broadcast %11 : vector<1x64xf32> to vector<64x64xf32>
    %13 = arith.addf %10, %12 : vector<64x64xf32>
    %14 = arith.truncf %13 : vector<64x64xf32> to vector<64x64xbf16>
    %c0_11 = arith.constant 0 : index
    %c0_12 = arith.constant 0 : index
    %15 = vector.load %arg6[%c0_11, %c0_12] : memref<64x64xbf16, #tpu.memory_space<vmem>>, vector<64x64xbf16>
    tpu.vector_store %arg6[%c0_11, %c0_12], %14 {strides = array<i32>} : memref<64x64xbf16, #tpu.memory_space<vmem>>, vector<64x64xbf16>,
    return
  }
  func.func @transform_0(%arg0: i32) -> (i32, i32) {
    %c0_i32 = arith.constant 0 : i32
    %c0_i32_0 = arith.constant 0 : i32
    return %arg0, %c0_i32 : i32, i32
  }
  func.func @transform_1(%arg0: i32) -> (i32, i32) {
    %c0_i32 = arith.constant 0 : i32
    %c0_i32_0 = arith.constant 0 : i32
    %c0_i32_1 = arith.constant 0 : i32
    return %c0_i32, %c0_i32_0 : i32, i32
  }
  func.func @transform_2(%arg0: i32) -> (i32, i32) {
    %c0_i32 = arith.constant 0 : i32
    %c0_i32_0 = arith.constant 0 : i32
    %c0_i32_1 = arith.constant 0 : i32
    return %c0_i32, %c0_i32_0 : i32, i32
  }
  func.func @transform_3(%arg0: i32) -> (i32, i32) {
    %c0_i32 = arith.constant 0 : i32
    %c0_i32_0 = arith.constant 0 : i32
    %c0_i32_1 = arith.constant 0 : i32
    return %c0_i32, %c0_i32_0 : i32, i32
  }
  func.func @transform_4(%arg0: i32) -> (i32, i32) {
    %c0_i32 = arith.constant 0 : i32
    %c0_i32_0 = arith.constant 0 : i32
    %c0_i32_1 = arith.constant 0 : i32
    return %c0_i32, %c0_i32_0 : i32, i32
  }
  func.func @transform_5(%arg0: i32) -> (i32, i32) {
    %c0_i32 = arith.constant 0 : i32
    %c0_i32_0 = arith.constant 0 : i32
    return %arg0, %c0_i32 : i32, i32
  }
}

module attributes {stable_mosaic.version = 11 : i64} {
  func.func @_roi_head_kernel(%arg0: i32, %arg1: memref<64x64xbf16, #tpu.memory_space<vmem>>, %arg2: memref<392x64xbf16, #tpu.memory_space<vmem>>, %arg3: memref<3136x128xbf16, #tpu.memory_space<vmem>>, %arg4: memref<1x128xf32, #tpu.memory_space<vmem>>, %arg5: memref<128x128xbf16, #tpu.memory_space<vmem>>, %arg6: memref<1x128xf32, #tpu.memory_space<vmem>>, %arg7: memref<128x128xbf16, #tpu.memory_space<vmem>>, %arg8: memref<1x128xf32, #tpu.memory_space<vmem>>, %arg9: memref<8x128xf32, #tpu.memory_space<vmem>>, %arg10: memref<392x64xf32, #tpu.memory_space<vmem>>) attributes {dimension_semantics = [#tpu.dimension_semantics<parallel>], iteration_bounds = array<i64: 2>, scalar_prefetch = 0 : i64, scratch_operands = 1 : i64, tpu.core_type = #tpu.core_type<tc>, window_params = [{transform_indices = @transform_0, window_bounds = array<i64: 64, 64>}, {pipeline_mode = #tpu.pipeline_mode<synchronous>, transform_indices = @transform_1, window_bounds = array<i64: 392, 64>}, {pipeline_mode = #tpu.pipeline_mode<synchronous>, transform_indices = @transform_2, window_bounds = array<i64: 3136, 128>}, {pipeline_mode = #tpu.pipeline_mode<synchronous>, transform_indices = @transform_3, window_bounds = array<i64: 1, 128>}, {pipeline_mode = #tpu.pipeline_mode<synchronous>, transform_indices = @transform_4, window_bounds = array<i64: 128, 128>}, {pipeline_mode = #tpu.pipeline_mode<synchronous>, transform_indices = @transform_5, window_bounds = array<i64: 1, 128>}, {pipeline_mode = #tpu.pipeline_mode<synchronous>, transform_indices = @transform_6, window_bounds = array<i64: 128, 128>}, {pipeline_mode = #tpu.pipeline_mode<synchronous>, transform_indices = @transform_7, window_bounds = array<i64: 1, 128>}, {transform_indices = @transform_8, window_bounds = array<i64: 8, 128>}]} {
    %c0 = arith.constant 0 : index
    %c0_0 = arith.constant 0 : index
    %0 = vector.load %arg2[%c0, %c0_0] : memref<392x64xbf16, #tpu.memory_space<vmem>>, vector<392x64xbf16>
    %c0_1 = arith.constant 0 : index
    %c0_2 = arith.constant 0 : index
    %1 = vector.load %arg1[%c0_1, %c0_2] : memref<64x64xbf16, #tpu.memory_space<vmem>>, vector<64x64xbf16>
    %cst = arith.constant dense<0.000000e+00> : vector<392x64xf32>
    %2 = tpu.matmul %0, %1, %cst {dimension_numbers = #tpu.dot_dimension_numbers<[1], [0], [0], [1], [0, 0, 1, 1], [], []>} : vector<392x64xbf16>, vector<64x64xbf16>, vector<392x64xf32> -> vector<392x64xf32>
    %c0_3 = arith.constant 0 : index
    %c0_4 = arith.constant 0 : index
    %3 = vector.load %arg10[%c0_3, %c0_4] : memref<392x64xf32, #tpu.memory_space<vmem>>, vector<392x64xf32>
    tpu.vector_store %arg10[%c0_3, %c0_4], %2 {strides = array<i32>} : memref<392x64xf32, #tpu.memory_space<vmem>>, vector<392x64xf32>,
    %cst_5 = arith.constant 0.000000e+00 : f32
    %4 = vector.broadcast %cst_5 : f32 to vector<8x128xf32>
    %c0_6 = arith.constant 0 : index
    %c0_7 = arith.constant 0 : index
    %5 = vector.load %arg10[%c0_6, %c0_7] : memref<392x64xf32, #tpu.memory_space<vmem>>, vector<8x64xf32>
    %6 = arith.truncf %5 : vector<8x64xf32> to vector<8x64xbf16>
    %c0_8 = arith.constant 0 : index
    %c0_9 = arith.constant 0 : index
    %7 = vector.load %arg3[%c0_8, %c0_9] : memref<3136x128xbf16, #tpu.memory_space<vmem>>, vector<64x128xbf16>
    %cst_10 = arith.constant dense<0.000000e+00> : vector<8x128xf32>
    %8 = tpu.matmul %6, %7, %cst_10 {dimension_numbers = #tpu.dot_dimension_numbers<[1], [0], [0], [1], [0, 0, 1, 1], [], []>} : vector<8x64xbf16>, vector<64x128xbf16>, vector<8x128xf32> -> vector<8x128xf32>
    %9 = arith.addf %4, %8 : vector<8x128xf32>
    %c8 = arith.constant 8 : index
    %c0_11 = arith.constant 0 : index
    %10 = vector.load %arg10[%c8, %c0_11] : memref<392x64xf32, #tpu.memory_space<vmem>>, vector<8x64xf32>
    %11 = arith.truncf %10 : vector<8x64xf32> to vector<8x64xbf16>
    %c64 = arith.constant 64 : index
    %c0_12 = arith.constant 0 : index
    %12 = vector.load %arg3[%c64, %c0_12] : memref<3136x128xbf16, #tpu.memory_space<vmem>>, vector<64x128xbf16>
    %cst_13 = arith.constant dense<0.000000e+00> : vector<8x128xf32>
    %13 = tpu.matmul %11, %12, %cst_13 {dimension_numbers = #tpu.dot_dimension_numbers<[1], [0], [0], [1], [0, 0, 1, 1], [], []>} : vector<8x64xbf16>, vector<64x128xbf16>, vector<8x128xf32> -> vector<8x128xf32>
    %14 = arith.addf %9, %13 : vector<8x128xf32>
    %c16 = arith.constant 16 : index
    %c0_14 = arith.constant 0 : index
    %15 = vector.load %arg10[%c16, %c0_14] : memref<392x64xf32, #tpu.memory_space<vmem>>, vector<8x64xf32>
    %16 = arith.truncf %15 : vector<8x64xf32> to vector<8x64xbf16>
    %c128 = arith.constant 128 : index
    %c0_15 = arith.constant 0 : index
    %17 = vector.load %arg3[%c128, %c0_15] : memref<3136x128xbf16, #tpu.memory_space<vmem>>, vector<64x128xbf16>
    %cst_16 = arith.constant dense<0.000000e+00> : vector<8x128xf32>
    %18 = tpu.matmul %16, %17, %cst_16 {dimension_numbers = #tpu.dot_dimension_numbers<[1], [0], [0], [1], [0, 0, 1, 1], [], []>} : vector<8x64xbf16>, vector<64x128xbf16>, vector<8x128xf32> -> vector<8x128xf32>
    %19 = arith.addf %14, %18 : vector<8x128xf32>
    %c24 = arith.constant 24 : index
    %c0_17 = arith.constant 0 : index
    %20 = vector.load %arg10[%c24, %c0_17] : memref<392x64xf32, #tpu.memory_space<vmem>>, vector<8x64xf32>
    %21 = arith.truncf %20 : vector<8x64xf32> to vector<8x64xbf16>
    %c192 = arith.constant 192 : index
    %c0_18 = arith.constant 0 : index
    %22 = vector.load %arg3[%c192, %c0_18] : memref<3136x128xbf16, #tpu.memory_space<vmem>>, vector<64x128xbf16>
    %cst_19 = arith.constant dense<0.000000e+00> : vector<8x128xf32>
    %23 = tpu.matmul %21, %22, %cst_19 {dimension_numbers = #tpu.dot_dimension_numbers<[1], [0], [0], [1], [0, 0, 1, 1], [], []>} : vector<8x64xbf16>, vector<64x128xbf16>, vector<8x128xf32> -> vector<8x128xf32>
    %24 = arith.addf %19, %23 : vector<8x128xf32>
    %c32 = arith.constant 32 : index
    %c0_20 = arith.constant 0 : index
    %25 = vector.load %arg10[%c32, %c0_20] : memref<392x64xf32, #tpu.memory_space<vmem>>, vector<8x64xf32>
    %26 = arith.truncf %25 : vector<8x64xf32> to vector<8x64xbf16>
    %c256 = arith.constant 256 : index
    %c0_21 = arith.constant 0 : index
    %27 = vector.load %arg3[%c256, %c0_21] : memref<3136x128xbf16, #tpu.memory_space<vmem>>, vector<64x128xbf16>
    %cst_22 = arith.constant dense<0.000000e+00> : vector<8x128xf32>
    %28 = tpu.matmul %26, %27, %cst_22 {dimension_numbers = #tpu.dot_dimension_numbers<[1], [0], [0], [1], [0, 0, 1, 1], [], []>} : vector<8x64xbf16>, vector<64x128xbf16>, vector<8x128xf32> -> vector<8x128xf32>
    %29 = arith.addf %24, %28 : vector<8x128xf32>
    %c40 = arith.constant 40 : index
    %c0_23 = arith.constant 0 : index
    %30 = vector.load %arg10[%c40, %c0_23] : memref<392x64xf32, #tpu.memory_space<vmem>>, vector<8x64xf32>
    %31 = arith.truncf %30 : vector<8x64xf32> to vector<8x64xbf16>
    %c320 = arith.constant 320 : index
    %c0_24 = arith.constant 0 : index
    %32 = vector.load %arg3[%c320, %c0_24] : memref<3136x128xbf16, #tpu.memory_space<vmem>>, vector<64x128xbf16>
    %cst_25 = arith.constant dense<0.000000e+00> : vector<8x128xf32>
    %33 = tpu.matmul %31, %32, %cst_25 {dimension_numbers = #tpu.dot_dimension_numbers<[1], [0], [0], [1], [0, 0, 1, 1], [], []>} : vector<8x64xbf16>, vector<64x128xbf16>, vector<8x128xf32> -> vector<8x128xf32>
    %34 = arith.addf %29, %33 : vector<8x128xf32>
    %c48 = arith.constant 48 : index
    %c0_26 = arith.constant 0 : index
    %35 = vector.load %arg10[%c48, %c0_26] : memref<392x64xf32, #tpu.memory_space<vmem>>, vector<8x64xf32>
    %36 = arith.truncf %35 : vector<8x64xf32> to vector<8x64xbf16>
    %c384 = arith.constant 384 : index
    %c0_27 = arith.constant 0 : index
    %37 = vector.load %arg3[%c384, %c0_27] : memref<3136x128xbf16, #tpu.memory_space<vmem>>, vector<64x128xbf16>
    %cst_28 = arith.constant dense<0.000000e+00> : vector<8x128xf32>
    %38 = tpu.matmul %36, %37, %cst_28 {dimension_numbers = #tpu.dot_dimension_numbers<[1], [0], [0], [1], [0, 0, 1, 1], [], []>} : vector<8x64xbf16>, vector<64x128xbf16>, vector<8x128xf32> -> vector<8x128xf32>
    %39 = arith.addf %34, %38 : vector<8x128xf32>
    %c56 = arith.constant 56 : index
    %c0_29 = arith.constant 0 : index
    %40 = vector.load %arg10[%c56, %c0_29] : memref<392x64xf32, #tpu.memory_space<vmem>>, vector<8x64xf32>
    %41 = arith.truncf %40 : vector<8x64xf32> to vector<8x64xbf16>
    %c448 = arith.constant 448 : index
    %c0_30 = arith.constant 0 : index
    %42 = vector.load %arg3[%c448, %c0_30] : memref<3136x128xbf16, #tpu.memory_space<vmem>>, vector<64x128xbf16>
    %cst_31 = arith.constant dense<0.000000e+00> : vector<8x128xf32>
    %43 = tpu.matmul %41, %42, %cst_31 {dimension_numbers = #tpu.dot_dimension_numbers<[1], [0], [0], [1], [0, 0, 1, 1], [], []>} : vector<8x64xbf16>, vector<64x128xbf16>, vector<8x128xf32> -> vector<8x128xf32>
    %44 = arith.addf %39, %43 : vector<8x128xf32>
    %c64_32 = arith.constant 64 : index
    %c0_33 = arith.constant 0 : index
    %45 = vector.load %arg10[%c64_32, %c0_33] : memref<392x64xf32, #tpu.memory_space<vmem>>, vector<8x64xf32>
    %46 = arith.truncf %45 : vector<8x64xf32> to vector<8x64xbf16>
    %c512 = arith.constant 512 : index
    %c0_34 = arith.constant 0 : index
    %47 = vector.load %arg3[%c512, %c0_34] : memref<3136x128xbf16, #tpu.memory_space<vmem>>, vector<64x128xbf16>
    %cst_35 = arith.constant dense<0.000000e+00> : vector<8x128xf32>
    %48 = tpu.matmul %46, %47, %cst_35 {dimension_numbers = #tpu.dot_dimension_numbers<[1], [0], [0], [1], [0, 0, 1, 1], [], []>} : vector<8x64xbf16>, vector<64x128xbf16>, vector<8x128xf32> -> vector<8x128xf32>
    %49 = arith.addf %44, %48 : vector<8x128xf32>
    %c72 = arith.constant 72 : index
    %c0_36 = arith.constant 0 : index
    %50 = vector.load %arg10[%c72, %c0_36] : memref<392x64xf32, #tpu.memory_space<vmem>>, vector<8x64xf32>
    %51 = arith.truncf %50 : vector<8x64xf32> to vector<8x64xbf16>
    %c576 = arith.constant 576 : index
    %c0_37 = arith.constant 0 : index
    %52 = vector.load %arg3[%c576, %c0_37] : memref<3136x128xbf16, #tpu.memory_space<vmem>>, vector<64x128xbf16>
    %cst_38 = arith.constant dense<0.000000e+00> : vector<8x128xf32>
    %53 = tpu.matmul %51, %52, %cst_38 {dimension_numbers = #tpu.dot_dimension_numbers<[1], [0], [0], [1], [0, 0, 1, 1], [], []>} : vector<8x64xbf16>, vector<64x128xbf16>, vector<8x128xf32> -> vector<8x128xf32>
    %54 = arith.addf %49, %53 : vector<8x128xf32>
    %c80 = arith.constant 80 : index
    %c0_39 = arith.constant 0 : index
    %55 = vector.load %arg10[%c80, %c0_39] : memref<392x64xf32, #tpu.memory_space<vmem>>, vector<8x64xf32>
    %56 = arith.truncf %55 : vector<8x64xf32> to vector<8x64xbf16>
    %c640 = arith.constant 640 : index
    %c0_40 = arith.constant 0 : index
    %57 = vector.load %arg3[%c640, %c0_40] : memref<3136x128xbf16, #tpu.memory_space<vmem>>, vector<64x128xbf16>
    %cst_41 = arith.constant dense<0.000000e+00> : vector<8x128xf32>
    %58 = tpu.matmul %56, %57, %cst_41 {dimension_numbers = #tpu.dot_dimension_numbers<[1], [0], [0], [1], [0, 0, 1, 1], [], []>} : vector<8x64xbf16>, vector<64x128xbf16>, vector<8x128xf32> -> vector<8x128xf32>
    %59 = arith.addf %54, %58 : vector<8x128xf32>
    %c88 = arith.constant 88 : index
    %c0_42 = arith.constant 0 : index
    %60 = vector.load %arg10[%c88, %c0_42] : memref<392x64xf32, #tpu.memory_space<vmem>>, vector<8x64xf32>
    %61 = arith.truncf %60 : vector<8x64xf32> to vector<8x64xbf16>
    %c704 = arith.constant 704 : index
    %c0_43 = arith.constant 0 : index
    %62 = vector.load %arg3[%c704, %c0_43] : memref<3136x128xbf16, #tpu.memory_space<vmem>>, vector<64x128xbf16>
    %cst_44 = arith.constant dense<0.000000e+00> : vector<8x128xf32>
    %63 = tpu.matmul %61, %62, %cst_44 {dimension_numbers = #tpu.dot_dimension_numbers<[1], [0], [0], [1], [0, 0, 1, 1], [], []>} : vector<8x64xbf16>, vector<64x128xbf16>, vector<8x128xf32> -> vector<8x128xf32>
    %64 = arith.addf %59, %63 : vector<8x128xf32>
    %c96 = arith.constant 96 : index
    %c0_45 = arith.constant 0 : index
    %65 = vector.load %arg10[%c96, %c0_45] : memref<392x64xf32, #tpu.memory_space<vmem>>, vector<8x64xf32>
    %66 = arith.truncf %65 : vector<8x64xf32> to vector<8x64xbf16>
    %c768 = arith.constant 768 : index
    %c0_46 = arith.constant 0 : index
    %67 = vector.load %arg3[%c768, %c0_46] : memref<3136x128xbf16, #tpu.memory_space<vmem>>, vector<64x128xbf16>
    %cst_47 = arith.constant dense<0.000000e+00> : vector<8x128xf32>
    %68 = tpu.matmul %66, %67, %cst_47 {dimension_numbers = #tpu.dot_dimension_numbers<[1], [0], [0], [1], [0, 0, 1, 1], [], []>} : vector<8x64xbf16>, vector<64x128xbf16>, vector<8x128xf32> -> vector<8x128xf32>
    %69 = arith.addf %64, %68 : vector<8x128xf32>
    %c104 = arith.constant 104 : index
    %c0_48 = arith.constant 0 : index
    %70 = vector.load %arg10[%c104, %c0_48] : memref<392x64xf32, #tpu.memory_space<vmem>>, vector<8x64xf32>
    %71 = arith.truncf %70 : vector<8x64xf32> to vector<8x64xbf16>
    %c832 = arith.constant 832 : index
    %c0_49 = arith.constant 0 : index
    %72 = vector.load %arg3[%c832, %c0_49] : memref<3136x128xbf16, #tpu.memory_space<vmem>>, vector<64x128xbf16>
    %cst_50 = arith.constant dense<0.000000e+00> : vector<8x128xf32>
    %73 = tpu.matmul %71, %72, %cst_50 {dimension_numbers = #tpu.dot_dimension_numbers<[1], [0], [0], [1], [0, 0, 1, 1], [], []>} : vector<8x64xbf16>, vector<64x128xbf16>, vector<8x128xf32> -> vector<8x128xf32>
    %74 = arith.addf %69, %73 : vector<8x128xf32>
    %c112 = arith.constant 112 : index
    %c0_51 = arith.constant 0 : index
    %75 = vector.load %arg10[%c112, %c0_51] : memref<392x64xf32, #tpu.memory_space<vmem>>, vector<8x64xf32>
    %76 = arith.truncf %75 : vector<8x64xf32> to vector<8x64xbf16>
    %c896 = arith.constant 896 : index
    %c0_52 = arith.constant 0 : index
    %77 = vector.load %arg3[%c896, %c0_52] : memref<3136x128xbf16, #tpu.memory_space<vmem>>, vector<64x128xbf16>
    %cst_53 = arith.constant dense<0.000000e+00> : vector<8x128xf32>
    %78 = tpu.matmul %76, %77, %cst_53 {dimension_numbers = #tpu.dot_dimension_numbers<[1], [0], [0], [1], [0, 0, 1, 1], [], []>} : vector<8x64xbf16>, vector<64x128xbf16>, vector<8x128xf32> -> vector<8x128xf32>
    %79 = arith.addf %74, %78 : vector<8x128xf32>
    %c120 = arith.constant 120 : index
    %c0_54 = arith.constant 0 : index
    %80 = vector.load %arg10[%c120, %c0_54] : memref<392x64xf32, #tpu.memory_space<vmem>>, vector<8x64xf32>
    %81 = arith.truncf %80 : vector<8x64xf32> to vector<8x64xbf16>
    %c960 = arith.constant 960 : index
    %c0_55 = arith.constant 0 : index
    %82 = vector.load %arg3[%c960, %c0_55] : memref<3136x128xbf16, #tpu.memory_space<vmem>>, vector<64x128xbf16>
    %cst_56 = arith.constant dense<0.000000e+00> : vector<8x128xf32>
    %83 = tpu.matmul %81, %82, %cst_56 {dimension_numbers = #tpu.dot_dimension_numbers<[1], [0], [0], [1], [0, 0, 1, 1], [], []>} : vector<8x64xbf16>, vector<64x128xbf16>, vector<8x128xf32> -> vector<8x128xf32>
    %84 = arith.addf %79, %83 : vector<8x128xf32>
    %c128_57 = arith.constant 128 : index
    %c0_58 = arith.constant 0 : index
    %85 = vector.load %arg10[%c128_57, %c0_58] : memref<392x64xf32, #tpu.memory_space<vmem>>, vector<8x64xf32>
    %86 = arith.truncf %85 : vector<8x64xf32> to vector<8x64xbf16>
    %c1024 = arith.constant 1024 : index
    %c0_59 = arith.constant 0 : index
    %87 = vector.load %arg3[%c1024, %c0_59] : memref<3136x128xbf16, #tpu.memory_space<vmem>>, vector<64x128xbf16>
    %cst_60 = arith.constant dense<0.000000e+00> : vector<8x128xf32>
    %88 = tpu.matmul %86, %87, %cst_60 {dimension_numbers = #tpu.dot_dimension_numbers<[1], [0], [0], [1], [0, 0, 1, 1], [], []>} : vector<8x64xbf16>, vector<64x128xbf16>, vector<8x128xf32> -> vector<8x128xf32>
    %89 = arith.addf %84, %88 : vector<8x128xf32>
    %c136 = arith.constant 136 : index
    %c0_61 = arith.constant 0 : index
    %90 = vector.load %arg10[%c136, %c0_61] : memref<392x64xf32, #tpu.memory_space<vmem>>, vector<8x64xf32>
    %91 = arith.truncf %90 : vector<8x64xf32> to vector<8x64xbf16>
    %c1088 = arith.constant 1088 : index
    %c0_62 = arith.constant 0 : index
    %92 = vector.load %arg3[%c1088, %c0_62] : memref<3136x128xbf16, #tpu.memory_space<vmem>>, vector<64x128xbf16>
    %cst_63 = arith.constant dense<0.000000e+00> : vector<8x128xf32>
    %93 = tpu.matmul %91, %92, %cst_63 {dimension_numbers = #tpu.dot_dimension_numbers<[1], [0], [0], [1], [0, 0, 1, 1], [], []>} : vector<8x64xbf16>, vector<64x128xbf16>, vector<8x128xf32> -> vector<8x128xf32>
    %94 = arith.addf %89, %93 : vector<8x128xf32>
    %c144 = arith.constant 144 : index
    %c0_64 = arith.constant 0 : index
    %95 = vector.load %arg10[%c144, %c0_64] : memref<392x64xf32, #tpu.memory_space<vmem>>, vector<8x64xf32>
    %96 = arith.truncf %95 : vector<8x64xf32> to vector<8x64xbf16>
    %c1152 = arith.constant 1152 : index
    %c0_65 = arith.constant 0 : index
    %97 = vector.load %arg3[%c1152, %c0_65] : memref<3136x128xbf16, #tpu.memory_space<vmem>>, vector<64x128xbf16>
    %cst_66 = arith.constant dense<0.000000e+00> : vector<8x128xf32>
    %98 = tpu.matmul %96, %97, %cst_66 {dimension_numbers = #tpu.dot_dimension_numbers<[1], [0], [0], [1], [0, 0, 1, 1], [], []>} : vector<8x64xbf16>, vector<64x128xbf16>, vector<8x128xf32> -> vector<8x128xf32>
    %99 = arith.addf %94, %98 : vector<8x128xf32>
    %c152 = arith.constant 152 : index
    %c0_67 = arith.constant 0 : index
    %100 = vector.load %arg10[%c152, %c0_67] : memref<392x64xf32, #tpu.memory_space<vmem>>, vector<8x64xf32>
    %101 = arith.truncf %100 : vector<8x64xf32> to vector<8x64xbf16>
    %c1216 = arith.constant 1216 : index
    %c0_68 = arith.constant 0 : index
    %102 = vector.load %arg3[%c1216, %c0_68] : memref<3136x128xbf16, #tpu.memory_space<vmem>>, vector<64x128xbf16>
    %cst_69 = arith.constant dense<0.000000e+00> : vector<8x128xf32>
    %103 = tpu.matmul %101, %102, %cst_69 {dimension_numbers = #tpu.dot_dimension_numbers<[1], [0], [0], [1], [0, 0, 1, 1], [], []>} : vector<8x64xbf16>, vector<64x128xbf16>, vector<8x128xf32> -> vector<8x128xf32>
    %104 = arith.addf %99, %103 : vector<8x128xf32>
    %c160 = arith.constant 160 : index
    %c0_70 = arith.constant 0 : index
    %105 = vector.load %arg10[%c160, %c0_70] : memref<392x64xf32, #tpu.memory_space<vmem>>, vector<8x64xf32>
    %106 = arith.truncf %105 : vector<8x64xf32> to vector<8x64xbf16>
    %c1280 = arith.constant 1280 : index
    %c0_71 = arith.constant 0 : index
    %107 = vector.load %arg3[%c1280, %c0_71] : memref<3136x128xbf16, #tpu.memory_space<vmem>>, vector<64x128xbf16>
    %cst_72 = arith.constant dense<0.000000e+00> : vector<8x128xf32>
    %108 = tpu.matmul %106, %107, %cst_72 {dimension_numbers = #tpu.dot_dimension_numbers<[1], [0], [0], [1], [0, 0, 1, 1], [], []>} : vector<8x64xbf16>, vector<64x128xbf16>, vector<8x128xf32> -> vector<8x128xf32>
    %109 = arith.addf %104, %108 : vector<8x128xf32>
    %c168 = arith.constant 168 : index
    %c0_73 = arith.constant 0 : index
    %110 = vector.load %arg10[%c168, %c0_73] : memref<392x64xf32, #tpu.memory_space<vmem>>, vector<8x64xf32>
    %111 = arith.truncf %110 : vector<8x64xf32> to vector<8x64xbf16>
    %c1344 = arith.constant 1344 : index
    %c0_74 = arith.constant 0 : index
    %112 = vector.load %arg3[%c1344, %c0_74] : memref<3136x128xbf16, #tpu.memory_space<vmem>>, vector<64x128xbf16>
    %cst_75 = arith.constant dense<0.000000e+00> : vector<8x128xf32>
    %113 = tpu.matmul %111, %112, %cst_75 {dimension_numbers = #tpu.dot_dimension_numbers<[1], [0], [0], [1], [0, 0, 1, 1], [], []>} : vector<8x64xbf16>, vector<64x128xbf16>, vector<8x128xf32> -> vector<8x128xf32>
    %114 = arith.addf %109, %113 : vector<8x128xf32>
    %c176 = arith.constant 176 : index
    %c0_76 = arith.constant 0 : index
    %115 = vector.load %arg10[%c176, %c0_76] : memref<392x64xf32, #tpu.memory_space<vmem>>, vector<8x64xf32>
    %116 = arith.truncf %115 : vector<8x64xf32> to vector<8x64xbf16>
    %c1408 = arith.constant 1408 : index
    %c0_77 = arith.constant 0 : index
    %117 = vector.load %arg3[%c1408, %c0_77] : memref<3136x128xbf16, #tpu.memory_space<vmem>>, vector<64x128xbf16>
    %cst_78 = arith.constant dense<0.000000e+00> : vector<8x128xf32>
    %118 = tpu.matmul %116, %117, %cst_78 {dimension_numbers = #tpu.dot_dimension_numbers<[1], [0], [0], [1], [0, 0, 1, 1], [], []>} : vector<8x64xbf16>, vector<64x128xbf16>, vector<8x128xf32> -> vector<8x128xf32>
    %119 = arith.addf %114, %118 : vector<8x128xf32>
    %c184 = arith.constant 184 : index
    %c0_79 = arith.constant 0 : index
    %120 = vector.load %arg10[%c184, %c0_79] : memref<392x64xf32, #tpu.memory_space<vmem>>, vector<8x64xf32>
    %121 = arith.truncf %120 : vector<8x64xf32> to vector<8x64xbf16>
    %c1472 = arith.constant 1472 : index
    %c0_80 = arith.constant 0 : index
    %122 = vector.load %arg3[%c1472, %c0_80] : memref<3136x128xbf16, #tpu.memory_space<vmem>>, vector<64x128xbf16>
    %cst_81 = arith.constant dense<0.000000e+00> : vector<8x128xf32>
    %123 = tpu.matmul %121, %122, %cst_81 {dimension_numbers = #tpu.dot_dimension_numbers<[1], [0], [0], [1], [0, 0, 1, 1], [], []>} : vector<8x64xbf16>, vector<64x128xbf16>, vector<8x128xf32> -> vector<8x128xf32>
    %124 = arith.addf %119, %123 : vector<8x128xf32>
    %c192_82 = arith.constant 192 : index
    %c0_83 = arith.constant 0 : index
    %125 = vector.load %arg10[%c192_82, %c0_83] : memref<392x64xf32, #tpu.memory_space<vmem>>, vector<8x64xf32>
    %126 = arith.truncf %125 : vector<8x64xf32> to vector<8x64xbf16>
    %c1536 = arith.constant 1536 : index
    %c0_84 = arith.constant 0 : index
    %127 = vector.load %arg3[%c1536, %c0_84] : memref<3136x128xbf16, #tpu.memory_space<vmem>>, vector<64x128xbf16>
    %cst_85 = arith.constant dense<0.000000e+00> : vector<8x128xf32>
    %128 = tpu.matmul %126, %127, %cst_85 {dimension_numbers = #tpu.dot_dimension_numbers<[1], [0], [0], [1], [0, 0, 1, 1], [], []>} : vector<8x64xbf16>, vector<64x128xbf16>, vector<8x128xf32> -> vector<8x128xf32>
    %129 = arith.addf %124, %128 : vector<8x128xf32>
    %c200 = arith.constant 200 : index
    %c0_86 = arith.constant 0 : index
    %130 = vector.load %arg10[%c200, %c0_86] : memref<392x64xf32, #tpu.memory_space<vmem>>, vector<8x64xf32>
    %131 = arith.truncf %130 : vector<8x64xf32> to vector<8x64xbf16>
    %c1600 = arith.constant 1600 : index
    %c0_87 = arith.constant 0 : index
    %132 = vector.load %arg3[%c1600, %c0_87] : memref<3136x128xbf16, #tpu.memory_space<vmem>>, vector<64x128xbf16>
    %cst_88 = arith.constant dense<0.000000e+00> : vector<8x128xf32>
    %133 = tpu.matmul %131, %132, %cst_88 {dimension_numbers = #tpu.dot_dimension_numbers<[1], [0], [0], [1], [0, 0, 1, 1], [], []>} : vector<8x64xbf16>, vector<64x128xbf16>, vector<8x128xf32> -> vector<8x128xf32>
    %134 = arith.addf %129, %133 : vector<8x128xf32>
    %c208 = arith.constant 208 : index
    %c0_89 = arith.constant 0 : index
    %135 = vector.load %arg10[%c208, %c0_89] : memref<392x64xf32, #tpu.memory_space<vmem>>, vector<8x64xf32>
    %136 = arith.truncf %135 : vector<8x64xf32> to vector<8x64xbf16>
    %c1664 = arith.constant 1664 : index
    %c0_90 = arith.constant 0 : index
    %137 = vector.load %arg3[%c1664, %c0_90] : memref<3136x128xbf16, #tpu.memory_space<vmem>>, vector<64x128xbf16>
    %cst_91 = arith.constant dense<0.000000e+00> : vector<8x128xf32>
    %138 = tpu.matmul %136, %137, %cst_91 {dimension_numbers = #tpu.dot_dimension_numbers<[1], [0], [0], [1], [0, 0, 1, 1], [], []>} : vector<8x64xbf16>, vector<64x128xbf16>, vector<8x128xf32> -> vector<8x128xf32>
    %139 = arith.addf %134, %138 : vector<8x128xf32>
    %c216 = arith.constant 216 : index
    %c0_92 = arith.constant 0 : index
    %140 = vector.load %arg10[%c216, %c0_92] : memref<392x64xf32, #tpu.memory_space<vmem>>, vector<8x64xf32>
    %141 = arith.truncf %140 : vector<8x64xf32> to vector<8x64xbf16>
    %c1728 = arith.constant 1728 : index
    %c0_93 = arith.constant 0 : index
    %142 = vector.load %arg3[%c1728, %c0_93] : memref<3136x128xbf16, #tpu.memory_space<vmem>>, vector<64x128xbf16>
    %cst_94 = arith.constant dense<0.000000e+00> : vector<8x128xf32>
    %143 = tpu.matmul %141, %142, %cst_94 {dimension_numbers = #tpu.dot_dimension_numbers<[1], [0], [0], [1], [0, 0, 1, 1], [], []>} : vector<8x64xbf16>, vector<64x128xbf16>, vector<8x128xf32> -> vector<8x128xf32>
    %144 = arith.addf %139, %143 : vector<8x128xf32>
    %c224 = arith.constant 224 : index
    %c0_95 = arith.constant 0 : index
    %145 = vector.load %arg10[%c224, %c0_95] : memref<392x64xf32, #tpu.memory_space<vmem>>, vector<8x64xf32>
    %146 = arith.truncf %145 : vector<8x64xf32> to vector<8x64xbf16>
    %c1792 = arith.constant 1792 : index
    %c0_96 = arith.constant 0 : index
    %147 = vector.load %arg3[%c1792, %c0_96] : memref<3136x128xbf16, #tpu.memory_space<vmem>>, vector<64x128xbf16>
    %cst_97 = arith.constant dense<0.000000e+00> : vector<8x128xf32>
    %148 = tpu.matmul %146, %147, %cst_97 {dimension_numbers = #tpu.dot_dimension_numbers<[1], [0], [0], [1], [0, 0, 1, 1], [], []>} : vector<8x64xbf16>, vector<64x128xbf16>, vector<8x128xf32> -> vector<8x128xf32>
    %149 = arith.addf %144, %148 : vector<8x128xf32>
    %c232 = arith.constant 232 : index
    %c0_98 = arith.constant 0 : index
    %150 = vector.load %arg10[%c232, %c0_98] : memref<392x64xf32, #tpu.memory_space<vmem>>, vector<8x64xf32>
    %151 = arith.truncf %150 : vector<8x64xf32> to vector<8x64xbf16>
    %c1856 = arith.constant 1856 : index
    %c0_99 = arith.constant 0 : index
    %152 = vector.load %arg3[%c1856, %c0_99] : memref<3136x128xbf16, #tpu.memory_space<vmem>>, vector<64x128xbf16>
    %cst_100 = arith.constant dense<0.000000e+00> : vector<8x128xf32>
    %153 = tpu.matmul %151, %152, %cst_100 {dimension_numbers = #tpu.dot_dimension_numbers<[1], [0], [0], [1], [0, 0, 1, 1], [], []>} : vector<8x64xbf16>, vector<64x128xbf16>, vector<8x128xf32> -> vector<8x128xf32>
    %154 = arith.addf %149, %153 : vector<8x128xf32>
    %c240 = arith.constant 240 : index
    %c0_101 = arith.constant 0 : index
    %155 = vector.load %arg10[%c240, %c0_101] : memref<392x64xf32, #tpu.memory_space<vmem>>, vector<8x64xf32>
    %156 = arith.truncf %155 : vector<8x64xf32> to vector<8x64xbf16>
    %c1920 = arith.constant 1920 : index
    %c0_102 = arith.constant 0 : index
    %157 = vector.load %arg3[%c1920, %c0_102] : memref<3136x128xbf16, #tpu.memory_space<vmem>>, vector<64x128xbf16>
    %cst_103 = arith.constant dense<0.000000e+00> : vector<8x128xf32>
    %158 = tpu.matmul %156, %157, %cst_103 {dimension_numbers = #tpu.dot_dimension_numbers<[1], [0], [0], [1], [0, 0, 1, 1], [], []>} : vector<8x64xbf16>, vector<64x128xbf16>, vector<8x128xf32> -> vector<8x128xf32>
    %159 = arith.addf %154, %158 : vector<8x128xf32>
    %c248 = arith.constant 248 : index
    %c0_104 = arith.constant 0 : index
    %160 = vector.load %arg10[%c248, %c0_104] : memref<392x64xf32, #tpu.memory_space<vmem>>, vector<8x64xf32>
    %161 = arith.truncf %160 : vector<8x64xf32> to vector<8x64xbf16>
    %c1984 = arith.constant 1984 : index
    %c0_105 = arith.constant 0 : index
    %162 = vector.load %arg3[%c1984, %c0_105] : memref<3136x128xbf16, #tpu.memory_space<vmem>>, vector<64x128xbf16>
    %cst_106 = arith.constant dense<0.000000e+00> : vector<8x128xf32>
    %163 = tpu.matmul %161, %162, %cst_106 {dimension_numbers = #tpu.dot_dimension_numbers<[1], [0], [0], [1], [0, 0, 1, 1], [], []>} : vector<8x64xbf16>, vector<64x128xbf16>, vector<8x128xf32> -> vector<8x128xf32>
    %164 = arith.addf %159, %163 : vector<8x128xf32>
    %c256_107 = arith.constant 256 : index
    %c0_108 = arith.constant 0 : index
    %165 = vector.load %arg10[%c256_107, %c0_108] : memref<392x64xf32, #tpu.memory_space<vmem>>, vector<8x64xf32>
    %166 = arith.truncf %165 : vector<8x64xf32> to vector<8x64xbf16>
    %c2048 = arith.constant 2048 : index
    %c0_109 = arith.constant 0 : index
    %167 = vector.load %arg3[%c2048, %c0_109] : memref<3136x128xbf16, #tpu.memory_space<vmem>>, vector<64x128xbf16>
    %cst_110 = arith.constant dense<0.000000e+00> : vector<8x128xf32>
    %168 = tpu.matmul %166, %167, %cst_110 {dimension_numbers = #tpu.dot_dimension_numbers<[1], [0], [0], [1], [0, 0, 1, 1], [], []>} : vector<8x64xbf16>, vector<64x128xbf16>, vector<8x128xf32> -> vector<8x128xf32>
    %169 = arith.addf %164, %168 : vector<8x128xf32>
    %c264 = arith.constant 264 : index
    %c0_111 = arith.constant 0 : index
    %170 = vector.load %arg10[%c264, %c0_111] : memref<392x64xf32, #tpu.memory_space<vmem>>, vector<8x64xf32>
    %171 = arith.truncf %170 : vector<8x64xf32> to vector<8x64xbf16>
    %c2112 = arith.constant 2112 : index
    %c0_112 = arith.constant 0 : index
    %172 = vector.load %arg3[%c2112, %c0_112] : memref<3136x128xbf16, #tpu.memory_space<vmem>>, vector<64x128xbf16>
    %cst_113 = arith.constant dense<0.000000e+00> : vector<8x128xf32>
    %173 = tpu.matmul %171, %172, %cst_113 {dimension_numbers = #tpu.dot_dimension_numbers<[1], [0], [0], [1], [0, 0, 1, 1], [], []>} : vector<8x64xbf16>, vector<64x128xbf16>, vector<8x128xf32> -> vector<8x128xf32>
    %174 = arith.addf %169, %173 : vector<8x128xf32>
    %c272 = arith.constant 272 : index
    %c0_114 = arith.constant 0 : index
    %175 = vector.load %arg10[%c272, %c0_114] : memref<392x64xf32, #tpu.memory_space<vmem>>, vector<8x64xf32>
    %176 = arith.truncf %175 : vector<8x64xf32> to vector<8x64xbf16>
    %c2176 = arith.constant 2176 : index
    %c0_115 = arith.constant 0 : index
    %177 = vector.load %arg3[%c2176, %c0_115] : memref<3136x128xbf16, #tpu.memory_space<vmem>>, vector<64x128xbf16>
    %cst_116 = arith.constant dense<0.000000e+00> : vector<8x128xf32>
    %178 = tpu.matmul %176, %177, %cst_116 {dimension_numbers = #tpu.dot_dimension_numbers<[1], [0], [0], [1], [0, 0, 1, 1], [], []>} : vector<8x64xbf16>, vector<64x128xbf16>, vector<8x128xf32> -> vector<8x128xf32>
    %179 = arith.addf %174, %178 : vector<8x128xf32>
    %c280 = arith.constant 280 : index
    %c0_117 = arith.constant 0 : index
    %180 = vector.load %arg10[%c280, %c0_117] : memref<392x64xf32, #tpu.memory_space<vmem>>, vector<8x64xf32>
    %181 = arith.truncf %180 : vector<8x64xf32> to vector<8x64xbf16>
    %c2240 = arith.constant 2240 : index
    %c0_118 = arith.constant 0 : index
    %182 = vector.load %arg3[%c2240, %c0_118] : memref<3136x128xbf16, #tpu.memory_space<vmem>>, vector<64x128xbf16>
    %cst_119 = arith.constant dense<0.000000e+00> : vector<8x128xf32>
    %183 = tpu.matmul %181, %182, %cst_119 {dimension_numbers = #tpu.dot_dimension_numbers<[1], [0], [0], [1], [0, 0, 1, 1], [], []>} : vector<8x64xbf16>, vector<64x128xbf16>, vector<8x128xf32> -> vector<8x128xf32>
    %184 = arith.addf %179, %183 : vector<8x128xf32>
    %c288 = arith.constant 288 : index
    %c0_120 = arith.constant 0 : index
    %185 = vector.load %arg10[%c288, %c0_120] : memref<392x64xf32, #tpu.memory_space<vmem>>, vector<8x64xf32>
    %186 = arith.truncf %185 : vector<8x64xf32> to vector<8x64xbf16>
    %c2304 = arith.constant 2304 : index
    %c0_121 = arith.constant 0 : index
    %187 = vector.load %arg3[%c2304, %c0_121] : memref<3136x128xbf16, #tpu.memory_space<vmem>>, vector<64x128xbf16>
    %cst_122 = arith.constant dense<0.000000e+00> : vector<8x128xf32>
    %188 = tpu.matmul %186, %187, %cst_122 {dimension_numbers = #tpu.dot_dimension_numbers<[1], [0], [0], [1], [0, 0, 1, 1], [], []>} : vector<8x64xbf16>, vector<64x128xbf16>, vector<8x128xf32> -> vector<8x128xf32>
    %189 = arith.addf %184, %188 : vector<8x128xf32>
    %c296 = arith.constant 296 : index
    %c0_123 = arith.constant 0 : index
    %190 = vector.load %arg10[%c296, %c0_123] : memref<392x64xf32, #tpu.memory_space<vmem>>, vector<8x64xf32>
    %191 = arith.truncf %190 : vector<8x64xf32> to vector<8x64xbf16>
    %c2368 = arith.constant 2368 : index
    %c0_124 = arith.constant 0 : index
    %192 = vector.load %arg3[%c2368, %c0_124] : memref<3136x128xbf16, #tpu.memory_space<vmem>>, vector<64x128xbf16>
    %cst_125 = arith.constant dense<0.000000e+00> : vector<8x128xf32>
    %193 = tpu.matmul %191, %192, %cst_125 {dimension_numbers = #tpu.dot_dimension_numbers<[1], [0], [0], [1], [0, 0, 1, 1], [], []>} : vector<8x64xbf16>, vector<64x128xbf16>, vector<8x128xf32> -> vector<8x128xf32>
    %194 = arith.addf %189, %193 : vector<8x128xf32>
    %c304 = arith.constant 304 : index
    %c0_126 = arith.constant 0 : index
    %195 = vector.load %arg10[%c304, %c0_126] : memref<392x64xf32, #tpu.memory_space<vmem>>, vector<8x64xf32>
    %196 = arith.truncf %195 : vector<8x64xf32> to vector<8x64xbf16>
    %c2432 = arith.constant 2432 : index
    %c0_127 = arith.constant 0 : index
    %197 = vector.load %arg3[%c2432, %c0_127] : memref<3136x128xbf16, #tpu.memory_space<vmem>>, vector<64x128xbf16>
    %cst_128 = arith.constant dense<0.000000e+00> : vector<8x128xf32>
    %198 = tpu.matmul %196, %197, %cst_128 {dimension_numbers = #tpu.dot_dimension_numbers<[1], [0], [0], [1], [0, 0, 1, 1], [], []>} : vector<8x64xbf16>, vector<64x128xbf16>, vector<8x128xf32> -> vector<8x128xf32>
    %199 = arith.addf %194, %198 : vector<8x128xf32>
    %c312 = arith.constant 312 : index
    %c0_129 = arith.constant 0 : index
    %200 = vector.load %arg10[%c312, %c0_129] : memref<392x64xf32, #tpu.memory_space<vmem>>, vector<8x64xf32>
    %201 = arith.truncf %200 : vector<8x64xf32> to vector<8x64xbf16>
    %c2496 = arith.constant 2496 : index
    %c0_130 = arith.constant 0 : index
    %202 = vector.load %arg3[%c2496, %c0_130] : memref<3136x128xbf16, #tpu.memory_space<vmem>>, vector<64x128xbf16>
    %cst_131 = arith.constant dense<0.000000e+00> : vector<8x128xf32>
    %203 = tpu.matmul %201, %202, %cst_131 {dimension_numbers = #tpu.dot_dimension_numbers<[1], [0], [0], [1], [0, 0, 1, 1], [], []>} : vector<8x64xbf16>, vector<64x128xbf16>, vector<8x128xf32> -> vector<8x128xf32>
    %204 = arith.addf %199, %203 : vector<8x128xf32>
    %c320_132 = arith.constant 320 : index
    %c0_133 = arith.constant 0 : index
    %205 = vector.load %arg10[%c320_132, %c0_133] : memref<392x64xf32, #tpu.memory_space<vmem>>, vector<8x64xf32>
    %206 = arith.truncf %205 : vector<8x64xf32> to vector<8x64xbf16>
    %c2560 = arith.constant 2560 : index
    %c0_134 = arith.constant 0 : index
    %207 = vector.load %arg3[%c2560, %c0_134] : memref<3136x128xbf16, #tpu.memory_space<vmem>>, vector<64x128xbf16>
    %cst_135 = arith.constant dense<0.000000e+00> : vector<8x128xf32>
    %208 = tpu.matmul %206, %207, %cst_135 {dimension_numbers = #tpu.dot_dimension_numbers<[1], [0], [0], [1], [0, 0, 1, 1], [], []>} : vector<8x64xbf16>, vector<64x128xbf16>, vector<8x128xf32> -> vector<8x128xf32>
    %209 = arith.addf %204, %208 : vector<8x128xf32>
    %c328 = arith.constant 328 : index
    %c0_136 = arith.constant 0 : index
    %210 = vector.load %arg10[%c328, %c0_136] : memref<392x64xf32, #tpu.memory_space<vmem>>, vector<8x64xf32>
    %211 = arith.truncf %210 : vector<8x64xf32> to vector<8x64xbf16>
    %c2624 = arith.constant 2624 : index
    %c0_137 = arith.constant 0 : index
    %212 = vector.load %arg3[%c2624, %c0_137] : memref<3136x128xbf16, #tpu.memory_space<vmem>>, vector<64x128xbf16>
    %cst_138 = arith.constant dense<0.000000e+00> : vector<8x128xf32>
    %213 = tpu.matmul %211, %212, %cst_138 {dimension_numbers = #tpu.dot_dimension_numbers<[1], [0], [0], [1], [0, 0, 1, 1], [], []>} : vector<8x64xbf16>, vector<64x128xbf16>, vector<8x128xf32> -> vector<8x128xf32>
    %214 = arith.addf %209, %213 : vector<8x128xf32>
    %c336 = arith.constant 336 : index
    %c0_139 = arith.constant 0 : index
    %215 = vector.load %arg10[%c336, %c0_139] : memref<392x64xf32, #tpu.memory_space<vmem>>, vector<8x64xf32>
    %216 = arith.truncf %215 : vector<8x64xf32> to vector<8x64xbf16>
    %c2688 = arith.constant 2688 : index
    %c0_140 = arith.constant 0 : index
    %217 = vector.load %arg3[%c2688, %c0_140] : memref<3136x128xbf16, #tpu.memory_space<vmem>>, vector<64x128xbf16>
    %cst_141 = arith.constant dense<0.000000e+00> : vector<8x128xf32>
    %218 = tpu.matmul %216, %217, %cst_141 {dimension_numbers = #tpu.dot_dimension_numbers<[1], [0], [0], [1], [0, 0, 1, 1], [], []>} : vector<8x64xbf16>, vector<64x128xbf16>, vector<8x128xf32> -> vector<8x128xf32>
    %219 = arith.addf %214, %218 : vector<8x128xf32>
    %c344 = arith.constant 344 : index
    %c0_142 = arith.constant 0 : index
    %220 = vector.load %arg10[%c344, %c0_142] : memref<392x64xf32, #tpu.memory_space<vmem>>, vector<8x64xf32>
    %221 = arith.truncf %220 : vector<8x64xf32> to vector<8x64xbf16>
    %c2752 = arith.constant 2752 : index
    %c0_143 = arith.constant 0 : index
    %222 = vector.load %arg3[%c2752, %c0_143] : memref<3136x128xbf16, #tpu.memory_space<vmem>>, vector<64x128xbf16>
    %cst_144 = arith.constant dense<0.000000e+00> : vector<8x128xf32>
    %223 = tpu.matmul %221, %222, %cst_144 {dimension_numbers = #tpu.dot_dimension_numbers<[1], [0], [0], [1], [0, 0, 1, 1], [], []>} : vector<8x64xbf16>, vector<64x128xbf16>, vector<8x128xf32> -> vector<8x128xf32>
    %224 = arith.addf %219, %223 : vector<8x128xf32>
    %c352 = arith.constant 352 : index
    %c0_145 = arith.constant 0 : index
    %225 = vector.load %arg10[%c352, %c0_145] : memref<392x64xf32, #tpu.memory_space<vmem>>, vector<8x64xf32>
    %226 = arith.truncf %225 : vector<8x64xf32> to vector<8x64xbf16>
    %c2816 = arith.constant 2816 : index
    %c0_146 = arith.constant 0 : index
    %227 = vector.load %arg3[%c2816, %c0_146] : memref<3136x128xbf16, #tpu.memory_space<vmem>>, vector<64x128xbf16>
    %cst_147 = arith.constant dense<0.000000e+00> : vector<8x128xf32>
    %228 = tpu.matmul %226, %227, %cst_147 {dimension_numbers = #tpu.dot_dimension_numbers<[1], [0], [0], [1], [0, 0, 1, 1], [], []>} : vector<8x64xbf16>, vector<64x128xbf16>, vector<8x128xf32> -> vector<8x128xf32>
    %229 = arith.addf %224, %228 : vector<8x128xf32>
    %c360 = arith.constant 360 : index
    %c0_148 = arith.constant 0 : index
    %230 = vector.load %arg10[%c360, %c0_148] : memref<392x64xf32, #tpu.memory_space<vmem>>, vector<8x64xf32>
    %231 = arith.truncf %230 : vector<8x64xf32> to vector<8x64xbf16>
    %c2880 = arith.constant 2880 : index
    %c0_149 = arith.constant 0 : index
    %232 = vector.load %arg3[%c2880, %c0_149] : memref<3136x128xbf16, #tpu.memory_space<vmem>>, vector<64x128xbf16>
    %cst_150 = arith.constant dense<0.000000e+00> : vector<8x128xf32>
    %233 = tpu.matmul %231, %232, %cst_150 {dimension_numbers = #tpu.dot_dimension_numbers<[1], [0], [0], [1], [0, 0, 1, 1], [], []>} : vector<8x64xbf16>, vector<64x128xbf16>, vector<8x128xf32> -> vector<8x128xf32>
    %234 = arith.addf %229, %233 : vector<8x128xf32>
    %c368 = arith.constant 368 : index
    %c0_151 = arith.constant 0 : index
    %235 = vector.load %arg10[%c368, %c0_151] : memref<392x64xf32, #tpu.memory_space<vmem>>, vector<8x64xf32>
    %236 = arith.truncf %235 : vector<8x64xf32> to vector<8x64xbf16>
    %c2944 = arith.constant 2944 : index
    %c0_152 = arith.constant 0 : index
    %237 = vector.load %arg3[%c2944, %c0_152] : memref<3136x128xbf16, #tpu.memory_space<vmem>>, vector<64x128xbf16>
    %cst_153 = arith.constant dense<0.000000e+00> : vector<8x128xf32>
    %238 = tpu.matmul %236, %237, %cst_153 {dimension_numbers = #tpu.dot_dimension_numbers<[1], [0], [0], [1], [0, 0, 1, 1], [], []>} : vector<8x64xbf16>, vector<64x128xbf16>, vector<8x128xf32> -> vector<8x128xf32>
    %239 = arith.addf %234, %238 : vector<8x128xf32>
    %c376 = arith.constant 376 : index
    %c0_154 = arith.constant 0 : index
    %240 = vector.load %arg10[%c376, %c0_154] : memref<392x64xf32, #tpu.memory_space<vmem>>, vector<8x64xf32>
    %241 = arith.truncf %240 : vector<8x64xf32> to vector<8x64xbf16>
    %c3008 = arith.constant 3008 : index
    %c0_155 = arith.constant 0 : index
    %242 = vector.load %arg3[%c3008, %c0_155] : memref<3136x128xbf16, #tpu.memory_space<vmem>>, vector<64x128xbf16>
    %cst_156 = arith.constant dense<0.000000e+00> : vector<8x128xf32>
    %243 = tpu.matmul %241, %242, %cst_156 {dimension_numbers = #tpu.dot_dimension_numbers<[1], [0], [0], [1], [0, 0, 1, 1], [], []>} : vector<8x64xbf16>, vector<64x128xbf16>, vector<8x128xf32> -> vector<8x128xf32>
    %244 = arith.addf %239, %243 : vector<8x128xf32>
    %c384_157 = arith.constant 384 : index
    %c0_158 = arith.constant 0 : index
    %245 = vector.load %arg10[%c384_157, %c0_158] : memref<392x64xf32, #tpu.memory_space<vmem>>, vector<8x64xf32>
    %246 = arith.truncf %245 : vector<8x64xf32> to vector<8x64xbf16>
    %c3072 = arith.constant 3072 : index
    %c0_159 = arith.constant 0 : index
    %247 = vector.load %arg3[%c3072, %c0_159] : memref<3136x128xbf16, #tpu.memory_space<vmem>>, vector<64x128xbf16>
    %cst_160 = arith.constant dense<0.000000e+00> : vector<8x128xf32>
    %248 = tpu.matmul %246, %247, %cst_160 {dimension_numbers = #tpu.dot_dimension_numbers<[1], [0], [0], [1], [0, 0, 1, 1], [], []>} : vector<8x64xbf16>, vector<64x128xbf16>, vector<8x128xf32> -> vector<8x128xf32>
    %249 = arith.addf %244, %248 : vector<8x128xf32>
    %c0_161 = arith.constant 0 : index
    %c0_162 = arith.constant 0 : index
    %250 = vector.load %arg4[%c0_161, %c0_162] : memref<1x128xf32, #tpu.memory_space<vmem>>, vector<1x128xf32>
    %251 = vector.broadcast %250 : vector<1x128xf32> to vector<8x128xf32>
    %252 = arith.addf %249, %251 : vector<8x128xf32>
    %cst_163 = arith.constant 0.000000e+00 : f32
    %253 = vector.broadcast %cst_163 : f32 to vector<8x128xf32>
    %254 = arith.maximumf %252, %253 : vector<8x128xf32>
    %255 = arith.truncf %254 : vector<8x128xf32> to vector<8x128xbf16>
    %c0_164 = arith.constant 0 : index
    %c0_165 = arith.constant 0 : index
    %256 = vector.load %arg5[%c0_164, %c0_165] : memref<128x128xbf16, #tpu.memory_space<vmem>>, vector<128x128xbf16>
    %cst_166 = arith.constant dense<0.000000e+00> : vector<8x128xf32>
    %257 = tpu.matmul %255, %256, %cst_166 {dimension_numbers = #tpu.dot_dimension_numbers<[1], [0], [0], [1], [0, 0, 1, 1], [], []>} : vector<8x128xbf16>, vector<128x128xbf16>, vector<8x128xf32> -> vector<8x128xf32>
    %c0_167 = arith.constant 0 : index
    %c0_168 = arith.constant 0 : index
    %258 = vector.load %arg6[%c0_167, %c0_168] : memref<1x128xf32, #tpu.memory_space<vmem>>, vector<1x128xf32>
    %259 = vector.broadcast %258 : vector<1x128xf32> to vector<8x128xf32>
    %260 = arith.addf %257, %259 : vector<8x128xf32>
    %cst_169 = arith.constant 0.000000e+00 : f32
    %261 = vector.broadcast %cst_169 : f32 to vector<8x128xf32>
    %262 = arith.maximumf %260, %261 : vector<8x128xf32>
    %263 = arith.truncf %262 : vector<8x128xf32> to vector<8x128xbf16>
    %c0_170 = arith.constant 0 : index
    %c0_171 = arith.constant 0 : index
    %264 = vector.load %arg7[%c0_170, %c0_171] : memref<128x128xbf16, #tpu.memory_space<vmem>>, vector<128x128xbf16>
    %cst_172 = arith.constant dense<0.000000e+00> : vector<8x128xf32>
    %265 = tpu.matmul %263, %264, %cst_172 {dimension_numbers = #tpu.dot_dimension_numbers<[1], [0], [0], [1], [0, 0, 1, 1], [], []>} : vector<8x128xbf16>, vector<128x128xbf16>, vector<8x128xf32> -> vector<8x128xf32>
    %c0_173 = arith.constant 0 : index
    %c0_174 = arith.constant 0 : index
    %266 = vector.load %arg8[%c0_173, %c0_174] : memref<1x128xf32, #tpu.memory_space<vmem>>, vector<1x128xf32>
    %267 = vector.broadcast %266 : vector<1x128xf32> to vector<8x128xf32>
    %268 = arith.addf %265, %267 : vector<8x128xf32>
    %c0_175 = arith.constant 0 : index
    %c0_176 = arith.constant 0 : index
    %269 = vector.load %arg9[%c0_175, %c0_176] : memref<8x128xf32, #tpu.memory_space<vmem>>, vector<8x128xf32>
    tpu.vector_store %arg9[%c0_175, %c0_176], %268 {strides = array<i32>} : memref<8x128xf32, #tpu.memory_space<vmem>>, vector<8x128xf32>,
    return
  }
  func.func @transform_0(%arg0: i32) -> (i32, i32) {
    %c0_i32 = arith.constant 0 : i32
    %c0_i32_0 = arith.constant 0 : i32
    return %arg0, %c0_i32 : i32, i32
  }
  func.func @transform_1(%arg0: i32) -> (i32, i32) {
    %c0_i32 = arith.constant 0 : i32
    %c0_i32_0 = arith.constant 0 : i32
    %c0_i32_1 = arith.constant 0 : i32
    return %c0_i32, %c0_i32_0 : i32, i32
  }
  func.func @transform_2(%arg0: i32) -> (i32, i32) {
    %c0_i32 = arith.constant 0 : i32
    %c0_i32_0 = arith.constant 0 : i32
    %c0_i32_1 = arith.constant 0 : i32
    return %c0_i32, %c0_i32_0 : i32, i32
  }
  func.func @transform_3(%arg0: i32) -> (i32, i32) {
    %c0_i32 = arith.constant 0 : i32
    %c0_i32_0 = arith.constant 0 : i32
    %c0_i32_1 = arith.constant 0 : i32
    return %c0_i32, %c0_i32_0 : i32, i32
  }
  func.func @transform_4(%arg0: i32) -> (i32, i32) {
    %c0_i32 = arith.constant 0 : i32
    %c0_i32_0 = arith.constant 0 : i32
    %c0_i32_1 = arith.constant 0 : i32
    return %c0_i32, %c0_i32_0 : i32, i32
  }
  func.func @transform_5(%arg0: i32) -> (i32, i32) {
    %c0_i32 = arith.constant 0 : i32
    %c0_i32_0 = arith.constant 0 : i32
    %c0_i32_1 = arith.constant 0 : i32
    return %c0_i32, %c0_i32_0 : i32, i32
  }
  func.func @transform_6(%arg0: i32) -> (i32, i32) {
    %c0_i32 = arith.constant 0 : i32
    %c0_i32_0 = arith.constant 0 : i32
    %c0_i32_1 = arith.constant 0 : i32
    return %c0_i32, %c0_i32_0 : i32, i32
  }
  func.func @transform_7(%arg0: i32) -> (i32, i32) {
    %c0_i32 = arith.constant 0 : i32
    %c0_i32_0 = arith.constant 0 : i32
    %c0_i32_1 = arith.constant 0 : i32
    return %c0_i32, %c0_i32_0 : i32, i32
  }
  func.func @transform_8(%arg0: i32) -> (i32, i32) {
    %c0_i32 = arith.constant 0 : i32
    %c0_i32_0 = arith.constant 0 : i32
    return %arg0, %c0_i32 : i32, i32
  }
}

</mosaic_0001>

<llo_original>
// kernel: roi_extractor_forward.3
$region0: #{roi_extractor_forward.3}
  #allocation0 [shape = 'u32[]', space=smem, size = 0x4, offset = 0x4, fixed_abs, tag = 'smem constant byte address 0x4 - core index']
  #allocation1 [shape = 'u32[72,128]{1,0:T(1,128)}', space=vmem, size = 0x9000, scoped, tag = 'internal scratch']
  %s0 = inlined_call_operand.vmem [shape: bf16[512,27], index: 0, kind: input, shape index: {}]
  %s1 = inlined_call_operand.vmem [shape: bf16[27,128], index: 1, kind: input, shape index: {}]
  %s2 = inlined_call_operand.vmem [shape: f32[1,128], index: 2, kind: input, shape index: {}]
  %s3 = inlined_call_operand.vmem [shape: bf16[512,128], index: 3, kind: output, shape index: {}]
  %s4 = sld [smem:[#allocation0]]
  $region45: #{roi_extractor_forward.3} parent=0
    _
  %s6 = ssub.s32 1, %s4
  %s7 = scalar_select 0, %s6, %s4
  loop: start=0, step=1, limit=4
  $region2: #{roi_extractor_forward.3} parent=0 // loop_pre_header
    _
  $region3: #{roi_extractor_forward.3} parent=0 // loop_header
    %s9 = sphi 0, %s13
    %p10 = scmp.ge.s32.totalorder %s9, 4
    %s19 = sphi 0, %s21
    %s22 = sphi 0, %s19
    %s23 = sphi 0, %s22
    %s39 = sphi 0, %s23
    %s43 = sphi 0, %s43
    %s45 = sphi 0, %s43
    %s46 = sphi 0, %s45
    %s60 = sphi 0, %s46
    %s64 = sphi 0, %s64
    %s66 = sphi 0, %s64
    %s67 = sphi 0, %s66
    %s81 = sphi 0, %s67
    %s87 = sphi 0, %s89
    %s90 = sphi 0, %s87
    %s91 = sphi 0, %s90
    %s107 = sphi 0, %s91
  $region4: #{roi_extractor_forward.3} parent=0 // loop_header_branch
    %12 = sbr.rel (%p10) target = $region8
  $region5: #{roi_extractor_forward.3} parent=0 // loop_body
    %s14 = ssub.s32 %s9, 1
    %s15 = ssub.s32 %s9, 2
    %s16 = sadd.s32 %s9, 1
    %s17 = ssub.s32 %s9, %s16
    %p18 = scmp.eq.s32.totalorder %s17, 0
    %s20 = sadd.s32 %s19, 1
    %s21 = scalar_select %p18, %s19, %s20
    %p24 = pneg %p18
    %p25 = scmp.eq.s32.totalorder %s9, 1
    %p26 = por %p24, %p25
    %p27 = scmp.ne.s32.totalorder %s19, %s22
    %p28 = scmp.eq.s32.totalorder %s9, 0
    %p29 = por %p27, %p28
    %p30 = scmp.ne.s32.totalorder %s19, %s22
    %p31 = scmp.eq.s32.totalorder %s14, 1
    %p32 = por %p30, %p31
    %p33 = scmp.ne.s32.totalorder %s22, %s23
    %p34 = scmp.eq.s32.totalorder %s14, 0
    %p35 = por %p33, %p34
    %p36 = scmp.ne.s32.totalorder %s22, %s23
    %p37 = scmp.eq.s32.totalorder %s15, 1
    %p38 = por %p36, %p37
    %p40 = scmp.ne.s32.totalorder %s23, %s39
    %p41 = scmp.eq.s32.totalorder %s15, 0
    %p42 = por %p40, %p41
    %s44 = sadd.s32 %s43, 1
    %p47 = scmp.eq.s32.totalorder %s9, 1
    %p48 = scmp.ne.s32.totalorder %s43, %s45
    %p49 = scmp.eq.s32.totalorder %s9, 0
    %p50 = por %p48, %p49
    %p51 = scmp.ne.s32.totalorder %s43, %s45
    %p52 = scmp.eq.s32.totalorder %s14, 1
    %p53 = por %p51, %p52
    %p54 = scmp.ne.s32.totalorder %s45, %s46
    %p55 = scmp.eq.s32.totalorder %s14, 0
    %p56 = por %p54, %p55
    %p57 = scmp.ne.s32.totalorder %s45, %s46
    %p58 = scmp.eq.s32.totalorder %s15, 1
    %p59 = por %p57, %p58
    %p61 = scmp.ne.s32.totalorder %s46, %s60
    %p62 = scmp.eq.s32.totalorder %s15, 0
    %p63 = por %p61, %p62
    %s65 = sadd.s32 %s64, 1
    %p68 = scmp.eq.s32.totalorder %s9, 1
    %p69 = scmp.ne.s32.totalorder %s64, %s66
    %p70 = scmp.eq.s32.totalorder %s9, 0
    %p71 = por %p69, %p70
    %p72 = scmp.ne.s32.totalorder %s64, %s66
    %p73 = scmp.eq.s32.totalorder %s14, 1
    %p74 = por %p72, %p73
    %p75 = scmp.ne.s32.totalorder %s66, %s67
    %p76 = scmp.eq.s32.totalorder %s14, 0
    %p77 = por %p75, %p76
    %p78 = scmp.ne.s32.totalorder %s66, %s67
    %p79 = scmp.eq.s32.totalorder %s15, 1
    %p80 = por %p78, %p79
    %p82 = scmp.ne.s32.totalorder %s67, %s81
    %p83 = scmp.eq.s32.totalorder %s15, 0
    %p84 = por %p82, %p83
    %s85 = ssub.s32 %s9, %s16
    %p86 = scmp.eq.s32.totalorder %s85, 0
    %s88 = sadd.s32 %s87, 1
    %s89 = scalar_select %p86, %s87, %s88
    %p92 = pneg %p86
    %p93 = scmp.eq.s32.totalorder %s9, 1
    %p94 = por %p92, %p93
    %p95 = scmp.ne.s32.totalorder %s87, %s90
    %p96 = scmp.eq.s32.totalorder %s9, 0
    %p97 = por %p95, %p96
    %p98 = scmp.ne.s32.totalorder %s87, %s90
    %p99 = scmp.eq.s32.totalorder %s14, 1
    %p100 = por %p98, %p99
    %p101 = scmp.ne.s32.totalorder %s90, %s91
    %p102 = scmp.eq.s32.totalorder %s14, 0
    %p103 = por %p101, %p102
    %p104 = scmp.ne.s32.totalorder %s90, %s91
    %p105 = scmp.eq.s32.totalorder %s15, 1
    %p106 = por %p104, %p105
    %p108 = scmp.ne.s32.totalorder %s91, %s107
    %p109 = scmp.eq.s32.totalorder %s15, 0
    %p110 = por %p108, %p109
    %p111 = scmp.le.s32.totalorder 1, %s9
    %p112 = scmp.lt.s32.totalorder %s9, 3
    %p113 = pnand %p111, %p112
    %p114 = pneg %p113
    // Predicated region
    $region9: #{roi_extractor_forward.3} parent=5 // pred_check
      _
    $region10: #{roi_extractor_forward.3} parent=5 // pred_check_branch
      %116 = sbr.rel (%p113) target = $region12
    $region11: #{roi_extractor_forward.3} parent=5 // pred_region
      %s117 = ssub.s32 %s9, 1
      // Predicated region
      $region13: #{roi_extractor_forward.3} parent=11 // pred_check
        %p118 = pneg %p56
      $region14: #{roi_extractor_forward.3} parent=11 // pred_check_branch
        %120 = sbr.rel (%p118) target = $region16
      $region15: #{roi_extractor_forward.3} parent=11 // pred_region
        _
      $region16: #{roi_extractor_forward.3} parent=11 // pred_fallthru
        _
      // Predicated region
      $region17: #{roi_extractor_forward.3} parent=11 // pred_check
        %p121 = pneg %p77
      $region18: #{roi_extractor_forward.3} parent=11 // pred_check_branch
        %123 = sbr.rel (%p121) target = $region20
      $region19: #{roi_extractor_forward.3} parent=11 // pred_region
        _
      $region20: #{roi_extractor_forward.3} parent=11 // pred_fallthru
        _
    $region12: #{roi_extractor_forward.3} parent=5 // pred_fallthru
      _
    %p124 = scmp.lt.s32.totalorder %s9, 2
    // Predicated region
    $region21: #{roi_extractor_forward.3} parent=5 // pred_check
      %p125 = pneg %p124
    $region22: #{roi_extractor_forward.3} parent=5 // pred_check_branch
      %127 = sbr.rel (%p125) target = $region24
    $region23: #{roi_extractor_forward.3} parent=5 // pred_region
      // Predicated region
      $region25: #{roi_extractor_forward.3} parent=23 // pred_check
        %p128 = pneg %p29
      $region26: #{roi_extractor_forward.3} parent=23 // pred_check_branch
        %130 = sbr.rel (%p128) target = $region28
      $region27: #{roi_extractor_forward.3} parent=23 // pred_region
        %s131 = smul.u32 32, %s9
        %p132 = scmp.lt.s32.totalorder %s131, 63
        %s133 = scalar_select %p132, %s131, 63
        %s134 = smul.addr %s133, 4
        %s135 = scalar_lea.vmem %s0, %s134
        %s136 = smul.u32 32, %s9
      $region28: #{roi_extractor_forward.3} parent=23 // pred_fallthru
        _
    $region24: #{roi_extractor_forward.3} parent=5 // pred_fallthru
      _
    %p137 = scmp.le.s32.totalorder 1, %s9
    %p138 = scmp.lt.s32.totalorder %s9, 3
    %p139 = pnand %p137, %p138
    %p140 = pneg %p139
    // Predicated region
    $region29: #{roi_extractor_forward.3} parent=5 // pred_check
      _
    $region30: #{roi_extractor_forward.3} parent=5 // pred_check_branch
      %142 = sbr.rel (%p139) target = $region32
    $region31: #{roi_extractor_forward.3} parent=5 // pred_region
      %s143 = ssub.s32 %s9, 1
      %s144 = smul.u32 32, %s14
      %p145 = scmp.lt.s32.totalorder %s144, 63
      %s146 = scalar_select %p145, %s144, 63
      %s147 = smul.addr %s146, 4
      %s148 = scalar_lea.vmem %s0, %s147
      %p149 = pneg %p35
      %p150 = pneg %p32
      %p151 = pneg %p56
      %p152 = pneg %p53
      %p153 = pneg %p77
      %p154 = pneg %p74
      %p155 = pneg %p103
      %p156 = pneg %p100
      %s157 = smul.u32 32, %s14
      %p158 = scmp.lt.s32.totalorder %s157, 63
      %s159 = scalar_select %p158, %s157, 63
      %s160 = smul.addr %s159, 4
      %s161 = scalar_lea.vmem %s3, %s160
      %s162 = smul.u32 32, %s14
      %p163 = scmp.lt.s32.totalorder %s162, 63
      %s164 = scalar_select %p163, %s162, 63
      %s165 = smul.addr %s164, 4
      %s166 = scalar_lea.vmem %s0, %s165
      %s167 = smul.u32 32, %s14
      %s168 = smul.u32 32, %s14
      %p169 = scmp.lt.s32.totalorder %s168, 63
      %s170 = scalar_select %p169, %s168, 63
      %s171 = smul.addr %s170, 4
      %s172 = scalar_lea.vmem %s3, %s171
      %s173 = smul.u32 32, %s14
      %v175 = vld [vmem:[%s166] sm:$0xf]
      %v176 = vld [vmem:[%s166 + $0x4] sm:$0xf]
      %v177 = vld [vmem:[%s166 + $0x8] sm:$0xf]
      %v178 = vld [vmem:[%s166 + $0xc] sm:$0xf]
      %v179 = vld [vmem:[%s166 + $0x10] sm:$0xf]
      %v180 = vld [vmem:[%s166 + $0x14] sm:$0xf]
      %v181 = vld [vmem:[%s166 + $0x18] sm:$0xf]
      %v182 = vld [vmem:[%s166 + $0x1c] sm:$0xf]
      %v183 = vld [vmem:[%s166 + $0x20] sm:$0xf]
      %v184 = vld [vmem:[%s166 + $0x24] sm:$0xf]
      %v185 = vld [vmem:[%s166 + $0x28] sm:$0xf]
      %v186 = vld [vmem:[%s166 + $0x2c] sm:$0xf]
      %v187 = vld [vmem:[%s166 + $0x30] sm:$0xf]
      %v188 = vld [vmem:[%s166 + $0x34] sm:$0xf]
      %v189 = vld [vmem:[%s166 + $0x38] sm:$0xf]
      %v190 = vld [vmem:[%s166 + $0x3c] sm:$0xf]
      %v191 = vld [vmem:[%s166 + $0x40] sm:$0xf]
      %v192 = vld [vmem:[%s166 + $0x44] sm:$0xf]
      %v193 = vld [vmem:[%s166 + $0x48] sm:$0xf]
      %v194 = vld [vmem:[%s166 + $0x4c] sm:$0xf]
      %v195 = vld [vmem:[%s166 + $0x50] sm:$0xf]
      %v196 = vld [vmem:[%s166 + $0x54] sm:$0xf]
      %v197 = vld [vmem:[%s166 + $0x58] sm:$0xf]
      %v198 = vld [vmem:[%s166 + $0x5c] sm:$0xf]
      %v199 = vld [vmem:[%s166 + $0x60] sm:$0xf]
      %v200 = vld [vmem:[%s166 + $0x64] sm:$0xf]
      %v201 = vld [vmem:[%s166 + $0x68] sm:$0xf]
      %v202 = vld [vmem:[%s166 + $0x6c] sm:$0xf]
      %v203 = vld [vmem:[%s166 + $0x70] sm:$0xf]
      %v204 = vld [vmem:[%s166 + $0x74] sm:$0xf]
      %v205 = vld [vmem:[%s166 + $0x78] sm:$0xf]
      %v206 = vld [vmem:[%s166 + $0x7c] sm:$0xf]
      %v207 = vld [vmem:[%s1] sm:$0xf]
      %v208 = vld [vmem:[%s1 + $0x4] sm:$0xf]
      %v209 = vld [vmem:[%s1 + $0x8] sm:$0xf]
      %v210 = vld [vmem:[%s1 + $0xc] sm:$0x3]
      %v211 = vld [vmem:[%s2] sm:$0x1]
      %v213 = vperm.slane %v211, 0
      %v247 = vunpack.c.l.b16 %v175
      %v248 = vunpack.c.l.b16 %v176
      %v249 = vunpack.c.l.b16 %v177
      %v250 = vunpack.c.l.b16 %v178
      %v251 = vunpack.c.l.b16 %v179
      %v252 = vunpack.c.l.b16 %v180
      %v253 = vunpack.c.l.b16 %v181
      %v254 = vunpack.c.l.b16 %v182
      %v255 = vunpack.c.l.b16 %v183
      %v256 = vunpack.c.l.b16 %v184
      %v257 = vunpack.c.l.b16 %v185
      %v258 = vunpack.c.l.b16 %v186
      %v259 = vunpack.c.l.b16 %v187
      %v260 = vunpack.c.l.b16 %v188
      %v261 = vunpack.c.l.b16 %v189
      %v262 = vunpack.c.l.b16 %v190
      %v263 = vunpack.c.l.b16 %v191
      %v264 = vunpack.c.l.b16 %v192
      %v265 = vunpack.c.l.b16 %v193
      %v266 = vunpack.c.l.b16 %v194
      %v267 = vunpack.c.l.b16 %v195
      %v268 = vunpack.c.l.b16 %v196
      %v269 = vunpack.c.l.b16 %v197
      %v270 = vunpack.c.l.b16 %v198
      %v271 = vunpack.c.l.b16 %v199
      %v272 = vunpack.c.l.b16 %v200
      %v273 = vunpack.c.l.b16 %v201
      %v274 = vunpack.c.l.b16 %v202
      %v275 = vunpack.c.l.b16 %v203
      %v276 = vunpack.c.l.b16 %v204
      %v277 = vunpack.c.l.b16 %v205
      %v278 = vunpack.c.l.b16 %v206
      %v279 = vpack.c.b16 %v248, %v247
      %v280 = vpack.c.b16 %v250, %v249
      %v281 = vpack.c.b16 %v252, %v251
      %v282 = vpack.c.b16 %v254, %v253
      %v283 = vpack.c.b16 %v256, %v255
      %v284 = vpack.c.b16 %v258, %v257
      %v285 = vpack.c.b16 %v260, %v259
      %v286 = vpack.c.b16 %v262, %v261
      %v287 = vpack.c.b16 %v264, %v263
      %v288 = vpack.c.b16 %v266, %v265
      %v289 = vpack.c.b16 %v268, %v267
      %v290 = vpack.c.b16 %v270, %v269
      %v291 = vpack.c.b16 %v272, %v271
      %v292 = vpack.c.b16 %v274, %v273
      %v293 = vpack.c.b16 %v276, %v275
      %v294 = vpack.c.b16 %v278, %v277
      %v299 = vunpack.c.l.b16 %v207
      %v300 = vunpack.c.l.b16 %v208
      %v301 = vunpack.c.l.b16 %v209
      %v302 = vunpack.c.l.b16 %v210
      %v303 = vpack.c.b16 %v300, %v299
      %v304 = vpack.c.b16 %v302, %v301
      %vm306 = vcmask 220160
      %v308 = vsel %vm306, %v279, 0
      %v311 = vsel %vm306, %v280, 0
      %v314 = vsel %vm306, %v281, 0
      %v317 = vsel %vm306, %v282, 0
      %v320 = vsel %vm306, %v283, 0
      %v323 = vsel %vm306, %v284, 0
      %v326 = vsel %vm306, %v285, 0
      %v329 = vsel %vm306, %v286, 0
      %v332 = vsel %vm306, %v287, 0
      %v335 = vsel %vm306, %v288, 0
      %v338 = vsel %vm306, %v289, 0
      %v341 = vsel %vm306, %v290, 0
      %v344 = vsel %vm306, %v291, 0
      %v347 = vsel %vm306, %v292, 0
      %v350 = vsel %vm306, %v293, 0
      %v353 = vsel %vm306, %v294, 0
      %vm355 = vcmask 1044480
      %vm356 = vcmask 1045504
      %v357 = vsel %vm355, 4294967295, 65535
      %v358 = vsel %vm356, %v357, 0
      %v360 = vand.u32 %v304, %v358
      %362 = vmatpush.bf16.msra.mxu0 0
      %363 = vmatpush.bf16.msra.mxu0 0
      %364 = vmatpush.bf16.msra.mxu0 0
      %365 = vmatpush.bf16.msra.mxu0 0
      %366 = vmatpush.bf16.msra.mxu0 0
      %367 = vmatpush.bf16.msra.mxu0 0
      %368 = vmatpush.bf16.msra.mxu0 %v360
      %369 = vmatpush.bf16.msra.mxu0 %v303
      %370 = vmatmul.bf16.gmra.mxu0 %v308
      %v371 = vpop.f32.mrf.mxu0
      %v372 = vadd.f32 %v213, %v371
      %v373 = vpop.f32.mrf.mxu0
      %v374 = vadd.f32 %v213, %v373
      %375 = vmatmul.bf16.gmra.mxu0 %v311
      %v376 = vpop.f32.mrf.mxu0
      %v377 = vadd.f32 %v213, %v376
      %v378 = vpop.f32.mrf.mxu0
      %v379 = vadd.f32 %v213, %v378
      %380 = vmatmul.bf16.gmra.mxu0 %v314
      %v381 = vpop.f32.mrf.mxu0
      %v382 = vadd.f32 %v213, %v381
      %v383 = vpop.f32.mrf.mxu0
      %v384 = vadd.f32 %v213, %v383
      %385 = vmatmul.bf16.gmra.mxu0 %v317
      %v386 = vpop.f32.mrf.mxu0
      %v387 = vadd.f32 %v213, %v386
      %v388 = vpop.f32.mrf.mxu0
      %v389 = vadd.f32 %v213, %v388
      %390 = vmatmul.bf16.gmra.mxu0 %v320
      %v391 = vpop.f32.mrf.mxu0
      %v392 = vadd.f32 %v213, %v391
      %v393 = vpop.f32.mrf.mxu0
      %v394 = vadd.f32 %v213, %v393
      %395 = vmatmul.bf16.gmra.mxu0 %v323
      %v396 = vpop.f32.mrf.mxu0
      %v397 = vadd.f32 %v213, %v396
      %v398 = vpop.f32.mrf.mxu0
      %v399 = vadd.f32 %v213, %v398
      %400 = vmatmul.bf16.gmra.mxu0 %v326
      %v401 = vpop.f32.mrf.mxu0
      %v402 = vadd.f32 %v213, %v401
      %v403 = vpop.f32.mrf.mxu0
      %v404 = vadd.f32 %v213, %v403
      %405 = vmatmul.bf16.gmra.mxu0 %v329
      %v406 = vpop.f32.mrf.mxu0
      %v407 = vadd.f32 %v213, %v406
      %v408 = vpop.f32.mrf.mxu0
      %v409 = vadd.f32 %v213, %v408
      %410 = vmatmul.bf16.gmra.mxu0 %v332
      %v411 = vpop.f32.mrf.mxu0
      %v412 = vadd.f32 %v213, %v411
      %v413 = vpop.f32.mrf.mxu0
      %v414 = vadd.f32 %v213, %v413
      %415 = vmatmul.bf16.gmra.mxu0 %v335
      %v416 = vpop.f32.mrf.mxu0
      %v417 = vadd.f32 %v213, %v416
      %v418 = vpop.f32.mrf.mxu0
      %v419 = vadd.f32 %v213, %v418
      %420 = vmatmul.bf16.gmra.mxu0 %v338
      %v421 = vpop.f32.mrf.mxu0
      %v422 = vadd.f32 %v213, %v421
      %v423 = vpop.f32.mrf.mxu0
      %v424 = vadd.f32 %v213, %v423
      %425 = vmatmul.bf16.gmra.mxu0 %v341
      %v426 = vpop.f32.mrf.mxu0
      %v427 = vadd.f32 %v213, %v426
      %v428 = vpop.f32.mrf.mxu0
      %v429 = vadd.f32 %v213, %v428
      %430 = vmatmul.bf16.gmra.mxu0 %v344
      %v431 = vpop.f32.mrf.mxu0
      %v432 = vadd.f32 %v213, %v431
      %v433 = vpop.f32.mrf.mxu0
      %v434 = vadd.f32 %v213, %v433
      %435 = vmatmul.bf16.gmra.mxu0 %v347
      %v436 = vpop.f32.mrf.mxu0
      %v437 = vadd.f32 %v213, %v436
      %v438 = vpop.f32.mrf.mxu0
      %v439 = vadd.f32 %v213, %v438
      %440 = vmatmul.bf16.gmra.mxu0 %v350
      %v441 = vpop.f32.mrf.mxu0
      %v442 = vadd.f32 %v213, %v441
      %v443 = vpop.f32.mrf.mxu0
      %v444 = vadd.f32 %v213, %v443
      %445 = vmatmul.bf16.gmra.mxu0 %v353
      %v446 = vpop.f32.mrf.mxu0
      %v447 = vadd.f32 %v213, %v446
      %v448 = vpop.f32.mrf.mxu0
      %v449 = vadd.f32 %v213, %v448
      %450 = vdwg.mxu0
      %v451 = vmax.f32 %v372, 0.0
      %v452 = vmax.f32 %v374, 0.0
      %v453 = vmax.f32 %v377, 0.0
      %v454 = vmax.f32 %v379, 0.0
      %v455 = vmax.f32 %v382, 0.0
      %v456 = vmax.f32 %v384, 0.0
      %v457 = vmax.f32 %v387, 0.0
      %v458 = vmax.f32 %v389, 0.0
      %v459 = vmax.f32 %v392, 0.0
      %v460 = vmax.f32 %v394, 0.0
      %v461 = vmax.f32 %v397, 0.0
      %v462 = vmax.f32 %v399, 0.0
      %v463 = vmax.f32 %v402, 0.0
      %v464 = vmax.f32 %v404, 0.0
      %v465 = vmax.f32 %v407, 0.0
      %v466 = vmax.f32 %v409, 0.0
      %v467 = vmax.f32 %v412, 0.0
      %v468 = vmax.f32 %v414, 0.0
      %v469 = vmax.f32 %v417, 0.0
      %v470 = vmax.f32 %v419, 0.0
      %v471 = vmax.f32 %v422, 0.0
      %v472 = vmax.f32 %v424, 0.0
      %v473 = vmax.f32 %v427, 0.0
      %v474 = vmax.f32 %v429, 0.0
      %v475 = vmax.f32 %v432, 0.0
      %v476 = vmax.f32 %v434, 0.0
      %v477 = vmax.f32 %v437, 0.0
      %v478 = vmax.f32 %v439, 0.0
      %v479 = vmax.f32 %v442, 0.0
      %v480 = vmax.f32 %v444, 0.0
      %v481 = vmax.f32 %v447, 0.0
      %v482 = vmax.f32 %v449, 0.0
      %v483 = vpack.c.bf16 %v451, %v451
      %v484 = vpack.c.bf16 %v452, %v452
      %v485 = vpack.c.bf16 %v453, %v453
      %v486 = vpack.c.bf16 %v454, %v454
      %v487 = vpack.c.bf16 %v455, %v455
      %v488 = vpack.c.bf16 %v456, %v456
      %v489 = vpack.c.bf16 %v457, %v457
      %v490 = vpack.c.bf16 %v458, %v458
      %v491 = vpack.c.bf16 %v459, %v459
      %v492 = vpack.c.bf16 %v460, %v460
      %v493 = vpack.c.bf16 %v461, %v461
      %v494 = vpack.c.bf16 %v462, %v462
      %v495 = vpack.c.bf16 %v463, %v463
      %v496 = vpack.c.bf16 %v464, %v464
      %v497 = vpack.c.bf16 %v465, %v465
      %v498 = vpack.c.bf16 %v466, %v466
      %v499 = vpack.c.bf16 %v467, %v467
      %v500 = vpack.c.bf16 %v468, %v468
      %v501 = vpack.c.bf16 %v469, %v469
      %v502 = vpack.c.bf16 %v470, %v470
      %v503 = vpack.c.bf16 %v471, %v471
      %v504 = vpack.c.bf16 %v472, %v472
      %v505 = vpack.c.bf16 %v473, %v473
      %v506 = vpack.c.bf16 %v474, %v474
      %v507 = vpack.c.bf16 %v475, %v475
      %v508 = vpack.c.bf16 %v476, %v476
      %v509 = vpack.c.bf16 %v477, %v477
      %v510 = vpack.c.bf16 %v478, %v478
      %v511 = vpack.c.bf16 %v479, %v479
      %v512 = vpack.c.bf16 %v480, %v480
      %v513 = vpack.c.bf16 %v481, %v481
      %v514 = vpack.c.bf16 %v482, %v482
      %515 = vst [vmem:[%s172] sm:$0xf] %v483
      %516 = vst [vmem:[%s172 + $0x4] sm:$0xf] %v484
      %517 = vst [vmem:[%s172 + $0x8] sm:$0xf] %v485
      %518 = vst [vmem:[%s172 + $0xc] sm:$0xf] %v486
      %519 = vst [vmem:[%s172 + $0x10] sm:$0xf] %v487
      %520 = vst [vmem:[%s172 + $0x14] sm:$0xf] %v488
      %521 = vst [vmem:[%s172 + $0x18] sm:$0xf] %v489
      %522 = vst [vmem:[%s172 + $0x1c] sm:$0xf] %v490
      %523 = vst [vmem:[%s172 + $0x20] sm:$0xf] %v491
      %524 = vst [vmem:[%s172 + $0x24] sm:$0xf] %v492
      %525 = vst [vmem:[%s172 + $0x28] sm:$0xf] %v493
      %526 = vst [vmem:[%s172 + $0x2c] sm:$0xf] %v494
      %527 = vst [vmem:[%s172 + $0x30] sm:$0xf] %v495
      %528 = vst [vmem:[%s172 + $0x34] sm:$0xf] %v496
      %529 = vst [vmem:[%s172 + $0x38] sm:$0xf] %v497
      %530 = vst [vmem:[%s172 + $0x3c] sm:$0xf] %v498
      %531 = vst [vmem:[%s172 + $0x40] sm:$0xf] %v499
      %532 = vst [vmem:[%s172 + $0x44] sm:$0xf] %v500
      %533 = vst [vmem:[%s172 + $0x48] sm:$0xf] %v501
      %534 = vst [vmem:[%s172 + $0x4c] sm:$0xf] %v502
      %535 = vst [vmem:[%s172 + $0x50] sm:$0xf] %v503
      %536 = vst [vmem:[%s172 + $0x54] sm:$0xf] %v504
      %537 = vst [vmem:[%s172 + $0x58] sm:$0xf] %v505
      %538 = vst [vmem:[%s172 + $0x5c] sm:$0xf] %v506
      %539 = vst [vmem:[%s172 + $0x60] sm:$0xf] %v507
      %540 = vst [vmem:[%s172 + $0x64] sm:$0xf] %v508
      %541 = vst [vmem:[%s172 + $0x68] sm:$0xf] %v509
      %542 = vst [vmem:[%s172 + $0x6c] sm:$0xf] %v510
      %543 = vst [vmem:[%s172 + $0x70] sm:$0xf] %v511
      %544 = vst [vmem:[%s172 + $0x74] sm:$0xf] %v512
      %545 = vst [vmem:[%s172 + $0x78] sm:$0xf] %v513
      %546 = vst [vmem:[%s172 + $0x7c] sm:$0xf] %v514
      %s547 = smul.u32 32, %s14
      %p548 = scmp.lt.s32.totalorder %s547, 63
      %s549 = scalar_select %p548, %s547, 63
      %s550 = smul.addr %s549, 4
      %s551 = scalar_lea.vmem %s3, %s550
      // Predicated region
      $region33: #{roi_extractor_forward.3} parent=31 // pred_check
        %p552 = pneg %p100
      $region34: #{roi_extractor_forward.3} parent=31 // pred_check_branch
        %554 = sbr.rel (%p552) target = $region36
      $region35: #{roi_extractor_forward.3} parent=31 // pred_region
        %s555 = smul.u32 32, %s14
      $region36: #{roi_extractor_forward.3} parent=31 // pred_fallthru
        _
    $region32: #{roi_extractor_forward.3} parent=5 // pred_fallthru
      _
    %p556 = scmp.le.s32.totalorder 2, %s9
    // Predicated region
    $region37: #{roi_extractor_forward.3} parent=5 // pred_check
      %p557 = pneg %p556
    $region38: #{roi_extractor_forward.3} parent=5 // pred_check_branch
      %559 = sbr.rel (%p557) target = $region40
    $region39: #{roi_extractor_forward.3} parent=5 // pred_region
      %s560 = ssub.s32 %s9, 2
      // Predicated region
      $region41: #{roi_extractor_forward.3} parent=39 // pred_check
        %p561 = pneg %p106
      $region42: #{roi_extractor_forward.3} parent=39 // pred_check_branch
        %563 = sbr.rel (%p561) target = $region44
      $region43: #{roi_extractor_forward.3} parent=39 // pred_region
        %s564 = smul.u32 32, %s15
        %p565 = scmp.lt.s32.totalorder %s564, 63
        %s566 = scalar_select %p565, %s564, 63
        %s567 = smul.addr %s566, 4
        %s568 = scalar_lea.vmem %s3, %s567
      $region44: #{roi_extractor_forward.3} parent=39 // pred_fallthru
        _
    $region40: #{roi_extractor_forward.3} parent=5 // pred_fallthru
      _
  $region6: #{roi_extractor_forward.3} parent=0 // loop_footer
    %s13 = sadd.s32 1, %s9
  $region7: #{roi_extractor_forward.3} parent=0 // loop_footer_branch
    %8 = sbr.rel target = $region3
  $region8: #{roi_extractor_forward.3} parent=0 // loop_exit
    _

// kernel: roi_extractor_forward.4
$region0: #{roi_extractor_forward.4}
  #allocation0 [shape = 'u32[]', space=smem, size = 0x4, offset = 0x4, fixed_abs, tag = 'smem constant byte address 0x4 - core index']
  #allocation1 [shape = 'u32[72,128]{1,0:T(1,128)}', space=vmem, size = 0x9000, scoped, tag = 'internal scratch']
  %s0 = inlined_call_operand.vmem [shape: bf16[128,144], index: 0, kind: input, shape index: {}]
  %s1 = inlined_call_operand.vmem [shape: bf16[144,32], index: 1, kind: input, shape index: {}]
  %s2 = inlined_call_operand.vmem [shape: f32[1,32], index: 2, kind: input, shape index: {}]
  %s3 = inlined_call_operand.vmem [shape: bf16[32,64], index: 3, kind: input, shape index: {}]
  %s4 = inlined_call_operand.vmem [shape: f32[1,64], index: 4, kind: input, shape index: {}]
  %s5 = inlined_call_operand.vmem [shape: bf16[128,64], index: 5, kind: output, shape index: {}]
  %s6 = sld [smem:[#allocation0]]
  $region53: #{roi_extractor_forward.4} parent=0
    _
  %s8 = ssub.s32 1, %s6
  %s9 = scalar_select 0, %s8, %s6
  loop: start=0, step=1, limit=4
  $region2: #{roi_extractor_forward.4} parent=0 // loop_pre_header
    _
  $region3: #{roi_extractor_forward.4} parent=0 // loop_header
    %s11 = sphi 0, %s15
    %p12 = scmp.ge.s32.totalorder %s11, 4
    %s21 = sphi 0, %s23
    %s24 = sphi 0, %s21
    %s25 = sphi 0, %s24
    %s41 = sphi 0, %s25
    %s45 = sphi 0, %s45
    %s47 = sphi 0, %s45
    %s48 = sphi 0, %s47
    %s62 = sphi 0, %s48
    %s66 = sphi 0, %s66
    %s68 = sphi 0, %s66
    %s69 = sphi 0, %s68
    %s83 = sphi 0, %s69
    %s87 = sphi 0, %s87
    %s89 = sphi 0, %s87
    %s90 = sphi 0, %s89
    %s104 = sphi 0, %s90
    %s108 = sphi 0, %s108
    %s110 = sphi 0, %s108
    %s111 = sphi 0, %s110
    %s125 = sphi 0, %s111
    %s131 = sphi 0, %s133
    %s134 = sphi 0, %s131
    %s135 = sphi 0, %s134
    %s151 = sphi 0, %s135
  $region4: #{roi_extractor_forward.4} parent=0 // loop_header_branch
    %14 = sbr.rel (%p12) target = $region8
  $region5: #{roi_extractor_forward.4} parent=0 // loop_body
    %s16 = ssub.s32 %s11, 1
    %s17 = ssub.s32 %s11, 2
    %s18 = sadd.s32 %s11, 1
    %s19 = ssub.s32 %s11, %s18
    %p20 = scmp.eq.s32.totalorder %s19, 0
    %s22 = sadd.s32 %s21, 1
    %s23 = scalar_select %p20, %s21, %s22
    %p26 = pneg %p20
    %p27 = scmp.eq.s32.totalorder %s11, 1
    %p28 = por %p26, %p27
    %p29 = scmp.ne.s32.totalorder %s21, %s24
    %p30 = scmp.eq.s32.totalorder %s11, 0
    %p31 = por %p29, %p30
    %p32 = scmp.ne.s32.totalorder %s21, %s24
    %p33 = scmp.eq.s32.totalorder %s16, 1
    %p34 = por %p32, %p33
    %p35 = scmp.ne.s32.totalorder %s24, %s25
    %p36 = scmp.eq.s32.totalorder %s16, 0
    %p37 = por %p35, %p36
    %p38 = scmp.ne.s32.totalorder %s24, %s25
    %p39 = scmp.eq.s32.totalorder %s17, 1
    %p40 = por %p38, %p39
    %p42 = scmp.ne.s32.totalorder %s25, %s41
    %p43 = scmp.eq.s32.totalorder %s17, 0
    %p44 = por %p42, %p43
    %s46 = sadd.s32 %s45, 1
    %p49 = scmp.eq.s32.totalorder %s11, 1
    %p50 = scmp.ne.s32.totalorder %s45, %s47
    %p51 = scmp.eq.s32.totalorder %s11, 0
    %p52 = por %p50, %p51
    %p53 = scmp.ne.s32.totalorder %s45, %s47
    %p54 = scmp.eq.s32.totalorder %s16, 1
    %p55 = por %p53, %p54
    %p56 = scmp.ne.s32.totalorder %s47, %s48
    %p57 = scmp.eq.s32.totalorder %s16, 0
    %p58 = por %p56, %p57
    %p59 = scmp.ne.s32.totalorder %s47, %s48
    %p60 = scmp.eq.s32.totalorder %s17, 1
    %p61 = por %p59, %p60
    %p63 = scmp.ne.s32.totalorder %s48, %s62
    %p64 = scmp.eq.s32.totalorder %s17, 0
    %p65 = por %p63, %p64
    %s67 = sadd.s32 %s66, 1
    %p70 = scmp.eq.s32.totalorder %s11, 1
    %p71 = scmp.ne.s32.totalorder %s66, %s68
    %p72 = scmp.eq.s32.totalorder %s11, 0
    %p73 = por %p71, %p72
    %p74 = scmp.ne.s32.totalorder %s66, %s68
    %p75 = scmp.eq.s32.totalorder %s16, 1
    %p76 = por %p74, %p75
    %p77 = scmp.ne.s32.totalorder %s68, %s69
    %p78 = scmp.eq.s32.totalorder %s16, 0
    %p79 = por %p77, %p78
    %p80 = scmp.ne.s32.totalorder %s68, %s69
    %p81 = scmp.eq.s32.totalorder %s17, 1
    %p82 = por %p80, %p81
    %p84 = scmp.ne.s32.totalorder %s69, %s83
    %p85 = scmp.eq.s32.totalorder %s17, 0
    %p86 = por %p84, %p85
    %s88 = sadd.s32 %s87, 1
    %p91 = scmp.eq.s32.totalorder %s11, 1
    %p92 = scmp.ne.s32.totalorder %s87, %s89
    %p93 = scmp.eq.s32.totalorder %s11, 0
    %p94 = por %p92, %p93
    %p95 = scmp.ne.s32.totalorder %s87, %s89
    %p96 = scmp.eq.s32.totalorder %s16, 1
    %p97 = por %p95, %p96
    %p98 = scmp.ne.s32.totalorder %s89, %s90
    %p99 = scmp.eq.s32.totalorder %s16, 0
    %p100 = por %p98, %p99
    %p101 = scmp.ne.s32.totalorder %s89, %s90
    %p102 = scmp.eq.s32.totalorder %s17, 1
    %p103 = por %p101, %p102
    %p105 = scmp.ne.s32.totalorder %s90, %s104
    %p106 = scmp.eq.s32.totalorder %s17, 0
    %p107 = por %p105, %p106
    %s109 = sadd.s32 %s108, 1
    %p112 = scmp.eq.s32.totalorder %s11, 1
    %p113 = scmp.ne.s32.totalorder %s108, %s110
    %p114 = scmp.eq.s32.totalorder %s11, 0
    %p115 = por %p113, %p114
    %p116 = scmp.ne.s32.totalorder %s108, %s110
    %p117 = scmp.eq.s32.totalorder %s16, 1
    %p118 = por %p116, %p117
    %p119 = scmp.ne.s32.totalorder %s110, %s111
    %p120 = scmp.eq.s32.totalorder %s16, 0
    %p121 = por %p119, %p120
    %p122 = scmp.ne.s32.totalorder %s110, %s111
    %p123 = scmp.eq.s32.totalorder %s17, 1
    %p124 = por %p122, %p123
    %p126 = scmp.ne.s32.totalorder %s111, %s125
    %p127 = scmp.eq.s32.totalorder %s17, 0
    %p128 = por %p126, %p127
    %s129 = ssub.s32 %s11, %s18
    %p130 = scmp.eq.s32.totalorder %s129, 0
    %s132 = sadd.s32 %s131, 1
    %s133 = scalar_select %p130, %s131, %s132
    %p136 = pneg %p130
    %p137 = scmp.eq.s32.totalorder %s11, 1
    %p138 = por %p136, %p137
    %p139 = scmp.ne.s32.totalorder %s131, %s134
    %p140 = scmp.eq.s32.totalorder %s11, 0
    %p141 = por %p139, %p140
    %p142 = scmp.ne.s32.totalorder %s131, %s134
    %p143 = scmp.eq.s32.totalorder %s16, 1
    %p144 = por %p142, %p143
    %p145 = scmp.ne.s32.totalorder %s134, %s135
    %p146 = scmp.eq.s32.totalorder %s16, 0
    %p147 = por %p145, %p146
    %p148 = scmp.ne.s32.totalorder %s134, %s135
    %p149 = scmp.eq.s32.totalorder %s17, 1
    %p150 = por %p148, %p149
    %p152 = scmp.ne.s32.totalorder %s135, %s151
    %p153 = scmp.eq.s32.totalorder %s17, 0
    %p154 = por %p152, %p153
    %p155 = scmp.le.s32.totalorder 1, %s11
    %p156 = scmp.lt.s32.totalorder %s11, 3
    %p157 = pnand %p155, %p156
    %p158 = pneg %p157
    // Predicated region
    $region9: #{roi_extractor_forward.4} parent=5 // pred_check
      _
    $region10: #{roi_extractor_forward.4} parent=5 // pred_check_branch
      %160 = sbr.rel (%p157) target = $region12
    $region11: #{roi_extractor_forward.4} parent=5 // pred_region
      %s161 = ssub.s32 %s11, 1
      // Predicated region
      $region13: #{roi_extractor_forward.4} parent=11 // pred_check
        %p162 = pneg %p58
      $region14: #{roi_extractor_forward.4} parent=11 // pred_check_branch
        %164 = sbr.rel (%p162) target = $region16
      $region15: #{roi_extractor_forward.4} parent=11 // pred_region
        _
      $region16: #{roi_extractor_forward.4} parent=11 // pred_fallthru
        _
      // Predicated region
      $region17: #{roi_extractor_forward.4} parent=11 // pred_check
        %p165 = pneg %p79
      $region18: #{roi_extractor_forward.4} parent=11 // pred_check_branch
        %167 = sbr.rel (%p165) target = $region20
      $region19: #{roi_extractor_forward.4} parent=11 // pred_region
        _
      $region20: #{roi_extractor_forward.4} parent=11 // pred_fallthru
        _
      // Predicated region
      $region21: #{roi_extractor_forward.4} parent=11 // pred_check
        %p168 = pneg %p100
      $region22: #{roi_extractor_forward.4} parent=11 // pred_check_branch
        %170 = sbr.rel (%p168) target = $region24
      $region23: #{roi_extractor_forward.4} parent=11 // pred_region
        _
      $region24: #{roi_extractor_forward.4} parent=11 // pred_fallthru
        _
      // Predicated region
      $region25: #{roi_extractor_forward.4} parent=11 // pred_check
        %p171 = pneg %p121
      $region26: #{roi_extractor_forward.4} parent=11 // pred_check_branch
        %173 = sbr.rel (%p171) target = $region28
      $region27: #{roi_extractor_forward.4} parent=11 // pred_region
        _
      $region28: #{roi_extractor_forward.4} parent=11 // pred_fallthru
        _
    $region12: #{roi_extractor_forward.4} parent=5 // pred_fallthru
      _
    %p174 = scmp.lt.s32.totalorder %s11, 2
    // Predicated region
    $region29: #{roi_extractor_forward.4} parent=5 // pred_check
      %p175 = pneg %p174
    $region30: #{roi_extractor_forward.4} parent=5 // pred_check_branch
      %177 = sbr.rel (%p175) target = $region32
    $region31: #{roi_extractor_forward.4} parent=5 // pred_region
      // Predicated region
      $region33: #{roi_extractor_forward.4} parent=31 // pred_check
        %p178 = pneg %p31
      $region34: #{roi_extractor_forward.4} parent=31 // pred_check_branch
        %180 = sbr.rel (%p178) target = $region36
      $region35: #{roi_extractor_forward.4} parent=31 // pred_region
        %s181 = smul.u32 8, %s11
        %p182 = scmp.lt.s32.totalorder %s181, 15
        %s183 = scalar_select %p182, %s181, 15
        %s184 = smul.addr %s183, 2
        %s185 = smul.addr %s184, 4
        %s186 = scalar_lea.vmem %s0, %s185
        %s187 = smul.u32 8, %s11
      $region36: #{roi_extractor_forward.4} parent=31 // pred_fallthru
        _
    $region32: #{roi_extractor_forward.4} parent=5 // pred_fallthru
      _
    %p188 = scmp.le.s32.totalorder 1, %s11
    %p189 = scmp.lt.s32.totalorder %s11, 3
    %p190 = pnand %p188, %p189
    %p191 = pneg %p190
    // Predicated region
    $region37: #{roi_extractor_forward.4} parent=5 // pred_check
      _
    $region38: #{roi_extractor_forward.4} parent=5 // pred_check_branch
      %193 = sbr.rel (%p190) target = $region40
    $region39: #{roi_extractor_forward.4} parent=5 // pred_region
      %s194 = ssub.s32 %s11, 1
      %s195 = smul.u32 8, %s16
      %p196 = scmp.lt.s32.totalorder %s195, 15
      %s197 = scalar_select %p196, %s195, 15
      %s198 = smul.addr %s197, 2
      %s199 = smul.addr %s198, 4
      %s200 = scalar_lea.vmem %s0, %s199
      %p201 = pneg %p37
      %p202 = pneg %p34
      %p203 = pneg %p58
      %p204 = pneg %p55
      %p205 = pneg %p79
      %p206 = pneg %p76
      %p207 = pneg %p100
      %p208 = pneg %p97
      %p209 = pneg %p121
      %p210 = pneg %p118
      %p211 = pneg %p147
      %p212 = pneg %p144
      %s213 = smul.u32 8, %s16
      %p214 = scmp.lt.s32.totalorder %s213, 15
      %s215 = scalar_select %p214, %s213, 15
      %s216 = smul.addr %s215, 4
      %s217 = scalar_lea.vmem %s5, %s216
      %s218 = smul.u32 8, %s16
      %p219 = scmp.lt.s32.totalorder %s218, 15
      %s220 = scalar_select %p219, %s218, 15
      %s221 = smul.addr %s220, 2
      %s222 = smul.addr %s221, 4
      %s223 = scalar_lea.vmem %s0, %s222
      %s224 = smul.u32 8, %s16
      %s225 = smul.u32 8, %s16
      %p226 = scmp.lt.s32.totalorder %s225, 15
      %s227 = scalar_select %p226, %s225, 15
      %s228 = smul.addr %s227, 4
      %s229 = scalar_lea.vmem %s5, %s228
      %s230 = smul.u32 8, %s16
      %v232 = vld [vmem:[%s223] sm:$0xff]
      %v233 = vld [vmem:[%s223 + $0x8] sm:$0xff]
      %v234 = vld [vmem:[%s223 + $0x10] sm:$0xff]
      %v235 = vld [vmem:[%s223 + $0x18] sm:$0xff]
      %v236 = vld [vmem:[%s223 + $0x20] sm:$0xff]
      %v237 = vld [vmem:[%s223 + $0x28] sm:$0xff]
      %v238 = vld [vmem:[%s223 + $0x30] sm:$0xff]
      %v239 = vld [vmem:[%s223 + $0x38] sm:$0xff]
      %v240 = vld [vmem:[%s1] sm:$0xf]
      %v241 = vld [vmem:[%s1 + $0x4] sm:$0xf]
      %v242 = vld [vmem:[%s1 + $0x8] sm:$0xf]
      %v243 = vld [vmem:[%s1 + $0xc] sm:$0xf]
      %v244 = vld [vmem:[%s1 + $0x10] sm:$0xf]
      %v245 = vld [vmem:[%s1 + $0x14] sm:$0xf]
      %v246 = vld [vmem:[%s1 + $0x18] sm:$0xf]
      %v247 = vld [vmem:[%s1 + $0x1c] sm:$0xf]
      %v248 = vld [vmem:[%s1 + $0x20] sm:$0xf]
      %v249 = vld [vmem:[%s1 + $0x24] sm:$0xf]
      %v250 = vld [vmem:[%s1 + $0x28] sm:$0xf]
      %v251 = vld [vmem:[%s1 + $0x2c] sm:$0xf]
      %v252 = vld [vmem:[%s1 + $0x30] sm:$0xf]
      %v253 = vld [vmem:[%s1 + $0x34] sm:$0xf]
      %v254 = vld [vmem:[%s1 + $0x38] sm:$0xf]
      %v255 = vld [vmem:[%s1 + $0x3c] sm:$0xf]
      %v256 = vld [vmem:[%s1 + $0x40] sm:$0xf]
      %v257 = vld [vmem:[%s1 + $0x44] sm:$0xf]
      %v258 = vld [vmem:[%s2] sm:$0x1]
      %v260 = vperm.slane %v258, 0
      %v270 = vunpack.c.l.b16 %v232
      %v271 = vunpack.c.h.b16 %v232
      %v272 = vunpack.c.l.b16 %v233
      %v273 = vunpack.c.h.b16 %v233
      %v274 = vunpack.c.l.b16 %v234
      %v275 = vunpack.c.h.b16 %v234
      %v276 = vunpack.c.l.b16 %v235
      %v277 = vunpack.c.h.b16 %v235
      %v278 = vunpack.c.l.b16 %v236
      %v279 = vunpack.c.h.b16 %v236
      %v280 = vunpack.c.l.b16 %v237
      %v281 = vunpack.c.h.b16 %v237
      %v282 = vunpack.c.l.b16 %v238
      %v283 = vunpack.c.h.b16 %v238
      %v284 = vunpack.c.l.b16 %v239
      %v285 = vunpack.c.h.b16 %v239
      %v286 = vpack.c.b16 %v272, %v270
      %v287 = vpack.c.b16 %v273, %v271
      %v288 = vpack.c.b16 %v276, %v274
      %v289 = vpack.c.b16 %v277, %v275
      %v290 = vpack.c.b16 %v280, %v278
      %v291 = vpack.c.b16 %v281, %v279
      %v292 = vpack.c.b16 %v284, %v282
      %v293 = vpack.c.b16 %v285, %v283
      %v316 = vunpack.c.l.b16 %v240
      %v317 = vunpack.c.l.b16 %v241
      %v318 = vunpack.c.l.b16 %v242
      %v319 = vunpack.c.l.b16 %v243
      %v320 = vunpack.c.l.b16 %v244
      %v321 = vunpack.c.l.b16 %v245
      %v322 = vunpack.c.l.b16 %v246
      %v323 = vunpack.c.l.b16 %v247
      %v324 = vunpack.c.l.b16 %v248
      %v325 = vunpack.c.l.b16 %v249
      %v326 = vunpack.c.l.b16 %v250
      %v327 = vunpack.c.l.b16 %v251
      %v328 = vunpack.c.l.b16 %v252
      %v329 = vunpack.c.l.b16 %v253
      %v330 = vunpack.c.l.b16 %v254
      %v331 = vunpack.c.l.b16 %v255
      %v332 = vunpack.c.l.b16 %v256
      %v333 = vunpack.c.l.b16 %v257
      %v334 = vpack.c.b16 %v317, %v316
      %v335 = vpack.c.b16 %v319, %v318
      %v336 = vpack.c.b16 %v321, %v320
      %v337 = vpack.c.b16 %v323, %v322
      %v338 = vpack.c.b16 %v325, %v324
      %v339 = vpack.c.b16 %v327, %v326
      %v340 = vpack.c.b16 %v329, %v328
      %v341 = vpack.c.b16 %v331, %v330
      %v342 = vpack.c.b16 %v333, %v332
      %vm352 = vcmask 130048
      %v354 = vsel %vm352, %v287, 0
      %v357 = vsel %vm352, %v289, 0
      %v360 = vsel %vm352, %v291, 0
      %v363 = vsel %vm352, %v293, 0
      %365 = vmatpush.bf16.msra.mxu0 %v341
      %366 = vmatpush.bf16.msra.mxu0 %v340
      %367 = vmatpush.bf16.msra.mxu0 %v339
      %368 = vmatpush.bf16.msra.mxu0 %v338
      %369 = vmatpush.bf16.msra.mxu0 %v337
      %370 = vmatpush.bf16.msra.mxu0 %v336
      %371 = vmatpush.bf16.msra.mxu0 %v335
      %372 = vmatpush.bf16.msra.mxu0 %v334
      %373 = vmatmul.bf16.gmra.mxu0 %v286
      %v374 = vpop.f32.mrf.mxu0
      %v375 = vadd.f32 %v260, %v374
      %v376 = vpop.f32.mrf.mxu0
      %v377 = vadd.f32 %v260, %v376
      %378 = vmatmul.bf16.gmra.mxu0 %v288
      %v379 = vpop.f32.mrf.mxu0
      %v380 = vadd.f32 %v260, %v379
      %v381 = vpop.f32.mrf.mxu0
      %v382 = vadd.f32 %v260, %v381
      %383 = vmatmul.bf16.gmra.mxu0 %v290
      %v384 = vpop.f32.mrf.mxu0
      %v385 = vadd.f32 %v260, %v384
      %v386 = vpop.f32.mrf.mxu0
      %v387 = vadd.f32 %v260, %v386
      %388 = vmatmul.bf16.gmra.mxu0 %v292
      %v389 = vpop.f32.mrf.mxu0
      %v390 = vadd.f32 %v260, %v389
      %v391 = vpop.f32.mrf.mxu0
      %v392 = vadd.f32 %v260, %v391
      %393 = vdwg.mxu0
      %394 = vmatpush.bf16.msra.mxu0 0
      %395 = vmatpush.bf16.msra.mxu0 0
      %396 = vmatpush.bf16.msra.mxu0 0
      %397 = vmatpush.bf16.msra.mxu0 0
      %398 = vmatpush.bf16.msra.mxu0 0
      %399 = vmatpush.bf16.msra.mxu0 0
      %400 = vmatpush.bf16.msra.mxu0 0
      %401 = vmatpush.bf16.msra.mxu0 %v342
      %402 = vmatmul.bf16.gmra.mxu0 %v354
      %v403 = vpop.f32.mrf.mxu0
      %v404 = vadd.f32 %v375, %v403
      %v405 = vpop.f32.mrf.mxu0
      %v406 = vadd.f32 %v377, %v405
      %407 = vmatmul.bf16.gmra.mxu0 %v357
      %v408 = vpop.f32.mrf.mxu0
      %v409 = vadd.f32 %v380, %v408
      %v410 = vpop.f32.mrf.mxu0
      %v411 = vadd.f32 %v382, %v410
      %412 = vmatmul.bf16.gmra.mxu0 %v360
      %v413 = vpop.f32.mrf.mxu0
      %v414 = vadd.f32 %v385, %v413
      %v415 = vpop.f32.mrf.mxu0
      %v416 = vadd.f32 %v387, %v415
      %417 = vmatmul.bf16.gmra.mxu0 %v363
      %v418 = vpop.f32.mrf.mxu0
      %v419 = vadd.f32 %v390, %v418
      %v420 = vpop.f32.mrf.mxu0
      %v421 = vadd.f32 %v392, %v420
      %422 = vdwg.mxu0
      %v423 = vmax.f32 %v404, 0.0
      %v424 = vmax.f32 %v406, 0.0
      %v425 = vmax.f32 %v409, 0.0
      %v426 = vmax.f32 %v411, 0.0
      %v427 = vmax.f32 %v414, 0.0
      %v428 = vmax.f32 %v416, 0.0
      %v429 = vmax.f32 %v419, 0.0
      %v430 = vmax.f32 %v421, 0.0
      %v431 = vpack.c.bf16 %v424, %v423
      %v432 = vpack.c.bf16 %v426, %v425
      %v433 = vpack.c.bf16 %v428, %v427
      %v434 = vpack.c.bf16 %v430, %v429
      %v435 = vld [vmem:[%s3] sm:$0xf]
      %v436 = vld [vmem:[%s3 + $0x4] sm:$0xf]
      %v437 = vld [vmem:[%s3 + $0x8] sm:$0xf]
      %v438 = vld [vmem:[%s3 + $0xc] sm:$0xf]
      %v439 = vld [vmem:[%s4] sm:$0x1]
      %v441 = vperm.slane %v439, 0
      %v447 = vunpack.c.l.b16 %v435
      %v448 = vunpack.c.l.b16 %v436
      %v449 = vunpack.c.l.b16 %v437
      %v450 = vunpack.c.l.b16 %v438
      %v451 = vpack.c.b16 %v448, %v447
      %v452 = vpack.c.b16 %v450, %v449
      %vm455 = vcmask 261120
      %v457 = vsel %vm455, %v431, 0
      %v460 = vsel %vm455, %v432, 0
      %v463 = vsel %vm455, %v433, 0
      %v466 = vsel %vm455, %v434, 0
      %468 = vmatpush.bf16.msra.mxu0 0
      %469 = vmatpush.bf16.msra.mxu0 0
      %470 = vmatpush.bf16.msra.mxu0 0
      %471 = vmatpush.bf16.msra.mxu0 0
      %472 = vmatpush.bf16.msra.mxu0 0
      %473 = vmatpush.bf16.msra.mxu0 0
      %474 = vmatpush.bf16.msra.mxu0 %v452
      %475 = vmatpush.bf16.msra.mxu0 %v451
      %476 = vmatmul.bf16.gmra.mxu0 %v457
      %v477 = vpop.f32.mrf.mxu0
      %v478 = vadd.f32 %v441, %v477
      %v479 = vpop.f32.mrf.mxu0
      %v480 = vadd.f32 %v441, %v479
      %481 = vmatmul.bf16.gmra.mxu0 %v460
      %v482 = vpop.f32.mrf.mxu0
      %v483 = vadd.f32 %v441, %v482
      %v484 = vpop.f32.mrf.mxu0
      %v485 = vadd.f32 %v441, %v484
      %486 = vmatmul.bf16.gmra.mxu0 %v463
      %v487 = vpop.f32.mrf.mxu0
      %v488 = vadd.f32 %v441, %v487
      %v489 = vpop.f32.mrf.mxu0
      %v490 = vadd.f32 %v441, %v489
      %491 = vmatmul.bf16.gmra.mxu0 %v466
      %v492 = vpop.f32.mrf.mxu0
      %v493 = vadd.f32 %v441, %v492
      %v494 = vpop.f32.mrf.mxu0
      %v495 = vadd.f32 %v441, %v494
      %496 = vdwg.mxu0
      %v497 = vpack.c.bf16 %v478, %v478
      %v498 = vpack.c.bf16 %v480, %v480
      %v499 = vpack.c.bf16 %v483, %v483
      %v500 = vpack.c.bf16 %v485, %v485
      %v501 = vpack.c.bf16 %v488, %v488
      %v502 = vpack.c.bf16 %v490, %v490
      %v503 = vpack.c.bf16 %v493, %v493
      %v504 = vpack.c.bf16 %v495, %v495
      %vm505 = vcmask 519168
      %506 = vst.msk [vmem:[%s229] sm:$0xf] %vm505, %v497
      %507 = vst.msk [vmem:[%s229 + $0x4] sm:$0xf] %vm505, %v498
      %508 = vst.msk [vmem:[%s229 + $0x8] sm:$0xf] %vm505, %v499
      %509 = vst.msk [vmem:[%s229 + $0xc] sm:$0xf] %vm505, %v500
      %510 = vst.msk [vmem:[%s229 + $0x10] sm:$0xf] %vm505, %v501
      %511 = vst.msk [vmem:[%s229 + $0x14] sm:$0xf] %vm505, %v502
      %512 = vst.msk [vmem:[%s229 + $0x18] sm:$0xf] %vm505, %v503
      %513 = vst.msk [vmem:[%s229 + $0x1c] sm:$0xf] %vm505, %v504
      %s514 = smul.u32 8, %s16
      %p515 = scmp.lt.s32.totalorder %s514, 15
      %s516 = scalar_select %p515, %s514, 15
      %s517 = smul.addr %s516, 4
      %s518 = scalar_lea.vmem %s5, %s517
      // Predicated region
      $region41: #{roi_extractor_forward.4} parent=39 // pred_check
        %p519 = pneg %p144
      $region42: #{roi_extractor_forward.4} parent=39 // pred_check_branch
        %521 = sbr.rel (%p519) target = $region44
      $region43: #{roi_extractor_forward.4} parent=39 // pred_region
        %s522 = smul.u32 8, %s16
      $region44: #{roi_extractor_forward.4} parent=39 // pred_fallthru
        _
    $region40: #{roi_extractor_forward.4} parent=5 // pred_fallthru
      _
    %p523 = scmp.le.s32.totalorder 2, %s11
    // Predicated region
    $region45: #{roi_extractor_forward.4} parent=5 // pred_check
      %p524 = pneg %p523
    $region46: #{roi_extractor_forward.4} parent=5 // pred_check_branch
      %526 = sbr.rel (%p524) target = $region48
    $region47: #{roi_extractor_forward.4} parent=5 // pred_region
      %s527 = ssub.s32 %s11, 2
      // Predicated region
      $region49: #{roi_extractor_forward.4} parent=47 // pred_check
        %p528 = pneg %p150
      $region50: #{roi_extractor_forward.4} parent=47 // pred_check_branch
        %530 = sbr.rel (%p528) target = $region52
      $region51: #{roi_extractor_forward.4} parent=47 // pred_region
        %s531 = smul.u32 8, %s17
        %p532 = scmp.lt.s32.totalorder %s531, 15
        %s533 = scalar_select %p532, %s531, 15
        %s534 = smul.addr %s533, 4
        %s535 = scalar_lea.vmem %s5, %s534
      $region52: #{roi_extractor_forward.4} parent=47 // pred_fallthru
        _
    $region48: #{roi_extractor_forward.4} parent=5 // pred_fallthru
      _
  $region6: #{roi_extractor_forward.4} parent=0 // loop_footer
    %s15 = sadd.s32 1, %s11
  $region7: #{roi_extractor_forward.4} parent=0 // loop_footer_branch
    %10 = sbr.rel target = $region3
  $region8: #{roi_extractor_forward.4} parent=0 // loop_exit
    _

// kernel: roi_extractor_forward.5
$region0: #{roi_extractor_forward.5}
  #allocation0 [shape = 'u32[]', space=smem, size = 0x4, offset = 0x4, fixed_abs, tag = 'smem constant byte address 0x4 - core index']
  #allocation1 [shape = 'u32[72,128]{1,0:T(1,128)}', space=vmem, size = 0x9000, scoped, tag = 'internal scratch']
  #allocation2 [shape = 'f32[392,64]{1,0:T(8,128)}', space=vmem, size = 0x31000, scoped, tag = 'scratch operand']
  %s0 = inlined_call_operand.vmem [shape: bf16[128,64], index: 0, kind: input, shape index: {}]
  %s1 = inlined_call_operand.vmem [shape: bf16[392,64], index: 1, kind: input, shape index: {}]
  %s2 = inlined_call_operand.vmem [shape: bf16[3136,128], index: 2, kind: input, shape index: {}]
  %s3 = inlined_call_operand.vmem [shape: f32[1,128], index: 3, kind: input, shape index: {}]
  %s4 = inlined_call_operand.vmem [shape: bf16[128,128], index: 4, kind: input, shape index: {}]
  %s5 = inlined_call_operand.vmem [shape: f32[1,128], index: 5, kind: input, shape index: {}]
  %s6 = inlined_call_operand.vmem [shape: bf16[128,128], index: 6, kind: input, shape index: {}]
  %s7 = inlined_call_operand.vmem [shape: f32[1,128], index: 7, kind: input, shape index: {}]
  %s8 = inlined_call_operand.vmem [shape: f32[16,128], index: 8, kind: output, shape index: {}]
  %s9 = sld [smem:[#allocation0]]
  $region65: #{roi_extractor_forward.5} parent=0
    _
  %s11 = ssub.s32 1, %s9
  %s12 = scalar_select 0, %s11, %s9
  loop: start=0, step=1, limit=4
  $region2: #{roi_extractor_forward.5} parent=0 // loop_pre_header
    _
  $region3: #{roi_extractor_forward.5} parent=0 // loop_header
    %s14 = sphi 0, %s18
    %p15 = scmp.ge.s32.totalorder %s14, 4
    %s24 = sphi 0, %s26
    %s27 = sphi 0, %s24
    %s28 = sphi 0, %s27
    %s44 = sphi 0, %s28
    %s48 = sphi 0, %s48
    %s50 = sphi 0, %s48
    %s51 = sphi 0, %s50
    %s65 = sphi 0, %s51
    %s69 = sphi 0, %s69
    %s71 = sphi 0, %s69
    %s72 = sphi 0, %s71
    %s86 = sphi 0, %s72
    %s90 = sphi 0, %s90
    %s92 = sphi 0, %s90
    %s93 = sphi 0, %s92
    %s107 = sphi 0, %s93
    %s111 = sphi 0, %s111
    %s113 = sphi 0, %s111
    %s114 = sphi 0, %s113
    %s128 = sphi 0, %s114
    %s132 = sphi 0, %s132
    %s134 = sphi 0, %s132
    %s135 = sphi 0, %s134
    %s149 = sphi 0, %s135
    %s153 = sphi 0, %s153
    %s155 = sphi 0, %s153
    %s156 = sphi 0, %s155
    %s170 = sphi 0, %s156
    %s174 = sphi 0, %s174
    %s176 = sphi 0, %s174
    %s177 = sphi 0, %s176
    %s191 = sphi 0, %s177
    %s197 = sphi 0, %s199
    %s200 = sphi 0, %s197
    %s201 = sphi 0, %s200
    %s217 = sphi 0, %s201
  $region4: #{roi_extractor_forward.5} parent=0 // loop_header_branch
    %17 = sbr.rel (%p15) target = $region8
  $region5: #{roi_extractor_forward.5} parent=0 // loop_body
    %s19 = ssub.s32 %s14, 1
    %s20 = ssub.s32 %s14, 2
    %s21 = sadd.s32 %s14, 1
    %s22 = ssub.s32 %s14, %s21
    %p23 = scmp.eq.s32.totalorder %s22, 0
    %s25 = sadd.s32 %s24, 1
    %s26 = scalar_select %p23, %s24, %s25
    %p29 = pneg %p23
    %p30 = scmp.eq.s32.totalorder %s14, 1
    %p31 = por %p29, %p30
    %p32 = scmp.ne.s32.totalorder %s24, %s27
    %p33 = scmp.eq.s32.totalorder %s14, 0
    %p34 = por %p32, %p33
    %p35 = scmp.ne.s32.totalorder %s24, %s27
    %p36 = scmp.eq.s32.totalorder %s19, 1
    %p37 = por %p35, %p36
    %p38 = scmp.ne.s32.totalorder %s27, %s28
    %p39 = scmp.eq.s32.totalorder %s19, 0
    %p40 = por %p38, %p39
    %p41 = scmp.ne.s32.totalorder %s27, %s28
    %p42 = scmp.eq.s32.totalorder %s20, 1
    %p43 = por %p41, %p42
    %p45 = scmp.ne.s32.totalorder %s28, %s44
    %p46 = scmp.eq.s32.totalorder %s20, 0
    %p47 = por %p45, %p46
    %s49 = sadd.s32 %s48, 1
    %p52 = scmp.eq.s32.totalorder %s14, 1
    %p53 = scmp.ne.s32.totalorder %s48, %s50
    %p54 = scmp.eq.s32.totalorder %s14, 0
    %p55 = por %p53, %p54
    %p56 = scmp.ne.s32.totalorder %s48, %s50
    %p57 = scmp.eq.s32.totalorder %s19, 1
    %p58 = por %p56, %p57
    %p59 = scmp.ne.s32.totalorder %s50, %s51
    %p60 = scmp.eq.s32.totalorder %s19, 0
    %p61 = por %p59, %p60
    %p62 = scmp.ne.s32.totalorder %s50, %s51
    %p63 = scmp.eq.s32.totalorder %s20, 1
    %p64 = por %p62, %p63
    %p66 = scmp.ne.s32.totalorder %s51, %s65
    %p67 = scmp.eq.s32.totalorder %s20, 0
    %p68 = por %p66, %p67
    %s70 = sadd.s32 %s69, 1
    %p73 = scmp.eq.s32.totalorder %s14, 1
    %p74 = scmp.ne.s32.totalorder %s69, %s71
    %p75 = scmp.eq.s32.totalorder %s14, 0
    %p76 = por %p74, %p75
    %p77 = scmp.ne.s32.totalorder %s69, %s71
    %p78 = scmp.eq.s32.totalorder %s19, 1
    %p79 = por %p77, %p78
    %p80 = scmp.ne.s32.totalorder %s71, %s72
    %p81 = scmp.eq.s32.totalorder %s19, 0
    %p82 = por %p80, %p81
    %p83 = scmp.ne.s32.totalorder %s71, %s72
    %p84 = scmp.eq.s32.totalorder %s20, 1
    %p85 = por %p83, %p84
    %p87 = scmp.ne.s32.totalorder %s72, %s86
    %p88 = scmp.eq.s32.totalorder %s20, 0
    %p89 = por %p87, %p88
    %s91 = sadd.s32 %s90, 1
    %p94 = scmp.eq.s32.totalorder %s14, 1
    %p95 = scmp.ne.s32.totalorder %s90, %s92
    %p96 = scmp.eq.s32.totalorder %s14, 0
    %p97 = por %p95, %p96
    %p98 = scmp.ne.s32.totalorder %s90, %s92
    %p99 = scmp.eq.s32.totalorder %s19, 1
    %p100 = por %p98, %p99
    %p101 = scmp.ne.s32.totalorder %s92, %s93
    %p102 = scmp.eq.s32.totalorder %s19, 0
    %p103 = por %p101, %p102
    %p104 = scmp.ne.s32.totalorder %s92, %s93
    %p105 = scmp.eq.s32.totalorder %s20, 1
    %p106 = por %p104, %p105
    %p108 = scmp.ne.s32.totalorder %s93, %s107
    %p109 = scmp.eq.s32.totalorder %s20, 0
    %p110 = por %p108, %p109
    %s112 = sadd.s32 %s111, 1
    %p115 = scmp.eq.s32.totalorder %s14, 1
    %p116 = scmp.ne.s32.totalorder %s111, %s113
    %p117 = scmp.eq.s32.totalorder %s14, 0
    %p118 = por %p116, %p117
    %p119 = scmp.ne.s32.totalorder %s111, %s113
    %p120 = scmp.eq.s32.totalorder %s19, 1
    %p121 = por %p119, %p120
    %p122 = scmp.ne.s32.totalorder %s113, %s114
    %p123 = scmp.eq.s32.totalorder %s19, 0
    %p124 = por %p122, %p123
    %p125 = scmp.ne.s32.totalorder %s113, %s114
    %p126 = scmp.eq.s32.totalorder %s20, 1
    %p127 = por %p125, %p126
    %p129 = scmp.ne.s32.totalorder %s114, %s128
    %p130 = scmp.eq.s32.totalorder %s20, 0
    %p131 = por %p129, %p130
    %s133 = sadd.s32 %s132, 1
    %p136 = scmp.eq.s32.totalorder %s14, 1
    %p137 = scmp.ne.s32.totalorder %s132, %s134
    %p138 = scmp.eq.s32.totalorder %s14, 0
    %p139 = por %p137, %p138
    %p140 = scmp.ne.s32.totalorder %s132, %s134
    %p141 = scmp.eq.s32.totalorder %s19, 1
    %p142 = por %p140, %p141
    %p143 = scmp.ne.s32.totalorder %s134, %s135
    %p144 = scmp.eq.s32.totalorder %s19, 0
    %p145 = por %p143, %p144
    %p146 = scmp.ne.s32.totalorder %s134, %s135
    %p147 = scmp.eq.s32.totalorder %s20, 1
    %p148 = por %p146, %p147
    %p150 = scmp.ne.s32.totalorder %s135, %s149
    %p151 = scmp.eq.s32.totalorder %s20, 0
    %p152 = por %p150, %p151
    %s154 = sadd.s32 %s153, 1
    %p157 = scmp.eq.s32.totalorder %s14, 1
    %p158 = scmp.ne.s32.totalorder %s153, %s155
    %p159 = scmp.eq.s32.totalorder %s14, 0
    %p160 = por %p158, %p159
    %p161 = scmp.ne.s32.totalorder %s153, %s155
    %p162 = scmp.eq.s32.totalorder %s19, 1
    %p163 = por %p161, %p162
    %p164 = scmp.ne.s32.totalorder %s155, %s156
    %p165 = scmp.eq.s32.totalorder %s19, 0
    %p166 = por %p164, %p165
    %p167 = scmp.ne.s32.totalorder %s155, %s156
    %p168 = scmp.eq.s32.totalorder %s20, 1
    %p169 = por %p167, %p168
    %p171 = scmp.ne.s32.totalorder %s156, %s170
    %p172 = scmp.eq.s32.totalorder %s20, 0
    %p173 = por %p171, %p172
    %s175 = sadd.s32 %s174, 1
    %p178 = scmp.eq.s32.totalorder %s14, 1
    %p179 = scmp.ne.s32.totalorder %s174, %s176
    %p180 = scmp.eq.s32.totalorder %s14, 0
    %p181 = por %p179, %p180
    %p182 = scmp.ne.s32.totalorder %s174, %s176
    %p183 = scmp.eq.s32.totalorder %s19, 1
    %p184 = por %p182, %p183
    %p185 = scmp.ne.s32.totalorder %s176, %s177
    %p186 = scmp.eq.s32.totalorder %s19, 0
    %p187 = por %p185, %p186
    %p188 = scmp.ne.s32.totalorder %s176, %s177
    %p189 = scmp.eq.s32.totalorder %s20, 1
    %p190 = por %p188, %p189
    %p192 = scmp.ne.s32.totalorder %s177, %s191
    %p193 = scmp.eq.s32.totalorder %s20, 0
    %p194 = por %p192, %p193
    %s195 = ssub.s32 %s14, %s21
    %p196 = scmp.eq.s32.totalorder %s195, 0
    %s198 = sadd.s32 %s197, 1
    %s199 = scalar_select %p196, %s197, %s198
    %p202 = pneg %p196
    %p203 = scmp.eq.s32.totalorder %s14, 1
    %p204 = por %p202, %p203
    %p205 = scmp.ne.s32.totalorder %s197, %s200
    %p206 = scmp.eq.s32.totalorder %s14, 0
    %p207 = por %p205, %p206
    %p208 = scmp.ne.s32.totalorder %s197, %s200
    %p209 = scmp.eq.s32.totalorder %s19, 1
    %p210 = por %p208, %p209
    %p211 = scmp.ne.s32.totalorder %s200, %s201
    %p212 = scmp.eq.s32.totalorder %s19, 0
    %p213 = por %p211, %p212
    %p214 = scmp.ne.s32.totalorder %s200, %s201
    %p215 = scmp.eq.s32.totalorder %s20, 1
    %p216 = por %p214, %p215
    %p218 = scmp.ne.s32.totalorder %s201, %s217
    %p219 = scmp.eq.s32.totalorder %s20, 0
    %p220 = por %p218, %p219
    %p221 = scmp.le.s32.totalorder 1, %s14
    %p222 = scmp.lt.s32.totalorder %s14, 3
    %p223 = pnand %p221, %p222
    %p224 = pneg %p223
    // Predicated region
    $region9: #{roi_extractor_forward.5} parent=5 // pred_check
      _
    $region10: #{roi_extractor_forward.5} parent=5 // pred_check_branch
      %226 = sbr.rel (%p223) target = $region12
    $region11: #{roi_extractor_forward.5} parent=5 // pred_region
      %s227 = ssub.s32 %s14, 1
      // Predicated region
      $region13: #{roi_extractor_forward.5} parent=11 // pred_check
        %p228 = pneg %p61
      $region14: #{roi_extractor_forward.5} parent=11 // pred_check_branch
        %230 = sbr.rel (%p228) target = $region16
      $region15: #{roi_extractor_forward.5} parent=11 // pred_region
        _
      $region16: #{roi_extractor_forward.5} parent=11 // pred_fallthru
        _
      // Predicated region
      $region17: #{roi_extractor_forward.5} parent=11 // pred_check
        %p231 = pneg %p82
      $region18: #{roi_extractor_forward.5} parent=11 // pred_check_branch
        %233 = sbr.rel (%p231) target = $region20
      $region19: #{roi_extractor_forward.5} parent=11 // pred_region
        _
      $region20: #{roi_extractor_forward.5} parent=11 // pred_fallthru
        _
      // Predicated region
      $region21: #{roi_extractor_forward.5} parent=11 // pred_check
        %p234 = pneg %p103
      $region22: #{roi_extractor_forward.5} parent=11 // pred_check_branch
        %236 = sbr.rel (%p234) target = $region24
      $region23: #{roi_extractor_forward.5} parent=11 // pred_region
        _
      $region24: #{roi_extractor_forward.5} parent=11 // pred_fallthru
        _
      // Predicated region
      $region25: #{roi_extractor_forward.5} parent=11 // pred_check
        %p237 = pneg %p124
      $region26: #{roi_extractor_forward.5} parent=11 // pred_check_branch
        %239 = sbr.rel (%p237) target = $region28
      $region27: #{roi_extractor_forward.5} parent=11 // pred_region
        _
      $region28: #{roi_extractor_forward.5} parent=11 // pred_fallthru
        _
      // Predicated region
      $region29: #{roi_extractor_forward.5} parent=11 // pred_check
        %p240 = pneg %p145
      $region30: #{roi_extractor_forward.5} parent=11 // pred_check_branch
        %242 = sbr.rel (%p240) target = $region32
      $region31: #{roi_extractor_forward.5} parent=11 // pred_region
        _
      $region32: #{roi_extractor_forward.5} parent=11 // pred_fallthru
        _
      // Predicated region
      $region33: #{roi_extractor_forward.5} parent=11 // pred_check
        %p243 = pneg %p166
      $region34: #{roi_extractor_forward.5} parent=11 // pred_check_branch
        %245 = sbr.rel (%p243) target = $region36
      $region35: #{roi_extractor_forward.5} parent=11 // pred_region
        _
      $region36: #{roi_extractor_forward.5} parent=11 // pred_fallthru
        _
      // Predicated region
      $region37: #{roi_extractor_forward.5} parent=11 // pred_check
        %p246 = pneg %p187
      $region38: #{roi_extractor_forward.5} parent=11 // pred_check_branch
        %248 = sbr.rel (%p246) target = $region40
      $region39: #{roi_extractor_forward.5} parent=11 // pred_region
        _
      $region40: #{roi_extractor_forward.5} parent=11 // pred_fallthru
        _
    $region12: #{roi_extractor_forward.5} parent=5 // pred_fallthru
      _
    %p249 = scmp.lt.s32.totalorder %s14, 2
    // Predicated region
    $region41: #{roi_extractor_forward.5} parent=5 // pred_check
      %p250 = pneg %p249
    $region42: #{roi_extractor_forward.5} parent=5 // pred_check_branch
      %252 = sbr.rel (%p250) target = $region44
    $region43: #{roi_extractor_forward.5} parent=5 // pred_region
      // Predicated region
      $region45: #{roi_extractor_forward.5} parent=43 // pred_check
        %p253 = pneg %p34
      $region46: #{roi_extractor_forward.5} parent=43 // pred_check_branch
        %255 = sbr.rel (%p253) target = $region48
      $region47: #{roi_extractor_forward.5} parent=43 // pred_region
        %s256 = smul.u32 8, %s14
        %p257 = scmp.lt.s32.totalorder %s256, 15
        %s258 = scalar_select %p257, %s256, 15
        %s259 = smul.addr %s258, 4
        %s260 = scalar_lea.vmem %s0, %s259
        %s261 = smul.u32 8, %s14
      $region48: #{roi_extractor_forward.5} parent=43 // pred_fallthru
        _
    $region44: #{roi_extractor_forward.5} parent=5 // pred_fallthru
      _
    %p262 = scmp.le.s32.totalorder 1, %s14
    %p263 = scmp.lt.s32.totalorder %s14, 3
    %p264 = pnand %p262, %p263
    %p265 = pneg %p264
    // Predicated region
    $region49: #{roi_extractor_forward.5} parent=5 // pred_check
      _
    $region50: #{roi_extractor_forward.5} parent=5 // pred_check_branch
      %267 = sbr.rel (%p264) target = $region52
    $region51: #{roi_extractor_forward.5} parent=5 // pred_region
      %s268 = ssub.s32 %s14, 1
      %s269 = smul.u32 8, %s19
      %p270 = scmp.lt.s32.totalorder %s269, 15
      %s271 = scalar_select %p270, %s269, 15
      %s272 = smul.addr %s271, 4
      %s273 = scalar_lea.vmem %s0, %s272
      %p274 = pneg %p40
      %p275 = pneg %p37
      %p276 = pneg %p61
      %p277 = pneg %p58
      %p278 = pneg %p82
      %p279 = pneg %p79
      %p280 = pneg %p103
      %p281 = pneg %p100
      %p282 = pneg %p124
      %p283 = pneg %p121
      %p284 = pneg %p145
      %p285 = pneg %p142
      %p286 = pneg %p166
      %p287 = pneg %p163
      %p288 = pneg %p187
      %p289 = pneg %p184
      %p290 = pneg %p213
      %p291 = pneg %p210
      %p292 = scmp.lt.s32.totalorder %s19, 1
      %s293 = scalar_select %p292, %s19, 1
      %s294 = smul.addr %s293, 8
      %s295 = scalar_lea.vmem %s8, %s294
      %s296 = smul.u32 8, %s19
      %p297 = scmp.lt.s32.totalorder %s296, 15
      %s298 = scalar_select %p297, %s296, 15
      %s299 = smul.addr %s298, 4
      %s300 = scalar_lea.vmem %s0, %s299
      %s301 = smul.u32 8, %s19
      %p302 = scmp.lt.s32.totalorder %s19, 1
      %s303 = scalar_select %p302, %s19, 1
      %s304 = smul.addr %s303, 8
      %s305 = scalar_lea.vmem %s8, %s304
      %v307 = vld [vmem:[%s1] sm:$0xf]
      %v308 = vld [vmem:[%s1 + $0x4] sm:$0xf]
      %v309 = vld [vmem:[%s1 + $0x8] sm:$0xf]
      %v310 = vld [vmem:[%s1 + $0xc] sm:$0xf]
      %v311 = vld [vmem:[%s1 + $0x10] sm:$0xf]
      %v312 = vld [vmem:[%s1 + $0x14] sm:$0xf]
      %v313 = vld [vmem:[%s1 + $0x18] sm:$0xf]
      %v314 = vld [vmem:[%s1 + $0x1c] sm:$0xf]
      %v315 = vld [vmem:[%s1 + $0x20] sm:$0xf]
      %v316 = vld [vmem:[%s1 + $0x24] sm:$0xf]
      %v317 = vld [vmem:[%s1 + $0x28] sm:$0xf]
      %v318 = vld [vmem:[%s1 + $0x2c] sm:$0xf]
      %v319 = vld [vmem:[%s1 + $0x30] sm:$0xf]
      %v320 = vld [vmem:[%s1 + $0x34] sm:$0xf]
      %v321 = vld [vmem:[%s1 + $0x38] sm:$0xf]
      %v322 = vld [vmem:[%s1 + $0x3c] sm:$0xf]
      %v323 = vld [vmem:[%s1 + $0x40] sm:$0xf]
      %v324 = vld [vmem:[%s1 + $0x44] sm:$0xf]
      %v325 = vld [vmem:[%s1 + $0x48] sm:$0xf]
      %v326 = vld [vmem:[%s1 + $0x4c] sm:$0xf]
      %v327 = vld [vmem:[%s1 + $0x50] sm:$0xf]
      %v328 = vld [vmem:[%s1 + $0x54] sm:$0xf]
      %v329 = vld [vmem:[%s1 + $0x58] sm:$0xf]
      %v330 = vld [vmem:[%s1 + $0x5c] sm:$0xf]
      %v331 = vld [vmem:[%s1 + $0x60] sm:$0xf]
      %v332 = vld [vmem:[%s1 + $0x64] sm:$0xf]
      %v333 = vld [vmem:[%s1 + $0x68] sm:$0xf]
      %v334 = vld [vmem:[%s1 + $0x6c] sm:$0xf]
      %v335 = vld [vmem:[%s1 + $0x70] sm:$0xf]
      %v336 = vld [vmem:[%s1 + $0x74] sm:$0xf]
      %v337 = vld [vmem:[%s1 + $0x78] sm:$0xf]
      %v338 = vld [vmem:[%s1 + $0x7c] sm:$0xf]
      %v339 = vld [vmem:[%s1 + $0x80] sm:$0xf]
      %v340 = vld [vmem:[%s1 + $0x84] sm:$0xf]
      %v341 = vld [vmem:[%s1 + $0x88] sm:$0xf]
      %v342 = vld [vmem:[%s1 + $0x8c] sm:$0xf]
      %v343 = vld [vmem:[%s1 + $0x90] sm:$0xf]
      %v344 = vld [vmem:[%s1 + $0x94] sm:$0xf]
      %v345 = vld [vmem:[%s1 + $0x98] sm:$0xf]
      %v346 = vld [vmem:[%s1 + $0x9c] sm:$0xf]
      %v347 = vld [vmem:[%s1 + $0xa0] sm:$0xf]
      %v348 = vld [vmem:[%s1 + $0xa4] sm:$0xf]
      %v349 = vld [vmem:[%s1 + $0xa8] sm:$0xf]
      %v350 = vld [vmem:[%s1 + $0xac] sm:$0xf]
      %v351 = vld [vmem:[%s1 + $0xb0] sm:$0xf]
      %v352 = vld [vmem:[%s1 + $0xb4] sm:$0xf]
      %v353 = vld [vmem:[%s1 + $0xb8] sm:$0xf]
      %v354 = vld [vmem:[%s1 + $0xbc] sm:$0xf]
      %v355 = vld [vmem:[%s1 + $0xc0] sm:$0xf]
      %v356 = vld [vmem:[%s300] sm:$0xf]
      %v357 = vld [vmem:[%s300 + $0x4] sm:$0xf]
      %v358 = vld [vmem:[%s300 + $0x8] sm:$0xf]
      %v359 = vld [vmem:[%s300 + $0xc] sm:$0xf]
      %v360 = vld [vmem:[%s300 + $0x10] sm:$0xf]
      %v361 = vld [vmem:[%s300 + $0x14] sm:$0xf]
      %v362 = vld [vmem:[%s300 + $0x18] sm:$0xf]
      %v363 = vld [vmem:[%s300 + $0x1c] sm:$0xf]
      %v413 = vunpack.c.l.b16 %v307
      %v414 = vunpack.c.l.b16 %v308
      %v415 = vunpack.c.l.b16 %v309
      %v416 = vunpack.c.l.b16 %v310
      %v417 = vunpack.c.l.b16 %v311
      %v418 = vunpack.c.l.b16 %v312
      %v419 = vunpack.c.l.b16 %v313
      %v420 = vunpack.c.l.b16 %v314
      %v421 = vunpack.c.l.b16 %v315
      %v422 = vunpack.c.l.b16 %v316
      %v423 = vunpack.c.l.b16 %v317
      %v424 = vunpack.c.l.b16 %v318
      %v425 = vunpack.c.l.b16 %v319
      %v426 = vunpack.c.l.b16 %v320
      %v427 = vunpack.c.l.b16 %v321
      %v428 = vunpack.c.l.b16 %v322
      %v429 = vunpack.c.l.b16 %v323
      %v430 = vunpack.c.l.b16 %v324
      %v431 = vunpack.c.l.b16 %v325
      %v432 = vunpack.c.l.b16 %v326
      %v433 = vunpack.c.l.b16 %v327
      %v434 = vunpack.c.l.b16 %v328
      %v435 = vunpack.c.l.b16 %v329
      %v436 = vunpack.c.l.b16 %v330
      %v437 = vunpack.c.l.b16 %v331
      %v438 = vunpack.c.l.b16 %v332
      %v439 = vunpack.c.l.b16 %v333
      %v440 = vunpack.c.l.b16 %v334
      %v441 = vunpack.c.l.b16 %v335
      %v442 = vunpack.c.l.b16 %v336
      %v443 = vunpack.c.l.b16 %v337
      %v444 = vunpack.c.l.b16 %v338
      %v445 = vunpack.c.l.b16 %v339
      %v446 = vunpack.c.l.b16 %v340
      %v447 = vunpack.c.l.b16 %v341
      %v448 = vunpack.c.l.b16 %v342
      %v449 = vunpack.c.l.b16 %v343
      %v450 = vunpack.c.l.b16 %v344
      %v451 = vunpack.c.l.b16 %v345
      %v452 = vunpack.c.l.b16 %v346
      %v453 = vunpack.c.l.b16 %v347
      %v454 = vunpack.c.l.b16 %v348
      %v455 = vunpack.c.l.b16 %v349
      %v456 = vunpack.c.l.b16 %v350
      %v457 = vunpack.c.l.b16 %v351
      %v458 = vunpack.c.l.b16 %v352
      %v459 = vunpack.c.l.b16 %v353
      %v460 = vunpack.c.l.b16 %v354
      %v461 = vunpack.c.l.b16 %v355
      %v462 = vpack.c.b16 %v414, %v413
      %v463 = vpack.c.b16 %v416, %v415
      %v464 = vpack.c.b16 %v418, %v417
      %v465 = vpack.c.b16 %v420, %v419
      %v466 = vpack.c.b16 %v422, %v421
      %v467 = vpack.c.b16 %v424, %v423
      %v468 = vpack.c.b16 %v426, %v425
      %v469 = vpack.c.b16 %v428, %v427
      %v470 = vpack.c.b16 %v430, %v429
      %v471 = vpack.c.b16 %v432, %v431
      %v472 = vpack.c.b16 %v434, %v433
      %v473 = vpack.c.b16 %v436, %v435
      %v474 = vpack.c.b16 %v438, %v437
      %v475 = vpack.c.b16 %v440, %v439
      %v476 = vpack.c.b16 %v442, %v441
      %v477 = vpack.c.b16 %v444, %v443
      %v478 = vpack.c.b16 %v446, %v445
      %v479 = vpack.c.b16 %v448, %v447
      %v480 = vpack.c.b16 %v450, %v449
      %v481 = vpack.c.b16 %v452, %v451
      %v482 = vpack.c.b16 %v454, %v453
      %v483 = vpack.c.b16 %v456, %v455
      %v484 = vpack.c.b16 %v458, %v457
      %v485 = vpack.c.b16 %v460, %v459
      %v486 = vpack.c.b16 %v461, %v461
      %v495 = vunpack.c.l.b16 %v356
      %v496 = vunpack.c.l.b16 %v357
      %v497 = vunpack.c.l.b16 %v358
      %v498 = vunpack.c.l.b16 %v359
      %v499 = vunpack.c.l.b16 %v360
      %v500 = vunpack.c.l.b16 %v361
      %v501 = vunpack.c.l.b16 %v362
      %v502 = vunpack.c.l.b16 %v363
      %v503 = vpack.c.b16 %v496, %v495
      %v504 = vpack.c.b16 %v498, %v497
      %v505 = vpack.c.b16 %v500, %v499
      %v506 = vpack.c.b16 %v502, %v501
      %vm511 = vcmask 523264
      %v513 = vsel %vm511, %v462, 0
      %v516 = vsel %vm511, %v463, 0
      %v519 = vsel %vm511, %v464, 0
      %v522 = vsel %vm511, %v465, 0
      %v525 = vsel %vm511, %v466, 0
      %v528 = vsel %vm511, %v467, 0
      %v531 = vsel %vm511, %v468, 0
      %v534 = vsel %vm511, %v469, 0
      %v537 = vsel %vm511, %v470, 0
      %v540 = vsel %vm511, %v471, 0
      %v543 = vsel %vm511, %v472, 0
      %v546 = vsel %vm511, %v473, 0
      %v549 = vsel %vm511, %v474, 0
      %v552 = vsel %vm511, %v475, 0
      %v555 = vsel %vm511, %v476, 0
      %v558 = vsel %vm511, %v477, 0
      %v561 = vsel %vm511, %v478, 0
      %v564 = vsel %vm511, %v479, 0
      %v567 = vsel %vm511, %v480, 0
      %v570 = vsel %vm511, %v481, 0
      %v573 = vsel %vm511, %v482, 0
      %v576 = vsel %vm511, %v483, 0
      %v579 = vsel %vm511, %v484, 0
      %v582 = vsel %vm511, %v485, 0
      %v585 = vsel %vm511, %v486, 0
      %587 = vmatpush.bf16.msra.mxu0 0
      %588 = vmatpush.bf16.msra.mxu0 0
      %589 = vmatpush.bf16.msra.mxu0 0
      %590 = vmatpush.bf16.msra.mxu0 0
      %591 = vmatpush.bf16.msra.mxu0 %v506
      %592 = vmatpush.bf16.msra.mxu0 %v505
      %593 = vmatpush.bf16.msra.mxu0 %v504
      %594 = vmatpush.bf16.msra.mxu0 %v503
      %595 = vmatmul.bf16.gmra.mxu0 %v513
      %v596 = vpop.f32.mrf.mxu0
      %v597 = vadd.f32 0.0, %v596
      %v598 = vpop.f32.mrf.mxu0
      %v599 = vadd.f32 0.0, %v598
      %600 = vmatmul.bf16.gmra.mxu0 %v516
      %v601 = vpop.f32.mrf.mxu0
      %v602 = vadd.f32 0.0, %v601
      %v603 = vpop.f32.mrf.mxu0
      %v604 = vadd.f32 0.0, %v603
      %605 = vmatmul.bf16.gmra.mxu0 %v519
      %v606 = vpop.f32.mrf.mxu0
      %v607 = vadd.f32 0.0, %v606
      %v608 = vpop.f32.mrf.mxu0
      %v609 = vadd.f32 0.0, %v608
      %610 = vmatmul.bf16.gmra.mxu0 %v522
      %v611 = vpop.f32.mrf.mxu0
      %v612 = vadd.f32 0.0, %v611
      %v613 = vpop.f32.mrf.mxu0
      %v614 = vadd.f32 0.0, %v613
      %615 = vmatmul.bf16.gmra.mxu0 %v525
      %v616 = vpop.f32.mrf.mxu0
      %v617 = vadd.f32 0.0, %v616
      %v618 = vpop.f32.mrf.mxu0
      %v619 = vadd.f32 0.0, %v618
      %620 = vmatmul.bf16.gmra.mxu0 %v528
      %v621 = vpop.f32.mrf.mxu0
      %v622 = vadd.f32 0.0, %v621
      %v623 = vpop.f32.mrf.mxu0
      %v624 = vadd.f32 0.0, %v623
      %625 = vmatmul.bf16.gmra.mxu0 %v531
      %v626 = vpop.f32.mrf.mxu0
      %v627 = vadd.f32 0.0, %v626
      %v628 = vpop.f32.mrf.mxu0
      %v629 = vadd.f32 0.0, %v628
      %630 = vmatmul.bf16.gmra.mxu0 %v534
      %v631 = vpop.f32.mrf.mxu0
      %v632 = vadd.f32 0.0, %v631
      %v633 = vpop.f32.mrf.mxu0
      %v634 = vadd.f32 0.0, %v633
      %635 = vmatmul.bf16.gmra.mxu0 %v537
      %v636 = vpop.f32.mrf.mxu0
      %v637 = vadd.f32 0.0, %v636
      %v638 = vpop.f32.mrf.mxu0
      %v639 = vadd.f32 0.0, %v638
      %640 = vmatmul.bf16.gmra.mxu0 %v540
      %v641 = vpop.f32.mrf.mxu0
      %v642 = vadd.f32 0.0, %v641
      %v643 = vpop.f32.mrf.mxu0
      %v644 = vadd.f32 0.0, %v643
      %645 = vmatmul.bf16.gmra.mxu0 %v543
      %v646 = vpop.f32.mrf.mxu0
      %v647 = vadd.f32 0.0, %v646
      %v648 = vpop.f32.mrf.mxu0
      %v649 = vadd.f32 0.0, %v648
      %650 = vmatmul.bf16.gmra.mxu0 %v546
      %v651 = vpop.f32.mrf.mxu0
      %v652 = vadd.f32 0.0, %v651
      %v653 = vpop.f32.mrf.mxu0
      %v654 = vadd.f32 0.0, %v653
      %655 = vmatmul.bf16.gmra.mxu0 %v549
      %v656 = vpop.f32.mrf.mxu0
      %v657 = vadd.f32 0.0, %v656
      %v658 = vpop.f32.mrf.mxu0
      %v659 = vadd.f32 0.0, %v658
      %660 = vmatmul.bf16.gmra.mxu0 %v552
      %v661 = vpop.f32.mrf.mxu0
      %v662 = vadd.f32 0.0, %v661
      %v663 = vpop.f32.mrf.mxu0
      %v664 = vadd.f32 0.0, %v663
      %665 = vmatmul.bf16.gmra.mxu0 %v555
      %v666 = vpop.f32.mrf.mxu0
      %v667 = vadd.f32 0.0, %v666
      %v668 = vpop.f32.mrf.mxu0
      %v669 = vadd.f32 0.0, %v668
      %670 = vmatmul.bf16.gmra.mxu0 %v558
      %v671 = vpop.f32.mrf.mxu0
      %v672 = vadd.f32 0.0, %v671
      %v673 = vpop.f32.mrf.mxu0
      %v674 = vadd.f32 0.0, %v673
      %675 = vmatmul.bf16.gmra.mxu0 %v561
      %v676 = vpop.f32.mrf.mxu0
      %v677 = vadd.f32 0.0, %v676
      %v678 = vpop.f32.mrf.mxu0
      %v679 = vadd.f32 0.0, %v678
      %680 = vmatmul.bf16.gmra.mxu0 %v564
      %v681 = vpop.f32.mrf.mxu0
      %v682 = vadd.f32 0.0, %v681
      %v683 = vpop.f32.mrf.mxu0
      %v684 = vadd.f32 0.0, %v683
      %685 = vmatmul.bf16.gmra.mxu0 %v567
      %v686 = vpop.f32.mrf.mxu0
      %v687 = vadd.f32 0.0, %v686
      %v688 = vpop.f32.mrf.mxu0
      %v689 = vadd.f32 0.0, %v688
      %690 = vmatmul.bf16.gmra.mxu0 %v570
      %v691 = vpop.f32.mrf.mxu0
      %v692 = vadd.f32 0.0, %v691
      %v693 = vpop.f32.mrf.mxu0
      %v694 = vadd.f32 0.0, %v693
      %695 = vmatmul.bf16.gmra.mxu0 %v573
      %v696 = vpop.f32.mrf.mxu0
      %v697 = vadd.f32 0.0, %v696
      %v698 = vpop.f32.mrf.mxu0
      %v699 = vadd.f32 0.0, %v698
      %700 = vmatmul.bf16.gmra.mxu0 %v576
      %v701 = vpop.f32.mrf.mxu0
      %v702 = vadd.f32 0.0, %v701
      %v703 = vpop.f32.mrf.mxu0
      %v704 = vadd.f32 0.0, %v703
      %705 = vmatmul.bf16.gmra.mxu0 %v579
      %v706 = vpop.f32.mrf.mxu0
      %v707 = vadd.f32 0.0, %v706
      %v708 = vpop.f32.mrf.mxu0
      %v709 = vadd.f32 0.0, %v708
      %710 = vmatmul.bf16.gmra.mxu0 %v582
      %v711 = vpop.f32.mrf.mxu0
      %v712 = vadd.f32 0.0, %v711
      %v713 = vpop.f32.mrf.mxu0
      %v714 = vadd.f32 0.0, %v713
      %715 = vmatmul.bf16.gmra.mxu0 %v585
      %v716 = vpop.f32.mrf.mxu0
      %v717 = vadd.f32 0.0, %v716
      %v718 = vpop.f32.mrf.mxu0
      %719 = vdwg.mxu0
      %720 = vst.msk [vmem:[#allocation2] sm:$0xff] %vm511, %v597
      %721 = vst.msk [vmem:[#allocation2 + $0x8] sm:$0xff] %vm511, %v599
      %722 = vst.msk [vmem:[#allocation2 + $0x10] sm:$0xff] %vm511, %v602
      %723 = vst.msk [vmem:[#allocation2 + $0x18] sm:$0xff] %vm511, %v604
      %724 = vst.msk [vmem:[#allocation2 + $0x20] sm:$0xff] %vm511, %v607
      %725 = vst.msk [vmem:[#allocation2 + $0x28] sm:$0xff] %vm511, %v609
      %726 = vst.msk [vmem:[#allocation2 + $0x30] sm:$0xff] %vm511, %v612
      %727 = vst.msk [vmem:[#allocation2 + $0x38] sm:$0xff] %vm511, %v614
      %728 = vst.msk [vmem:[#allocation2 + $0x40] sm:$0xff] %vm511, %v617
      %729 = vst.msk [vmem:[#allocation2 + $0x48] sm:$0xff] %vm511, %v619
      %730 = vst.msk [vmem:[#allocation2 + $0x50] sm:$0xff] %vm511, %v622
      %731 = vst.msk [vmem:[#allocation2 + $0x58] sm:$0xff] %vm511, %v624
      %732 = vst.msk [vmem:[#allocation2 + $0x60] sm:$0xff] %vm511, %v627
      %733 = vst.msk [vmem:[#allocation2 + $0x68] sm:$0xff] %vm511, %v629
      %734 = vst.msk [vmem:[#allocation2 + $0x70] sm:$0xff] %vm511, %v632
      %735 = vst.msk [vmem:[#allocation2 + $0x78] sm:$0xff] %vm511, %v634
      %736 = vst.msk [vmem:[#allocation2 + $0x80] sm:$0xff] %vm511, %v637
      %737 = vst.msk [vmem:[#allocation2 + $0x88] sm:$0xff] %vm511, %v639
      %738 = vst.msk [vmem:[#allocation2 + $0x90] sm:$0xff] %vm511, %v642
      %739 = vst.msk [vmem:[#allocation2 + $0x98] sm:$0xff] %vm511, %v644
      %740 = vst.msk [vmem:[#allocation2 + $0xa0] sm:$0xff] %vm511, %v647
      %741 = vst.msk [vmem:[#allocation2 + $0xa8] sm:$0xff] %vm511, %v649
      %742 = vst.msk [vmem:[#allocation2 + $0xb0] sm:$0xff] %vm511, %v652
      %743 = vst.msk [vmem:[#allocation2 + $0xb8] sm:$0xff] %vm511, %v654
      %744 = vst.msk [vmem:[#allocation2 + $0xc0] sm:$0xff] %vm511, %v657
      %745 = vst.msk [vmem:[#allocation2 + $0xc8] sm:$0xff] %vm511, %v659
      %746 = vst.msk [vmem:[#allocation2 + $0xd0] sm:$0xff] %vm511, %v662
      %747 = vst.msk [vmem:[#allocation2 + $0xd8] sm:$0xff] %vm511, %v664
      %748 = vst.msk [vmem:[#allocation2 + $0xe0] sm:$0xff] %vm511, %v667
      %749 = vst.msk [vmem:[#allocation2 + $0xe8] sm:$0xff] %vm511, %v669
      %750 = vst.msk [vmem:[#allocation2 + $0xf0] sm:$0xff] %vm511, %v672
      %751 = vst.msk [vmem:[#allocation2 + $0xf8] sm:$0xff] %vm511, %v674
      %752 = vst.msk [vmem:[#allocation2 + $0x100] sm:$0xff] %vm511, %v677
      %753 = vst.msk [vmem:[#allocation2 + $0x108] sm:$0xff] %vm511, %v679
      %754 = vst.msk [vmem:[#allocation2 + $0x110] sm:$0xff] %vm511, %v682
      %755 = vst.msk [vmem:[#allocation2 + $0x118] sm:$0xff] %vm511, %v684
      %756 = vst.msk [vmem:[#allocation2 + $0x120] sm:$0xff] %vm511, %v687
      %757 = vst.msk [vmem:[#allocation2 + $0x128] sm:$0xff] %vm511, %v689
      %758 = vst.msk [vmem:[#allocation2 + $0x130] sm:$0xff] %vm511, %v692
      %759 = vst.msk [vmem:[#allocation2 + $0x138] sm:$0xff] %vm511, %v694
      %760 = vst.msk [vmem:[#allocation2 + $0x140] sm:$0xff] %vm511, %v697
      %761 = vst.msk [vmem:[#allocation2 + $0x148] sm:$0xff] %vm511, %v699
      %762 = vst.msk [vmem:[#allocation2 + $0x150] sm:$0xff] %vm511, %v702
      %763 = vst.msk [vmem:[#allocation2 + $0x158] sm:$0xff] %vm511, %v704
      %764 = vst.msk [vmem:[#allocation2 + $0x160] sm:$0xff] %vm511, %v707
      %765 = vst.msk [vmem:[#allocation2 + $0x168] sm:$0xff] %vm511, %v709
      %766 = vst.msk [vmem:[#allocation2 + $0x170] sm:$0xff] %vm511, %v712
      %767 = vst.msk [vmem:[#allocation2 + $0x178] sm:$0xff] %vm511, %v714
      %768 = vst.msk [vmem:[#allocation2 + $0x180] sm:$0xff] %vm511, %v717
      %v769 = vld [vmem:[#allocation2] sm:$0xff]
      %v770 = vpack.c.bf16 %v769, %v769
      %v771 = vld [vmem:[%s2] sm:$0xf]
      %v772 = vld [vmem:[%s2 + $0x4] sm:$0xf]
      %v773 = vld [vmem:[%s2 + $0x8] sm:$0xf]
      %v774 = vld [vmem:[%s2 + $0xc] sm:$0xf]
      %v775 = vld [vmem:[%s2 + $0x10] sm:$0xf]
      %v776 = vld [vmem:[%s2 + $0x14] sm:$0xf]
      %v777 = vld [vmem:[%s2 + $0x18] sm:$0xf]
      %v778 = vld [vmem:[%s2 + $0x1c] sm:$0xf]
      %v779 = vld [vmem:[#allocation2 + $0x8] sm:$0xff]
      %v780 = vpack.c.bf16 %v779, %v779
      %v781 = vld [vmem:[%s2 + $0x20] sm:$0xf]
      %v782 = vld [vmem:[%s2 + $0x24] sm:$0xf]
      %v783 = vld [vmem:[%s2 + $0x28] sm:$0xf]
      %v784 = vld [vmem:[%s2 + $0x2c] sm:$0xf]
      %v785 = vld [vmem:[%s2 + $0x30] sm:$0xf]
      %v786 = vld [vmem:[%s2 + $0x34] sm:$0xf]
      %v787 = vld [vmem:[%s2 + $0x38] sm:$0xf]
      %v788 = vld [vmem:[%s2 + $0x3c] sm:$0xf]
      %v797 = vunpack.c.l.b16 %v781
      %v798 = vunpack.c.l.b16 %v782
      %v799 = vunpack.c.l.b16 %v783
      %v800 = vunpack.c.l.b16 %v784
      %v801 = vunpack.c.l.b16 %v785
      %v802 = vunpack.c.l.b16 %v786
      %v803 = vunpack.c.l.b16 %v787
      %v804 = vunpack.c.l.b16 %v788
      %v805 = vpack.c.b16 %v798, %v797
      %v806 = vpack.c.b16 %v800, %v799
      %v807 = vpack.c.b16 %v802, %v801
      %v808 = vpack.c.b16 %v804, %v803
      %v814 = vsel %vm511, %v780, 0
      %816 = vmatpush.bf16.msra.mxu0 0
      %817 = vmatpush.bf16.msra.mxu0 0
      %818 = vmatpush.bf16.msra.mxu0 0
      %819 = vmatpush.bf16.msra.mxu0 0
      %820 = vmatpush.bf16.msra.mxu0 %v808
      %821 = vmatpush.bf16.msra.mxu0 %v807
      %822 = vmatpush.bf16.msra.mxu0 %v806
      %823 = vmatpush.bf16.msra.mxu0 %v805
      %824 = vmatmul.bf16.gmra.mxu0 %v814
      %v825 = vpop.f32.mrf.mxu0
      %v826 = vadd.f32 0.0, %v825
      %v827 = vpop.f32.mrf.mxu0
      %828 = vdwg.mxu0
      %v837 = vunpack.c.l.b16 %v771
      %v838 = vunpack.c.l.b16 %v772
      %v839 = vunpack.c.l.b16 %v773
      %v840 = vunpack.c.l.b16 %v774
      %v841 = vunpack.c.l.b16 %v775
      %v842 = vunpack.c.l.b16 %v776
      %v843 = vunpack.c.l.b16 %v777
      %v844 = vunpack.c.l.b16 %v778
      %v845 = vpack.c.b16 %v838, %v837
      %v846 = vpack.c.b16 %v840, %v839
      %v847 = vpack.c.b16 %v842, %v841
      %v848 = vpack.c.b16 %v844, %v843
      %v854 = vsel %vm511, %v770, 0
      %856 = vmatpush.bf16.msra.mxu0 0
      %857 = vmatpush.bf16.msra.mxu0 0
      %858 = vmatpush.bf16.msra.mxu0 0
      %859 = vmatpush.bf16.msra.mxu0 0
      %860 = vmatpush.bf16.msra.mxu0 %v848
      %861 = vmatpush.bf16.msra.mxu0 %v847
      %862 = vmatpush.bf16.msra.mxu0 %v846
      %863 = vmatpush.bf16.msra.mxu0 %v845
      %864 = vmatmul.bf16.gmra.mxu0 %v854
      %v865 = vpop.f32.mrf.mxu0
      %v866 = vadd.f32 %v826, %v865
      %v867 = vpop.f32.mrf.mxu0
      %868 = vdwg.mxu0
      %v869 = vld [vmem:[#allocation2 + $0x10] sm:$0xff]
      %v870 = vpack.c.bf16 %v869, %v869
      %v871 = vld [vmem:[%s2 + $0x40] sm:$0xf]
      %v872 = vld [vmem:[%s2 + $0x44] sm:$0xf]
      %v873 = vld [vmem:[%s2 + $0x48] sm:$0xf]
      %v874 = vld [vmem:[%s2 + $0x4c] sm:$0xf]
      %v875 = vld [vmem:[%s2 + $0x50] sm:$0xf]
      %v876 = vld [vmem:[%s2 + $0x54] sm:$0xf]
      %v877 = vld [vmem:[%s2 + $0x58] sm:$0xf]
      %v878 = vld [vmem:[%s2 + $0x5c] sm:$0xf]
      %v887 = vunpack.c.l.b16 %v871
      %v888 = vunpack.c.l.b16 %v872
      %v889 = vunpack.c.l.b16 %v873
      %v890 = vunpack.c.l.b16 %v874
      %v891 = vunpack.c.l.b16 %v875
      %v892 = vunpack.c.l.b16 %v876
      %v893 = vunpack.c.l.b16 %v877
      %v894 = vunpack.c.l.b16 %v878
      %v895 = vpack.c.b16 %v888, %v887
      %v896 = vpack.c.b16 %v890, %v889
      %v897 = vpack.c.b16 %v892, %v891
      %v898 = vpack.c.b16 %v894, %v893
      %v904 = vsel %vm511, %v870, 0
      %906 = vmatpush.bf16.msra.mxu0 0
      %907 = vmatpush.bf16.msra.mxu0 0
      %908 = vmatpush.bf16.msra.mxu0 0
      %909 = vmatpush.bf16.msra.mxu0 0
      %910 = vmatpush.bf16.msra.mxu0 %v898
      %911 = vmatpush.bf16.msra.mxu0 %v897
      %912 = vmatpush.bf16.msra.mxu0 %v896
      %913 = vmatpush.bf16.msra.mxu0 %v895
      %914 = vmatmul.bf16.gmra.mxu0 %v904
      %v915 = vpop.f32.mrf.mxu0
      %v916 = vadd.f32 0.0, %v915
      %v917 = vpop.f32.mrf.mxu0
      %918 = vdwg.mxu0
      %v919 = vadd.f32 %v866, %v916
      %v920 = vld [vmem:[#allocation2 + $0x18] sm:$0xff]
      %v921 = vpack.c.bf16 %v920, %v920
      %v922 = vld [vmem:[%s2 + $0x60] sm:$0xf]
      %v923 = vld [vmem:[%s2 + $0x64] sm:$0xf]
      %v924 = vld [vmem:[%s2 + $0x68] sm:$0xf]
      %v925 = vld [vmem:[%s2 + $0x6c] sm:$0xf]
      %v926 = vld [vmem:[%s2 + $0x70] sm:$0xf]
      %v927 = vld [vmem:[%s2 + $0x74] sm:$0xf]
      %v928 = vld [vmem:[%s2 + $0x78] sm:$0xf]
      %v929 = vld [vmem:[%s2 + $0x7c] sm:$0xf]
      %v938 = vunpack.c.l.b16 %v922
      %v939 = vunpack.c.l.b16 %v923
      %v940 = vunpack.c.l.b16 %v924
      %v941 = vunpack.c.l.b16 %v925
      %v942 = vunpack.c.l.b16 %v926
      %v943 = vunpack.c.l.b16 %v927
      %v944 = vunpack.c.l.b16 %v928
      %v945 = vunpack.c.l.b16 %v929
      %v946 = vpack.c.b16 %v939, %v938
      %v947 = vpack.c.b16 %v941, %v940
      %v948 = vpack.c.b16 %v943, %v942
      %v949 = vpack.c.b16 %v945, %v944
      %v955 = vsel %vm511, %v921, 0
      %957 = vmatpush.bf16.msra.mxu0 0
      %958 = vmatpush.bf16.msra.mxu0 0
      %959 = vmatpush.bf16.msra.mxu0 0
      %960 = vmatpush.bf16.msra.mxu0 0
      %961 = vmatpush.bf16.msra.mxu0 %v949
      %962 = vmatpush.bf16.msra.mxu0 %v948
      %963 = vmatpush.bf16.msra.mxu0 %v947
      %964 = vmatpush.bf16.msra.mxu0 %v946
      %965 = vmatmul.bf16.gmra.mxu0 %v955
      %v966 = vpop.f32.mrf.mxu0
      %v967 = vadd.f32 0.0, %v966
      %v968 = vpop.f32.mrf.mxu0
      %969 = vdwg.mxu0
      %v970 = vadd.f32 %v919, %v967
      %v971 = vld [vmem:[#allocation2 + $0x20] sm:$0xff]
      %v972 = vpack.c.bf16 %v971, %v971
      %v973 = vld [vmem:[%s2 + $0x80] sm:$0xf]
      %v974 = vld [vmem:[%s2 + $0x84] sm:$0xf]
      %v975 = vld [vmem:[%s2 + $0x88] sm:$0xf]
      %v976 = vld [vmem:[%s2 + $0x8c] sm:$0xf]
      %v977 = vld [vmem:[%s2 + $0x90] sm:$0xf]
      %v978 = vld [vmem:[%s2 + $0x94] sm:$0xf]
      %v979 = vld [vmem:[%s2 + $0x98] sm:$0xf]
      %v980 = vld [vmem:[%s2 + $0x9c] sm:$0xf]
      %v989 = vunpack.c.l.b16 %v973
      %v990 = vunpack.c.l.b16 %v974
      %v991 = vunpack.c.l.b16 %v975
      %v992 = vunpack.c.l.b16 %v976
      %v993 = vunpack.c.l.b16 %v977
      %v994 = vunpack.c.l.b16 %v978
      %v995 = vunpack.c.l.b16 %v979
      %v996 = vunpack.c.l.b16 %v980
      %v997 = vpack.c.b16 %v990, %v989
      %v998 = vpack.c.b16 %v992, %v991
      %v999 = vpack.c.b16 %v994, %v993
      %v1000 = vpack.c.b16 %v996, %v995
      %v1006 = vsel %vm511, %v972, 0
      %1008 = vmatpush.bf16.msra.mxu0 0
      %1009 = vmatpush.bf16.msra.mxu0 0
      %1010 = vmatpush.bf16.msra.mxu0 0
      %1011 = vmatpush.bf16.msra.mxu0 0
      %1012 = vmatpush.bf16.msra.mxu0 %v1000
      %1013 = vmatpush.bf16.msra.mxu0 %v999
      %1014 = vmatpush.bf16.msra.mxu0 %v998
      %1015 = vmatpush.bf16.msra.mxu0 %v997
      %1016 = vmatmul.bf16.gmra.mxu0 %v1006
      %v1017 = vpop.f32.mrf.mxu0
      %v1018 = vadd.f32 0.0, %v1017
      %v1019 = vpop.f32.mrf.mxu0
      %1020 = vdwg.mxu0
      %v1021 = vadd.f32 %v970, %v1018
      %v1022 = vld [vmem:[#allocation2 + $0x28] sm:$0xff]
      %v1023 = vpack.c.bf16 %v1022, %v1022
      %v1024 = vld [vmem:[%s2 + $0xa0] sm:$0xf]
      %v1025 = vld [vmem:[%s2 + $0xa4] sm:$0xf]
      %v1026 = vld [vmem:[%s2 + $0xa8] sm:$0xf]
      %v1027 = vld [vmem:[%s2 + $0xac] sm:$0xf]
      %v1028 = vld [vmem:[%s2 + $0xb0] sm:$0xf]
      %v1029 = vld [vmem:[%s2 + $0xb4] sm:$0xf]
      %v1030 = vld [vmem:[%s2 + $0xb8] sm:$0xf]
      %v1031 = vld [vmem:[%s2 + $0xbc] sm:$0xf]
      %v1040 = vunpack.c.l.b16 %v1024
      %v1041 = vunpack.c.l.b16 %v1025
      %v1042 = vunpack.c.l.b16 %v1026
      %v1043 = vunpack.c.l.b16 %v1027
      %v1044 = vunpack.c.l.b16 %v1028
      %v1045 = vunpack.c.l.b16 %v1029
      %v1046 = vunpack.c.l.b16 %v1030
      %v1047 = vunpack.c.l.b16 %v1031
      %v1048 = vpack.c.b16 %v1041, %v1040
      %v1049 = vpack.c.b16 %v1043, %v1042
      %v1050 = vpack.c.b16 %v1045, %v1044
      %v1051 = vpack.c.b16 %v1047, %v1046
      %v1057 = vsel %vm511, %v1023, 0
      %1059 = vmatpush.bf16.msra.mxu0 0
      %1060 = vmatpush.bf16.msra.mxu0 0
      %1061 = vmatpush.bf16.msra.mxu0 0
      %1062 = vmatpush.bf16.msra.mxu0 0
      %1063 = vmatpush.bf16.msra.mxu0 %v1051
      %1064 = vmatpush.bf16.msra.mxu0 %v1050
      %1065 = vmatpush.bf16.msra.mxu0 %v1049
      %1066 = vmatpush.bf16.msra.mxu0 %v1048
      %1067 = vmatmul.bf16.gmra.mxu0 %v1057
      %v1068 = vpop.f32.mrf.mxu0
      %v1069 = vadd.f32 0.0, %v1068
      %v1070 = vpop.f32.mrf.mxu0
      %1071 = vdwg.mxu0
      %v1072 = vadd.f32 %v1021, %v1069
      %v1073 = vld [vmem:[#allocation2 + $0x30] sm:$0xff]
      %v1074 = vpack.c.bf16 %v1073, %v1073
      %v1075 = vld [vmem:[%s2 + $0xc0] sm:$0xf]
      %v1076 = vld [vmem:[%s2 + $0xc4] sm:$0xf]
      %v1077 = vld [vmem:[%s2 + $0xc8] sm:$0xf]
      %v1078 = vld [vmem:[%s2 + $0xcc] sm:$0xf]
      %v1079 = vld [vmem:[%s2 + $0xd0] sm:$0xf]
      %v1080 = vld [vmem:[%s2 + $0xd4] sm:$0xf]
      %v1081 = vld [vmem:[%s2 + $0xd8] sm:$0xf]
      %v1082 = vld [vmem:[%s2 + $0xdc] sm:$0xf]
      %v1091 = vunpack.c.l.b16 %v1075
      %v1092 = vunpack.c.l.b16 %v1076
      %v1093 = vunpack.c.l.b16 %v1077
      %v1094 = vunpack.c.l.b16 %v1078
      %v1095 = vunpack.c.l.b16 %v1079
      %v1096 = vunpack.c.l.b16 %v1080
      %v1097 = vunpack.c.l.b16 %v1081
      %v1098 = vunpack.c.l.b16 %v1082
      %v1099 = vpack.c.b16 %v1092, %v1091
      %v1100 = vpack.c.b16 %v1094, %v1093
      %v1101 = vpack.c.b16 %v1096, %v1095
      %v1102 = vpack.c.b16 %v1098, %v1097
      %v1108 = vsel %vm511, %v1074, 0
      %1110 = vmatpush.bf16.msra.mxu0 0
      %1111 = vmatpush.bf16.msra.mxu0 0
      %1112 = vmatpush.bf16.msra.mxu0 0
      %1113 = vmatpush.bf16.msra.mxu0 0
      %1114 = vmatpush.bf16.msra.mxu0 %v1102
      %1115 = vmatpush.bf16.msra.mxu0 %v1101
      %1116 = vmatpush.bf16.msra.mxu0 %v1100
      %1117 = vmatpush.bf16.msra.mxu0 %v1099
      %1118 = vmatmul.bf16.gmra.mxu0 %v1108
      %v1119 = vpop.f32.mrf.mxu0
      %v1120 = vadd.f32 0.0, %v1119
      %v1121 = vpop.f32.mrf.mxu0
      %1122 = vdwg.mxu0
      %v1123 = vadd.f32 %v1072, %v1120
      %v1124 = vld [vmem:[#allocation2 + $0x38] sm:$0xff]
      %v1125 = vpack.c.bf16 %v1124, %v1124
      %v1126 = vld [vmem:[%s2 + $0xe0] sm:$0xf]
      %v1127 = vld [vmem:[%s2 + $0xe4] sm:$0xf]
      %v1128 = vld [vmem:[%s2 + $0xe8] sm:$0xf]
      %v1129 = vld [vmem:[%s2 + $0xec] sm:$0xf]
      %v1130 = vld [vmem:[%s2 + $0xf0] sm:$0xf]
      %v1131 = vld [vmem:[%s2 + $0xf4] sm:$0xf]
      %v1132 = vld [vmem:[%s2 + $0xf8] sm:$0xf]
      %v1133 = vld [vmem:[%s2 + $0xfc] sm:$0xf]
      %v1142 = vunpack.c.l.b16 %v1126
      %v1143 = vunpack.c.l.b16 %v1127
      %v1144 = vunpack.c.l.b16 %v1128
      %v1145 = vunpack.c.l.b16 %v1129
      %v1146 = vunpack.c.l.b16 %v1130
      %v1147 = vunpack.c.l.b16 %v1131
      %v1148 = vunpack.c.l.b16 %v1132
      %v1149 = vunpack.c.l.b16 %v1133
      %v1150 = vpack.c.b16 %v1143, %v1142
      %v1151 = vpack.c.b16 %v1145, %v1144
      %v1152 = vpack.c.b16 %v1147, %v1146
      %v1153 = vpack.c.b16 %v1149, %v1148
      %v1159 = vsel %vm511, %v1125, 0
      %1161 = vmatpush.bf16.msra.mxu0 0
      %1162 = vmatpush.bf16.msra.mxu0 0
      %1163 = vmatpush.bf16.msra.mxu0 0
      %1164 = vmatpush.bf16.msra.mxu0 0
      %1165 = vmatpush.bf16.msra.mxu0 %v1153
      %1166 = vmatpush.bf16.msra.mxu0 %v1152
      %1167 = vmatpush.bf16.msra.mxu0 %v1151
      %1168 = vmatpush.bf16.msra.mxu0 %v1150
      %1169 = vmatmul.bf16.gmra.mxu0 %v1159
      %v1170 = vpop.f32.mrf.mxu0
      %v1171 = vadd.f32 0.0, %v1170
      %v1172 = vpop.f32.mrf.mxu0
      %1173 = vdwg.mxu0
      %v1174 = vadd.f32 %v1123, %v1171
      %v1175 = vld [vmem:[#allocation2 + $0x40] sm:$0xff]
      %v1176 = vpack.c.bf16 %v1175, %v1175
      %v1177 = vld [vmem:[%s2 + $0x100] sm:$0xf]
      %v1178 = vld [vmem:[%s2 + $0x104] sm:$0xf]
      %v1179 = vld [vmem:[%s2 + $0x108] sm:$0xf]
      %v1180 = vld [vmem:[%s2 + $0x10c] sm:$0xf]
      %v1181 = vld [vmem:[%s2 + $0x110] sm:$0xf]
      %v1182 = vld [vmem:[%s2 + $0x114] sm:$0xf]
      %v1183 = vld [vmem:[%s2 + $0x118] sm:$0xf]
      %v1184 = vld [vmem:[%s2 + $0x11c] sm:$0xf]
      %v1193 = vunpack.c.l.b16 %v1177
      %v1194 = vunpack.c.l.b16 %v1178
      %v1195 = vunpack.c.l.b16 %v1179
      %v1196 = vunpack.c.l.b16 %v1180
      %v1197 = vunpack.c.l.b16 %v1181
      %v1198 = vunpack.c.l.b16 %v1182
      %v1199 = vunpack.c.l.b16 %v1183
      %v1200 = vunpack.c.l.b16 %v1184
      %v1201 = vpack.c.b16 %v1194, %v1193
      %v1202 = vpack.c.b16 %v1196, %v1195
      %v1203 = vpack.c.b16 %v1198, %v1197
      %v1204 = vpack.c.b16 %v1200, %v1199
      %v1210 = vsel %vm511, %v1176, 0
      %1212 = vmatpush.bf16.msra.mxu0 0
      %1213 = vmatpush.bf16.msra.mxu0 0
      %1214 = vmatpush.bf16.msra.mxu0 0
      %1215 = vmatpush.bf16.msra.mxu0 0
      %1216 = vmatpush.bf16.msra.mxu0 %v1204
      %1217 = vmatpush.bf16.msra.mxu0 %v1203
      %1218 = vmatpush.bf16.msra.mxu0 %v1202
      %1219 = vmatpush.bf16.msra.mxu0 %v1201
      %1220 = vmatmul.bf16.gmra.mxu0 %v1210
      %v1221 = vpop.f32.mrf.mxu0
      %v1222 = vadd.f32 0.0, %v1221
      %v1223 = vpop.f32.mrf.mxu0
      %1224 = vdwg.mxu0
      %v1225 = vadd.f32 %v1174, %v1222
      %v1226 = vld [vmem:[#allocation2 + $0x48] sm:$0xff]
      %v1227 = vpack.c.bf16 %v1226, %v1226
      %v1228 = vld [vmem:[%s2 + $0x120] sm:$0xf]
      %v1229 = vld [vmem:[%s2 + $0x124] sm:$0xf]
      %v1230 = vld [vmem:[%s2 + $0x128] sm:$0xf]
      %v1231 = vld [vmem:[%s2 + $0x12c] sm:$0xf]
      %v1232 = vld [vmem:[%s2 + $0x130] sm:$0xf]
      %v1233 = vld [vmem:[%s2 + $0x134] sm:$0xf]
      %v1234 = vld [vmem:[%s2 + $0x138] sm:$0xf]
      %v1235 = vld [vmem:[%s2 + $0x13c] sm:$0xf]
      %v1244 = vunpack.c.l.b16 %v1228
      %v1245 = vunpack.c.l.b16 %v1229
      %v1246 = vunpack.c.l.b16 %v1230
      %v1247 = vunpack.c.l.b16 %v1231
      %v1248 = vunpack.c.l.b16 %v1232
      %v1249 = vunpack.c.l.b16 %v1233
      %v1250 = vunpack.c.l.b16 %v1234
      %v1251 = vunpack.c.l.b16 %v1235
      %v1252 = vpack.c.b16 %v1245, %v1244
      %v1253 = vpack.c.b16 %v1247, %v1246
      %v1254 = vpack.c.b16 %v1249, %v1248
      %v1255 = vpack.c.b16 %v1251, %v1250
      %v1261 = vsel %vm511, %v1227, 0
      %1263 = vmatpush.bf16.msra.mxu0 0
      %1264 = vmatpush.bf16.msra.mxu0 0
      %1265 = vmatpush.bf16.msra.mxu0 0
      %1266 = vmatpush.bf16.msra.mxu0 0
      %1267 = vmatpush.bf16.msra.mxu0 %v1255
      %1268 = vmatpush.bf16.msra.mxu0 %v1254
      %1269 = vmatpush.bf16.msra.mxu0 %v1253
      %1270 = vmatpush.bf16.msra.mxu0 %v1252
      %1271 = vmatmul.bf16.gmra.mxu0 %v1261
      %v1272 = vpop.f32.mrf.mxu0
      %v1273 = vadd.f32 0.0, %v1272
      %v1274 = vpop.f32.mrf.mxu0
      %1275 = vdwg.mxu0
      %v1276 = vadd.f32 %v1225, %v1273
      %v1277 = vld [vmem:[#allocation2 + $0x50] sm:$0xff]
      %v1278 = vpack.c.bf16 %v1277, %v1277
      %v1279 = vld [vmem:[%s2 + $0x140] sm:$0xf]
      %v1280 = vld [vmem:[%s2 + $0x144] sm:$0xf]
      %v1281 = vld [vmem:[%s2 + $0x148] sm:$0xf]
      %v1282 = vld [vmem:[%s2 + $0x14c] sm:$0xf]
      %v1283 = vld [vmem:[%s2 + $0x150] sm:$0xf]
      %v1284 = vld [vmem:[%s2 + $0x154] sm:$0xf]
      %v1285 = vld [vmem:[%s2 + $0x158] sm:$0xf]
      %v1286 = vld [vmem:[%s2 + $0x15c] sm:$0xf]
      %v1295 = vunpack.c.l.b16 %v1279
      %v1296 = vunpack.c.l.b16 %v1280
      %v1297 = vunpack.c.l.b16 %v1281
      %v1298 = vunpack.c.l.b16 %v1282
      %v1299 = vunpack.c.l.b16 %v1283
      %v1300 = vunpack.c.l.b16 %v1284
      %v1301 = vunpack.c.l.b16 %v1285
      %v1302 = vunpack.c.l.b16 %v1286
      %v1303 = vpack.c.b16 %v1296, %v1295
      %v1304 = vpack.c.b16 %v1298, %v1297
      %v1305 = vpack.c.b16 %v1300, %v1299
      %v1306 = vpack.c.b16 %v1302, %v1301
      %v1312 = vsel %vm511, %v1278, 0
      %1314 = vmatpush.bf16.msra.mxu0 0
      %1315 = vmatpush.bf16.msra.mxu0 0
      %1316 = vmatpush.bf16.msra.mxu0 0
      %1317 = vmatpush.bf16.msra.mxu0 0
      %1318 = vmatpush.bf16.msra.mxu0 %v1306
      %1319 = vmatpush.bf16.msra.mxu0 %v1305
      %1320 = vmatpush.bf16.msra.mxu0 %v1304
      %1321 = vmatpush.bf16.msra.mxu0 %v1303
      %1322 = vmatmul.bf16.gmra.mxu0 %v1312
      %v1323 = vpop.f32.mrf.mxu0
      %v1324 = vadd.f32 0.0, %v1323
      %v1325 = vpop.f32.mrf.mxu0
      %1326 = vdwg.mxu0
      %v1327 = vadd.f32 %v1276, %v1324
      %v1328 = vld [vmem:[#allocation2 + $0x58] sm:$0xff]
      %v1329 = vpack.c.bf16 %v1328, %v1328
      %v1330 = vld [vmem:[%s2 + $0x160] sm:$0xf]
      %v1331 = vld [vmem:[%s2 + $0x164] sm:$0xf]
      %v1332 = vld [vmem:[%s2 + $0x168] sm:$0xf]
      %v1333 = vld [vmem:[%s2 + $0x16c] sm:$0xf]
      %v1334 = vld [vmem:[%s2 + $0x170] sm:$0xf]
      %v1335 = vld [vmem:[%s2 + $0x174] sm:$0xf]
      %v1336 = vld [vmem:[%s2 + $0x178] sm:$0xf]
      %v1337 = vld [vmem:[%s2 + $0x17c] sm:$0xf]
      %v1346 = vunpack.c.l.b16 %v1330
      %v1347 = vunpack.c.l.b16 %v1331
      %v1348 = vunpack.c.l.b16 %v1332
      %v1349 = vunpack.c.l.b16 %v1333
      %v1350 = vunpack.c.l.b16 %v1334
      %v1351 = vunpack.c.l.b16 %v1335
      %v1352 = vunpack.c.l.b16 %v1336
      %v1353 = vunpack.c.l.b16 %v1337
      %v1354 = vpack.c.b16 %v1347, %v1346
      %v1355 = vpack.c.b16 %v1349, %v1348
      %v1356 = vpack.c.b16 %v1351, %v1350
      %v1357 = vpack.c.b16 %v1353, %v1352
      %v1363 = vsel %vm511, %v1329, 0
      %1365 = vmatpush.bf16.msra.mxu0 0
      %1366 = vmatpush.bf16.msra.mxu0 0
      %1367 = vmatpush.bf16.msra.mxu0 0
      %1368 = vmatpush.bf16.msra.mxu0 0
      %1369 = vmatpush.bf16.msra.mxu0 %v1357
      %1370 = vmatpush.bf16.msra.mxu0 %v1356
      %1371 = vmatpush.bf16.msra.mxu0 %v1355
      %1372 = vmatpush.bf16.msra.mxu0 %v1354
      %1373 = vmatmul.bf16.gmra.mxu0 %v1363
      %v1374 = vpop.f32.mrf.mxu0
      %v1375 = vadd.f32 0.0, %v1374
      %v1376 = vpop.f32.mrf.mxu0
      %1377 = vdwg.mxu0
      %v1378 = vadd.f32 %v1327, %v1375
      %v1379 = vld [vmem:[#allocation2 + $0x60] sm:$0xff]
      %v1380 = vpack.c.bf16 %v1379, %v1379
      %v1381 = vld [vmem:[%s2 + $0x180] sm:$0xf]
      %v1382 = vld [vmem:[%s2 + $0x184] sm:$0xf]
      %v1383 = vld [vmem:[%s2 + $0x188] sm:$0xf]
      %v1384 = vld [vmem:[%s2 + $0x18c] sm:$0xf]
      %v1385 = vld [vmem:[%s2 + $0x190] sm:$0xf]
      %v1386 = vld [vmem:[%s2 + $0x194] sm:$0xf]
      %v1387 = vld [vmem:[%s2 + $0x198] sm:$0xf]
      %v1388 = vld [vmem:[%s2 + $0x19c] sm:$0xf]
      %v1397 = vunpack.c.l.b16 %v1381
      %v1398 = vunpack.c.l.b16 %v1382
      %v1399 = vunpack.c.l.b16 %v1383
      %v1400 = vunpack.c.l.b16 %v1384
      %v1401 = vunpack.c.l.b16 %v1385
      %v1402 = vunpack.c.l.b16 %v1386
      %v1403 = vunpack.c.l.b16 %v1387
      %v1404 = vunpack.c.l.b16 %v1388
      %v1405 = vpack.c.b16 %v1398, %v1397
      %v1406 = vpack.c.b16 %v1400, %v1399
      %v1407 = vpack.c.b16 %v1402, %v1401
      %v1408 = vpack.c.b16 %v1404, %v1403
      %v1414 = vsel %vm511, %v1380, 0
      %1416 = vmatpush.bf16.msra.mxu0 0
      %1417 = vmatpush.bf16.msra.mxu0 0
      %1418 = vmatpush.bf16.msra.mxu0 0
      %1419 = vmatpush.bf16.msra.mxu0 0
      %1420 = vmatpush.bf16.msra.mxu0 %v1408
      %1421 = vmatpush.bf16.msra.mxu0 %v1407
      %1422 = vmatpush.bf16.msra.mxu0 %v1406
      %1423 = vmatpush.bf16.msra.mxu0 %v1405
      %1424 = vmatmul.bf16.gmra.mxu0 %v1414
      %v1425 = vpop.f32.mrf.mxu0
      %v1426 = vadd.f32 0.0, %v1425
      %v1427 = vpop.f32.mrf.mxu0
      %1428 = vdwg.mxu0
      %v1429 = vadd.f32 %v1378, %v1426
      %v1430 = vld [vmem:[#allocation2 + $0x68] sm:$0xff]
      %v1431 = vpack.c.bf16 %v1430, %v1430
      %v1432 = vld [vmem:[%s2 + $0x1a0] sm:$0xf]
      %v1433 = vld [vmem:[%s2 + $0x1a4] sm:$0xf]
      %v1434 = vld [vmem:[%s2 + $0x1a8] sm:$0xf]
      %v1435 = vld [vmem:[%s2 + $0x1ac] sm:$0xf]
      %v1436 = vld [vmem:[%s2 + $0x1b0] sm:$0xf]
      %v1437 = vld [vmem:[%s2 + $0x1b4] sm:$0xf]
      %v1438 = vld [vmem:[%s2 + $0x1b8] sm:$0xf]
      %v1439 = vld [vmem:[%s2 + $0x1bc] sm:$0xf]
      %v1448 = vunpack.c.l.b16 %v1432
      %v1449 = vunpack.c.l.b16 %v1433
      %v1450 = vunpack.c.l.b16 %v1434
      %v1451 = vunpack.c.l.b16 %v1435
      %v1452 = vunpack.c.l.b16 %v1436
      %v1453 = vunpack.c.l.b16 %v1437
      %v1454 = vunpack.c.l.b16 %v1438
      %v1455 = vunpack.c.l.b16 %v1439
      %v1456 = vpack.c.b16 %v1449, %v1448
      %v1457 = vpack.c.b16 %v1451, %v1450
      %v1458 = vpack.c.b16 %v1453, %v1452
      %v1459 = vpack.c.b16 %v1455, %v1454
      %v1465 = vsel %vm511, %v1431, 0
      %1467 = vmatpush.bf16.msra.mxu0 0
      %1468 = vmatpush.bf16.msra.mxu0 0
      %1469 = vmatpush.bf16.msra.mxu0 0
      %1470 = vmatpush.bf16.msra.mxu0 0
      %1471 = vmatpush.bf16.msra.mxu0 %v1459
      %1472 = vmatpush.bf16.msra.mxu0 %v1458
      %1473 = vmatpush.bf16.msra.mxu0 %v1457
      %1474 = vmatpush.bf16.msra.mxu0 %v1456
      %1475 = vmatmul.bf16.gmra.mxu0 %v1465
      %v1476 = vpop.f32.mrf.mxu0
      %v1477 = vadd.f32 0.0, %v1476
      %v1478 = vpop.f32.mrf.mxu0
      %1479 = vdwg.mxu0
      %v1480 = vadd.f32 %v1429, %v1477
      %v1481 = vld [vmem:[#allocation2 + $0x70] sm:$0xff]
      %v1482 = vpack.c.bf16 %v1481, %v1481
      %v1483 = vld [vmem:[%s2 + $0x1c0] sm:$0xf]
      %v1484 = vld [vmem:[%s2 + $0x1c4] sm:$0xf]
      %v1485 = vld [vmem:[%s2 + $0x1c8] sm:$0xf]
      %v1486 = vld [vmem:[%s2 + $0x1cc] sm:$0xf]
      %v1487 = vld [vmem:[%s2 + $0x1d0] sm:$0xf]
      %v1488 = vld [vmem:[%s2 + $0x1d4] sm:$0xf]
      %v1489 = vld [vmem:[%s2 + $0x1d8] sm:$0xf]
      %v1490 = vld [vmem:[%s2 + $0x1dc] sm:$0xf]
      %v1499 = vunpack.c.l.b16 %v1483
      %v1500 = vunpack.c.l.b16 %v1484
      %v1501 = vunpack.c.l.b16 %v1485
      %v1502 = vunpack.c.l.b16 %v1486
      %v1503 = vunpack.c.l.b16 %v1487
      %v1504 = vunpack.c.l.b16 %v1488
      %v1505 = vunpack.c.l.b16 %v1489
      %v1506 = vunpack.c.l.b16 %v1490
      %v1507 = vpack.c.b16 %v1500, %v1499
      %v1508 = vpack.c.b16 %v1502, %v1501
      %v1509 = vpack.c.b16 %v1504, %v1503
      %v1510 = vpack.c.b16 %v1506, %v1505
      %v1516 = vsel %vm511, %v1482, 0
      %1518 = vmatpush.bf16.msra.mxu0 0
      %1519 = vmatpush.bf16.msra.mxu0 0
      %1520 = vmatpush.bf16.msra.mxu0 0
      %1521 = vmatpush.bf16.msra.mxu0 0
      %1522 = vmatpush.bf16.msra.mxu0 %v1510
      %1523 = vmatpush.bf16.msra.mxu0 %v1509
      %1524 = vmatpush.bf16.msra.mxu0 %v1508
      %1525 = vmatpush.bf16.msra.mxu0 %v1507
      %1526 = vmatmul.bf16.gmra.mxu0 %v1516
      %v1527 = vpop.f32.mrf.mxu0
      %v1528 = vadd.f32 0.0, %v1527
      %v1529 = vpop.f32.mrf.mxu0
      %1530 = vdwg.mxu0
      %v1531 = vadd.f32 %v1480, %v1528
      %v1532 = vld [vmem:[#allocation2 + $0x78] sm:$0xff]
      %v1533 = vpack.c.bf16 %v1532, %v1532
      %v1534 = vld [vmem:[%s2 + $0x1e0] sm:$0xf]
      %v1535 = vld [vmem:[%s2 + $0x1e4] sm:$0xf]
      %v1536 = vld [vmem:[%s2 + $0x1e8] sm:$0xf]
      %v1537 = vld [vmem:[%s2 + $0x1ec] sm:$0xf]
      %v1538 = vld [vmem:[%s2 + $0x1f0] sm:$0xf]
      %v1539 = vld [vmem:[%s2 + $0x1f4] sm:$0xf]
      %v1540 = vld [vmem:[%s2 + $0x1f8] sm:$0xf]
      %v1541 = vld [vmem:[%s2 + $0x1fc] sm:$0xf]
      %v1550 = vunpack.c.l.b16 %v1534
      %v1551 = vunpack.c.l.b16 %v1535
      %v1552 = vunpack.c.l.b16 %v1536
      %v1553 = vunpack.c.l.b16 %v1537
      %v1554 = vunpack.c.l.b16 %v1538
      %v1555 = vunpack.c.l.b16 %v1539
      %v1556 = vunpack.c.l.b16 %v1540
      %v1557 = vunpack.c.l.b16 %v1541
      %v1558 = vpack.c.b16 %v1551, %v1550
      %v1559 = vpack.c.b16 %v1553, %v1552
      %v1560 = vpack.c.b16 %v1555, %v1554
      %v1561 = vpack.c.b16 %v1557, %v1556
      %v1567 = vsel %vm511, %v1533, 0
      %1569 = vmatpush.bf16.msra.mxu0 0
      %1570 = vmatpush.bf16.msra.mxu0 0
      %1571 = vmatpush.bf16.msra.mxu0 0
      %1572 = vmatpush.bf16.msra.mxu0 0
      %1573 = vmatpush.bf16.msra.mxu0 %v1561
      %1574 = vmatpush.bf16.msra.mxu0 %v1560
      %1575 = vmatpush.bf16.msra.mxu0 %v1559
      %1576 = vmatpush.bf16.msra.mxu0 %v1558
      %1577 = vmatmul.bf16.gmra.mxu0 %v1567
      %v1578 = vpop.f32.mrf.mxu0
      %v1579 = vadd.f32 0.0, %v1578
      %v1580 = vpop.f32.mrf.mxu0
      %1581 = vdwg.mxu0
      %v1582 = vadd.f32 %v1531, %v1579
      %v1583 = vld [vmem:[#allocation2 + $0x80] sm:$0xff]
      %v1584 = vpack.c.bf16 %v1583, %v1583
      %v1585 = vld [vmem:[%s2 + $0x200] sm:$0xf]
      %v1586 = vld [vmem:[%s2 + $0x204] sm:$0xf]
      %v1587 = vld [vmem:[%s2 + $0x208] sm:$0xf]
      %v1588 = vld [vmem:[%s2 + $0x20c] sm:$0xf]
      %v1589 = vld [vmem:[%s2 + $0x210] sm:$0xf]
      %v1590 = vld [vmem:[%s2 + $0x214] sm:$0xf]
      %v1591 = vld [vmem:[%s2 + $0x218] sm:$0xf]
      %v1592 = vld [vmem:[%s2 + $0x21c] sm:$0xf]
      %v1601 = vunpack.c.l.b16 %v1585
      %v1602 = vunpack.c.l.b16 %v1586
      %v1603 = vunpack.c.l.b16 %v1587
      %v1604 = vunpack.c.l.b16 %v1588
      %v1605 = vunpack.c.l.b16 %v1589
      %v1606 = vunpack.c.l.b16 %v1590
      %v1607 = vunpack.c.l.b16 %v1591
      %v1608 = vunpack.c.l.b16 %v1592
      %v1609 = vpack.c.b16 %v1602, %v1601
      %v1610 = vpack.c.b16 %v1604, %v1603
      %v1611 = vpack.c.b16 %v1606, %v1605
      %v1612 = vpack.c.b16 %v1608, %v1607
      %v1618 = vsel %vm511, %v1584, 0
      %1620 = vmatpush.bf16.msra.mxu0 0
      %1621 = vmatpush.bf16.msra.mxu0 0
      %1622 = vmatpush.bf16.msra.mxu0 0
      %1623 = vmatpush.bf16.msra.mxu0 0
      %1624 = vmatpush.bf16.msra.mxu0 %v1612
      %1625 = vmatpush.bf16.msra.mxu0 %v1611
      %1626 = vmatpush.bf16.msra.mxu0 %v1610
      %1627 = vmatpush.bf16.msra.mxu0 %v1609
      %1628 = vmatmul.bf16.gmra.mxu0 %v1618
      %v1629 = vpop.f32.mrf.mxu0
      %v1630 = vadd.f32 0.0, %v1629
      %v1631 = vpop.f32.mrf.mxu0
      %1632 = vdwg.mxu0
      %v1633 = vadd.f32 %v1582, %v1630
      %v1634 = vld [vmem:[#allocation2 + $0x88] sm:$0xff]
      %v1635 = vpack.c.bf16 %v1634, %v1634
      %v1636 = vld [vmem:[%s2 + $0x220] sm:$0xf]
      %v1637 = vld [vmem:[%s2 + $0x224] sm:$0xf]
      %v1638 = vld [vmem:[%s2 + $0x228] sm:$0xf]
      %v1639 = vld [vmem:[%s2 + $0x22c] sm:$0xf]
      %v1640 = vld [vmem:[%s2 + $0x230] sm:$0xf]
      %v1641 = vld [vmem:[%s2 + $0x234] sm:$0xf]
      %v1642 = vld [vmem:[%s2 + $0x238] sm:$0xf]
      %v1643 = vld [vmem:[%s2 + $0x23c] sm:$0xf]
      %v1652 = vunpack.c.l.b16 %v1636
      %v1653 = vunpack.c.l.b16 %v1637
      %v1654 = vunpack.c.l.b16 %v1638
      %v1655 = vunpack.c.l.b16 %v1639
      %v1656 = vunpack.c.l.b16 %v1640
      %v1657 = vunpack.c.l.b16 %v1641
      %v1658 = vunpack.c.l.b16 %v1642
      %v1659 = vunpack.c.l.b16 %v1643
      %v1660 = vpack.c.b16 %v1653, %v1652
      %v1661 = vpack.c.b16 %v1655, %v1654
      %v1662 = vpack.c.b16 %v1657, %v1656
      %v1663 = vpack.c.b16 %v1659, %v1658
      %v1669 = vsel %vm511, %v1635, 0
      %1671 = vmatpush.bf16.msra.mxu0 0
      %1672 = vmatpush.bf16.msra.mxu0 0
      %1673 = vmatpush.bf16.msra.mxu0 0
      %1674 = vmatpush.bf16.msra.mxu0 0
      %1675 = vmatpush.bf16.msra.mxu0 %v1663
      %1676 = vmatpush.bf16.msra.mxu0 %v1662
      %1677 = vmatpush.bf16.msra.mxu0 %v1661
      %1678 = vmatpush.bf16.msra.mxu0 %v1660
      %1679 = vmatmul.bf16.gmra.mxu0 %v1669
      %v1680 = vpop.f32.mrf.mxu0
      %v1681 = vadd.f32 0.0, %v1680
      %v1682 = vpop.f32.mrf.mxu0
      %1683 = vdwg.mxu0
      %v1684 = vadd.f32 %v1633, %v1681
      %v1685 = vld [vmem:[#allocation2 + $0x90] sm:$0xff]
      %v1686 = vpack.c.bf16 %v1685, %v1685
      %v1687 = vld [vmem:[%s2 + $0x240] sm:$0xf]
      %v1688 = vld [vmem:[%s2 + $0x244] sm:$0xf]
      %v1689 = vld [vmem:[%s2 + $0x248] sm:$0xf]
      %v1690 = vld [vmem:[%s2 + $0x24c] sm:$0xf]
      %v1691 = vld [vmem:[%s2 + $0x250] sm:$0xf]
      %v1692 = vld [vmem:[%s2 + $0x254] sm:$0xf]
      %v1693 = vld [vmem:[%s2 + $0x258] sm:$0xf]
      %v1694 = vld [vmem:[%s2 + $0x25c] sm:$0xf]
      %v1703 = vunpack.c.l.b16 %v1687
      %v1704 = vunpack.c.l.b16 %v1688
      %v1705 = vunpack.c.l.b16 %v1689
      %v1706 = vunpack.c.l.b16 %v1690
      %v1707 = vunpack.c.l.b16 %v1691
      %v1708 = vunpack.c.l.b16 %v1692
      %v1709 = vunpack.c.l.b16 %v1693
      %v1710 = vunpack.c.l.b16 %v1694
      %v1711 = vpack.c.b16 %v1704, %v1703
      %v1712 = vpack.c.b16 %v1706, %v1705
      %v1713 = vpack.c.b16 %v1708, %v1707
      %v1714 = vpack.c.b16 %v1710, %v1709
      %v1720 = vsel %vm511, %v1686, 0
      %1722 = vmatpush.bf16.msra.mxu0 0
      %1723 = vmatpush.bf16.msra.mxu0 0
      %1724 = vmatpush.bf16.msra.mxu0 0
      %1725 = vmatpush.bf16.msra.mxu0 0
      %1726 = vmatpush.bf16.msra.mxu0 %v1714
      %1727 = vmatpush.bf16.msra.mxu0 %v1713
      %1728 = vmatpush.bf16.msra.mxu0 %v1712
      %1729 = vmatpush.bf16.msra.mxu0 %v1711
      %1730 = vmatmul.bf16.gmra.mxu0 %v1720
      %v1731 = vpop.f32.mrf.mxu0
      %v1732 = vadd.f32 0.0, %v1731
      %v1733 = vpop.f32.mrf.mxu0
      %1734 = vdwg.mxu0
      %v1735 = vadd.f32 %v1684, %v1732
      %v1736 = vld [vmem:[#allocation2 + $0x98] sm:$0xff]
      %v1737 = vpack.c.bf16 %v1736, %v1736
      %v1738 = vld [vmem:[%s2 + $0x260] sm:$0xf]
      %v1739 = vld [vmem:[%s2 + $0x264] sm:$0xf]
      %v1740 = vld [vmem:[%s2 + $0x268] sm:$0xf]
      %v1741 = vld [vmem:[%s2 + $0x26c] sm:$0xf]
      %v1742 = vld [vmem:[%s2 + $0x270] sm:$0xf]
      %v1743 = vld [vmem:[%s2 + $0x274] sm:$0xf]
      %v1744 = vld [vmem:[%s2 + $0x278] sm:$0xf]
      %v1745 = vld [vmem:[%s2 + $0x27c] sm:$0xf]
      %v1754 = vunpack.c.l.b16 %v1738
      %v1755 = vunpack.c.l.b16 %v1739
      %v1756 = vunpack.c.l.b16 %v1740
      %v1757 = vunpack.c.l.b16 %v1741
      %v1758 = vunpack.c.l.b16 %v1742
      %v1759 = vunpack.c.l.b16 %v1743
      %v1760 = vunpack.c.l.b16 %v1744
      %v1761 = vunpack.c.l.b16 %v1745
      %v1762 = vpack.c.b16 %v1755, %v1754
      %v1763 = vpack.c.b16 %v1757, %v1756
      %v1764 = vpack.c.b16 %v1759, %v1758
      %v1765 = vpack.c.b16 %v1761, %v1760
      %v1771 = vsel %vm511, %v1737, 0
      %1773 = vmatpush.bf16.msra.mxu0 0
      %1774 = vmatpush.bf16.msra.mxu0 0
      %1775 = vmatpush.bf16.msra.mxu0 0
      %1776 = vmatpush.bf16.msra.mxu0 0
      %1777 = vmatpush.bf16.msra.mxu0 %v1765
      %1778 = vmatpush.bf16.msra.mxu0 %v1764
      %1779 = vmatpush.bf16.msra.mxu0 %v1763
      %1780 = vmatpush.bf16.msra.mxu0 %v1762
      %1781 = vmatmul.bf16.gmra.mxu0 %v1771
      %v1782 = vpop.f32.mrf.mxu0
      %v1783 = vadd.f32 0.0, %v1782
      %v1784 = vpop.f32.mrf.mxu0
      %1785 = vdwg.mxu0
      %v1786 = vadd.f32 %v1735, %v1783
      %v1787 = vld [vmem:[#allocation2 + $0xa0] sm:$0xff]
      %v1788 = vpack.c.bf16 %v1787, %v1787
      %v1789 = vld [vmem:[%s2 + $0x280] sm:$0xf]
      %v1790 = vld [vmem:[%s2 + $0x284] sm:$0xf]
      %v1791 = vld [vmem:[%s2 + $0x288] sm:$0xf]
      %v1792 = vld [vmem:[%s2 + $0x28c] sm:$0xf]
      %v1793 = vld [vmem:[%s2 + $0x290] sm:$0xf]
      %v1794 = vld [vmem:[%s2 + $0x294] sm:$0xf]
      %v1795 = vld [vmem:[%s2 + $0x298] sm:$0xf]
      %v1796 = vld [vmem:[%s2 + $0x29c] sm:$0xf]
      %v1805 = vunpack.c.l.b16 %v1789
      %v1806 = vunpack.c.l.b16 %v1790
      %v1807 = vunpack.c.l.b16 %v1791
      %v1808 = vunpack.c.l.b16 %v1792
      %v1809 = vunpack.c.l.b16 %v1793
      %v1810 = vunpack.c.l.b16 %v1794
      %v1811 = vunpack.c.l.b16 %v1795
      %v1812 = vunpack.c.l.b16 %v1796
      %v1813 = vpack.c.b16 %v1806, %v1805
      %v1814 = vpack.c.b16 %v1808, %v1807
      %v1815 = vpack.c.b16 %v1810, %v1809
      %v1816 = vpack.c.b16 %v1812, %v1811
      %v1822 = vsel %vm511, %v1788, 0
      %1824 = vmatpush.bf16.msra.mxu0 0
      %1825 = vmatpush.bf16.msra.mxu0 0
      %1826 = vmatpush.bf16.msra.mxu0 0
      %1827 = vmatpush.bf16.msra.mxu0 0
      %1828 = vmatpush.bf16.msra.mxu0 %v1816
      %1829 = vmatpush.bf16.msra.mxu0 %v1815
      %1830 = vmatpush.bf16.msra.mxu0 %v1814
      %1831 = vmatpush.bf16.msra.mxu0 %v1813
      %1832 = vmatmul.bf16.gmra.mxu0 %v1822
      %v1833 = vpop.f32.mrf.mxu0
      %v1834 = vadd.f32 0.0, %v1833
      %v1835 = vpop.f32.mrf.mxu0
      %1836 = vdwg.mxu0
      %v1837 = vadd.f32 %v1786, %v1834
      %v1838 = vld [vmem:[#allocation2 + $0xa8] sm:$0xff]
      %v1839 = vpack.c.bf16 %v1838, %v1838
      %v1840 = vld [vmem:[%s2 + $0x2a0] sm:$0xf]
      %v1841 = vld [vmem:[%s2 + $0x2a4] sm:$0xf]
      %v1842 = vld [vmem:[%s2 + $0x2a8] sm:$0xf]
      %v1843 = vld [vmem:[%s2 + $0x2ac] sm:$0xf]
      %v1844 = vld [vmem:[%s2 + $0x2b0] sm:$0xf]
      %v1845 = vld [vmem:[%s2 + $0x2b4] sm:$0xf]
      %v1846 = vld [vmem:[%s2 + $0x2b8] sm:$0xf]
      %v1847 = vld [vmem:[%s2 + $0x2bc] sm:$0xf]
      %v1856 = vunpack.c.l.b16 %v1840
      %v1857 = vunpack.c.l.b16 %v1841
      %v1858 = vunpack.c.l.b16 %v1842
      %v1859 = vunpack.c.l.b16 %v1843
      %v1860 = vunpack.c.l.b16 %v1844
      %v1861 = vunpack.c.l.b16 %v1845
      %v1862 = vunpack.c.l.b16 %v1846
      %v1863 = vunpack.c.l.b16 %v1847
      %v1864 = vpack.c.b16 %v1857, %v1856
      %v1865 = vpack.c.b16 %v1859, %v1858
      %v1866 = vpack.c.b16 %v1861, %v1860
      %v1867 = vpack.c.b16 %v1863, %v1862
      %v1873 = vsel %vm511, %v1839, 0
      %1875 = vmatpush.bf16.msra.mxu0 0
      %1876 = vmatpush.bf16.msra.mxu0 0
      %1877 = vmatpush.bf16.msra.mxu0 0
      %1878 = vmatpush.bf16.msra.mxu0 0
      %1879 = vmatpush.bf16.msra.mxu0 %v1867
      %1880 = vmatpush.bf16.msra.mxu0 %v1866
      %1881 = vmatpush.bf16.msra.mxu0 %v1865
      %1882 = vmatpush.bf16.msra.mxu0 %v1864
      %1883 = vmatmul.bf16.gmra.mxu0 %v1873
      %v1884 = vpop.f32.mrf.mxu0
      %v1885 = vadd.f32 0.0, %v1884
      %v1886 = vpop.f32.mrf.mxu0
      %1887 = vdwg.mxu0
      %v1888 = vadd.f32 %v1837, %v1885
      %v1889 = vld [vmem:[#allocation2 + $0xb0] sm:$0xff]
      %v1890 = vpack.c.bf16 %v1889, %v1889
      %v1891 = vld [vmem:[%s2 + $0x2c0] sm:$0xf]
      %v1892 = vld [vmem:[%s2 + $0x2c4] sm:$0xf]
      %v1893 = vld [vmem:[%s2 + $0x2c8] sm:$0xf]
      %v1894 = vld [vmem:[%s2 + $0x2cc] sm:$0xf]
      %v1895 = vld [vmem:[%s2 + $0x2d0] sm:$0xf]
      %v1896 = vld [vmem:[%s2 + $0x2d4] sm:$0xf]
      %v1897 = vld [vmem:[%s2 + $0x2d8] sm:$0xf]
      %v1898 = vld [vmem:[%s2 + $0x2dc] sm:$0xf]
      %v1907 = vunpack.c.l.b16 %v1891
      %v1908 = vunpack.c.l.b16 %v1892
      %v1909 = vunpack.c.l.b16 %v1893
      %v1910 = vunpack.c.l.b16 %v1894
      %v1911 = vunpack.c.l.b16 %v1895
      %v1912 = vunpack.c.l.b16 %v1896
      %v1913 = vunpack.c.l.b16 %v1897
      %v1914 = vunpack.c.l.b16 %v1898
      %v1915 = vpack.c.b16 %v1908, %v1907
      %v1916 = vpack.c.b16 %v1910, %v1909
      %v1917 = vpack.c.b16 %v1912, %v1911
      %v1918 = vpack.c.b16 %v1914, %v1913
      %v1924 = vsel %vm511, %v1890, 0
      %1926 = vmatpush.bf16.msra.mxu0 0
      %1927 = vmatpush.bf16.msra.mxu0 0
      %1928 = vmatpush.bf16.msra.mxu0 0
      %1929 = vmatpush.bf16.msra.mxu0 0
      %1930 = vmatpush.bf16.msra.mxu0 %v1918
      %1931 = vmatpush.bf16.msra.mxu0 %v1917
      %1932 = vmatpush.bf16.msra.mxu0 %v1916
      %1933 = vmatpush.bf16.msra.mxu0 %v1915
      %1934 = vmatmul.bf16.gmra.mxu0 %v1924
      %v1935 = vpop.f32.mrf.mxu0
      %v1936 = vadd.f32 0.0, %v1935
      %v1937 = vpop.f32.mrf.mxu0
      %1938 = vdwg.mxu0
      %v1939 = vadd.f32 %v1888, %v1936
      %v1940 = vld [vmem:[#allocation2 + $0xb8] sm:$0xff]
      %v1941 = vpack.c.bf16 %v1940, %v1940
      %v1942 = vld [vmem:[%s2 + $0x2e0] sm:$0xf]
      %v1943 = vld [vmem:[%s2 + $0x2e4] sm:$0xf]
      %v1944 = vld [vmem:[%s2 + $0x2e8] sm:$0xf]
      %v1945 = vld [vmem:[%s2 + $0x2ec] sm:$0xf]
      %v1946 = vld [vmem:[%s2 + $0x2f0] sm:$0xf]
      %v1947 = vld [vmem:[%s2 + $0x2f4] sm:$0xf]
      %v1948 = vld [vmem:[%s2 + $0x2f8] sm:$0xf]
      %v1949 = vld [vmem:[%s2 + $0x2fc] sm:$0xf]
      %v1958 = vunpack.c.l.b16 %v1942
      %v1959 = vunpack.c.l.b16 %v1943
      %v1960 = vunpack.c.l.b16 %v1944
      %v1961 = vunpack.c.l.b16 %v1945
      %v1962 = vunpack.c.l.b16 %v1946
      %v1963 = vunpack.c.l.b16 %v1947
      %v1964 = vunpack.c.l.b16 %v1948
      %v1965 = vunpack.c.l.b16 %v1949
      %v1966 = vpack.c.b16 %v1959, %v1958
      %v1967 = vpack.c.b16 %v1961, %v1960
      %v1968 = vpack.c.b16 %v1963, %v1962
      %v1969 = vpack.c.b16 %v1965, %v1964
      %v1975 = vsel %vm511, %v1941, 0
      %1977 = vmatpush.bf16.msra.mxu0 0
      %1978 = vmatpush.bf16.msra.mxu0 0
      %1979 = vmatpush.bf16.msra.mxu0 0
      %1980 = vmatpush.bf16.msra.mxu0 0
      %1981 = vmatpush.bf16.msra.mxu0 %v1969
      %1982 = vmatpush.bf16.msra.mxu0 %v1968
      %1983 = vmatpush.bf16.msra.mxu0 %v1967
      %1984 = vmatpush.bf16.msra.mxu0 %v1966
      %1985 = vmatmul.bf16.gmra.mxu0 %v1975
      %v1986 = vpop.f32.mrf.mxu0
      %v1987 = vadd.f32 0.0, %v1986
      %v1988 = vpop.f32.mrf.mxu0
      %1989 = vdwg.mxu0
      %v1990 = vadd.f32 %v1939, %v1987
      %v1991 = vld [vmem:[#allocation2 + $0xc0] sm:$0xff]
      %v1992 = vpack.c.bf16 %v1991, %v1991
      %v1993 = vld [vmem:[%s2 + $0x300] sm:$0xf]
      %v1994 = vld [vmem:[%s2 + $0x304] sm:$0xf]
      %v1995 = vld [vmem:[%s2 + $0x308] sm:$0xf]
      %v1996 = vld [vmem:[%s2 + $0x30c] sm:$0xf]
      %v1997 = vld [vmem:[%s2 + $0x310] sm:$0xf]
      %v1998 = vld [vmem:[%s2 + $0x314] sm:$0xf]
      %v1999 = vld [vmem:[%s2 + $0x318] sm:$0xf]
      %v2000 = vld [vmem:[%s2 + $0x31c] sm:$0xf]
      %v2009 = vunpack.c.l.b16 %v1993
      %v2010 = vunpack.c.l.b16 %v1994
      %v2011 = vunpack.c.l.b16 %v1995
      %v2012 = vunpack.c.l.b16 %v1996
      %v2013 = vunpack.c.l.b16 %v1997
      %v2014 = vunpack.c.l.b16 %v1998
      %v2015 = vunpack.c.l.b16 %v1999
      %v2016 = vunpack.c.l.b16 %v2000
      %v2017 = vpack.c.b16 %v2010, %v2009
      %v2018 = vpack.c.b16 %v2012, %v2011
      %v2019 = vpack.c.b16 %v2014, %v2013
      %v2020 = vpack.c.b16 %v2016, %v2015
      %v2026 = vsel %vm511, %v1992, 0
      %2028 = vmatpush.bf16.msra.mxu0 0
      %2029 = vmatpush.bf16.msra.mxu0 0
      %2030 = vmatpush.bf16.msra.mxu0 0
      %2031 = vmatpush.bf16.msra.mxu0 0
      %2032 = vmatpush.bf16.msra.mxu0 %v2020
      %2033 = vmatpush.bf16.msra.mxu0 %v2019
      %2034 = vmatpush.bf16.msra.mxu0 %v2018
      %2035 = vmatpush.bf16.msra.mxu0 %v2017
      %2036 = vmatmul.bf16.gmra.mxu0 %v2026
      %v2037 = vpop.f32.mrf.mxu0
      %v2038 = vadd.f32 0.0, %v2037
      %v2039 = vpop.f32.mrf.mxu0
      %2040 = vdwg.mxu0
      %v2041 = vadd.f32 %v1990, %v2038
      %v2042 = vld [vmem:[#allocation2 + $0xc8] sm:$0xff]
      %v2043 = vpack.c.bf16 %v2042, %v2042
      %v2044 = vld [vmem:[%s2 + $0x320] sm:$0xf]
      %v2045 = vld [vmem:[%s2 + $0x324] sm:$0xf]
      %v2046 = vld [vmem:[%s2 + $0x328] sm:$0xf]
      %v2047 = vld [vmem:[%s2 + $0x32c] sm:$0xf]
      %v2048 = vld [vmem:[%s2 + $0x330] sm:$0xf]
      %v2049 = vld [vmem:[%s2 + $0x334] sm:$0xf]
      %v2050 = vld [vmem:[%s2 + $0x338] sm:$0xf]
      %v2051 = vld [vmem:[%s2 + $0x33c] sm:$0xf]
      %v2060 = vunpack.c.l.b16 %v2044
      %v2061 = vunpack.c.l.b16 %v2045
      %v2062 = vunpack.c.l.b16 %v2046
      %v2063 = vunpack.c.l.b16 %v2047
      %v2064 = vunpack.c.l.b16 %v2048
      %v2065 = vunpack.c.l.b16 %v2049
      %v2066 = vunpack.c.l.b16 %v2050
      %v2067 = vunpack.c.l.b16 %v2051
      %v2068 = vpack.c.b16 %v2061, %v2060
      %v2069 = vpack.c.b16 %v2063, %v2062
      %v2070 = vpack.c.b16 %v2065, %v2064
      %v2071 = vpack.c.b16 %v2067, %v2066
      %v2077 = vsel %vm511, %v2043, 0
      %2079 = vmatpush.bf16.msra.mxu0 0
      %2080 = vmatpush.bf16.msra.mxu0 0
      %2081 = vmatpush.bf16.msra.mxu0 0
      %2082 = vmatpush.bf16.msra.mxu0 0
      %2083 = vmatpush.bf16.msra.mxu0 %v2071
      %2084 = vmatpush.bf16.msra.mxu0 %v2070
      %2085 = vmatpush.bf16.msra.mxu0 %v2069
      %2086 = vmatpush.bf16.msra.mxu0 %v2068
      %2087 = vmatmul.bf16.gmra.mxu0 %v2077
      %v2088 = vpop.f32.mrf.mxu0
      %v2089 = vadd.f32 0.0, %v2088
      %v2090 = vpop.f32.mrf.mxu0
      %2091 = vdwg.mxu0
      %v2092 = vadd.f32 %v2041, %v2089
      %v2093 = vld [vmem:[#allocation2 + $0xd0] sm:$0xff]
      %v2094 = vpack.c.bf16 %v2093, %v2093
      %v2095 = vld [vmem:[%s2 + $0x340] sm:$0xf]
      %v2096 = vld [vmem:[%s2 + $0x344] sm:$0xf]
      %v2097 = vld [vmem:[%s2 + $0x348] sm:$0xf]
      %v2098 = vld [vmem:[%s2 + $0x34c] sm:$0xf]
      %v2099 = vld [vmem:[%s2 + $0x350] sm:$0xf]
      %v2100 = vld [vmem:[%s2 + $0x354] sm:$0xf]
      %v2101 = vld [vmem:[%s2 + $0x358] sm:$0xf]
      %v2102 = vld [vmem:[%s2 + $0x35c] sm:$0xf]
      %v2111 = vunpack.c.l.b16 %v2095
      %v2112 = vunpack.c.l.b16 %v2096
      %v2113 = vunpack.c.l.b16 %v2097
      %v2114 = vunpack.c.l.b16 %v2098
      %v2115 = vunpack.c.l.b16 %v2099
      %v2116 = vunpack.c.l.b16 %v2100
      %v2117 = vunpack.c.l.b16 %v2101
      %v2118 = vunpack.c.l.b16 %v2102
      %v2119 = vpack.c.b16 %v2112, %v2111
      %v2120 = vpack.c.b16 %v2114, %v2113
      %v2121 = vpack.c.b16 %v2116, %v2115
      %v2122 = vpack.c.b16 %v2118, %v2117
      %v2128 = vsel %vm511, %v2094, 0
      %2130 = vmatpush.bf16.msra.mxu0 0
      %2131 = vmatpush.bf16.msra.mxu0 0
      %2132 = vmatpush.bf16.msra.mxu0 0
      %2133 = vmatpush.bf16.msra.mxu0 0
      %2134 = vmatpush.bf16.msra.mxu0 %v2122
      %2135 = vmatpush.bf16.msra.mxu0 %v2121
      %2136 = vmatpush.bf16.msra.mxu0 %v2120
      %2137 = vmatpush.bf16.msra.mxu0 %v2119
      %2138 = vmatmul.bf16.gmra.mxu0 %v2128
      %v2139 = vpop.f32.mrf.mxu0
      %v2140 = vadd.f32 0.0, %v2139
      %v2141 = vpop.f32.mrf.mxu0
      %2142 = vdwg.mxu0
      %v2143 = vadd.f32 %v2092, %v2140
      %v2144 = vld [vmem:[#allocation2 + $0xd8] sm:$0xff]
      %v2145 = vpack.c.bf16 %v2144, %v2144
      %v2146 = vld [vmem:[%s2 + $0x360] sm:$0xf]
      %v2147 = vld [vmem:[%s2 + $0x364] sm:$0xf]
      %v2148 = vld [vmem:[%s2 + $0x368] sm:$0xf]
      %v2149 = vld [vmem:[%s2 + $0x36c] sm:$0xf]
      %v2150 = vld [vmem:[%s2 + $0x370] sm:$0xf]
      %v2151 = vld [vmem:[%s2 + $0x374] sm:$0xf]
      %v2152 = vld [vmem:[%s2 + $0x378] sm:$0xf]
      %v2153 = vld [vmem:[%s2 + $0x37c] sm:$0xf]
      %v2162 = vunpack.c.l.b16 %v2146
      %v2163 = vunpack.c.l.b16 %v2147
      %v2164 = vunpack.c.l.b16 %v2148
      %v2165 = vunpack.c.l.b16 %v2149
      %v2166 = vunpack.c.l.b16 %v2150
      %v2167 = vunpack.c.l.b16 %v2151
      %v2168 = vunpack.c.l.b16 %v2152
      %v2169 = vunpack.c.l.b16 %v2153
      %v2170 = vpack.c.b16 %v2163, %v2162
      %v2171 = vpack.c.b16 %v2165, %v2164
      %v2172 = vpack.c.b16 %v2167, %v2166
      %v2173 = vpack.c.b16 %v2169, %v2168
      %v2179 = vsel %vm511, %v2145, 0
      %2181 = vmatpush.bf16.msra.mxu0 0
      %2182 = vmatpush.bf16.msra.mxu0 0
      %2183 = vmatpush.bf16.msra.mxu0 0
      %2184 = vmatpush.bf16.msra.mxu0 0
      %2185 = vmatpush.bf16.msra.mxu0 %v2173
      %2186 = vmatpush.bf16.msra.mxu0 %v2172
      %2187 = vmatpush.bf16.msra.mxu0 %v2171
      %2188 = vmatpush.bf16.msra.mxu0 %v2170
      %2189 = vmatmul.bf16.gmra.mxu0 %v2179
      %v2190 = vpop.f32.mrf.mxu0
      %v2191 = vadd.f32 0.0, %v2190
      %v2192 = vpop.f32.mrf.mxu0
      %2193 = vdwg.mxu0
      %v2194 = vadd.f32 %v2143, %v2191
      %v2195 = vld [vmem:[#allocation2 + $0xe0] sm:$0xff]
      %v2196 = vpack.c.bf16 %v2195, %v2195
      %v2197 = vld [vmem:[%s2 + $0x380] sm:$0xf]
      %v2198 = vld [vmem:[%s2 + $0x384] sm:$0xf]
      %v2199 = vld [vmem:[%s2 + $0x388] sm:$0xf]
      %v2200 = vld [vmem:[%s2 + $0x38c] sm:$0xf]
      %v2201 = vld [vmem:[%s2 + $0x390] sm:$0xf]
      %v2202 = vld [vmem:[%s2 + $0x394] sm:$0xf]
      %v2203 = vld [vmem:[%s2 + $0x398] sm:$0xf]
      %v2204 = vld [vmem:[%s2 + $0x39c] sm:$0xf]
      %v2213 = vunpack.c.l.b16 %v2197
      %v2214 = vunpack.c.l.b16 %v2198
      %v2215 = vunpack.c.l.b16 %v2199
      %v2216 = vunpack.c.l.b16 %v2200
      %v2217 = vunpack.c.l.b16 %v2201
      %v2218 = vunpack.c.l.b16 %v2202
      %v2219 = vunpack.c.l.b16 %v2203
      %v2220 = vunpack.c.l.b16 %v2204
      %v2221 = vpack.c.b16 %v2214, %v2213
      %v2222 = vpack.c.b16 %v2216, %v2215
      %v2223 = vpack.c.b16 %v2218, %v2217
      %v2224 = vpack.c.b16 %v2220, %v2219
      %v2230 = vsel %vm511, %v2196, 0
      %2232 = vmatpush.bf16.msra.mxu0 0
      %2233 = vmatpush.bf16.msra.mxu0 0
      %2234 = vmatpush.bf16.msra.mxu0 0
      %2235 = vmatpush.bf16.msra.mxu0 0
      %2236 = vmatpush.bf16.msra.mxu0 %v2224
      %2237 = vmatpush.bf16.msra.mxu0 %v2223
      %2238 = vmatpush.bf16.msra.mxu0 %v2222
      %2239 = vmatpush.bf16.msra.mxu0 %v2221
      %2240 = vmatmul.bf16.gmra.mxu0 %v2230
      %v2241 = vpop.f32.mrf.mxu0
      %v2242 = vadd.f32 0.0, %v2241
      %v2243 = vpop.f32.mrf.mxu0
      %2244 = vdwg.mxu0
      %v2245 = vadd.f32 %v2194, %v2242
      %v2246 = vld [vmem:[#allocation2 + $0xe8] sm:$0xff]
      %v2247 = vpack.c.bf16 %v2246, %v2246
      %v2248 = vld [vmem:[%s2 + $0x3a0] sm:$0xf]
      %v2249 = vld [vmem:[%s2 + $0x3a4] sm:$0xf]
      %v2250 = vld [vmem:[%s2 + $0x3a8] sm:$0xf]
      %v2251 = vld [vmem:[%s2 + $0x3ac] sm:$0xf]
      %v2252 = vld [vmem:[%s2 + $0x3b0] sm:$0xf]
      %v2253 = vld [vmem:[%s2 + $0x3b4] sm:$0xf]
      %v2254 = vld [vmem:[%s2 + $0x3b8] sm:$0xf]
      %v2255 = vld [vmem:[%s2 + $0x3bc] sm:$0xf]
      %v2264 = vunpack.c.l.b16 %v2248
      %v2265 = vunpack.c.l.b16 %v2249
      %v2266 = vunpack.c.l.b16 %v2250
      %v2267 = vunpack.c.l.b16 %v2251
      %v2268 = vunpack.c.l.b16 %v2252
      %v2269 = vunpack.c.l.b16 %v2253
      %v2270 = vunpack.c.l.b16 %v2254
      %v2271 = vunpack.c.l.b16 %v2255
      %v2272 = vpack.c.b16 %v2265, %v2264
      %v2273 = vpack.c.b16 %v2267, %v2266
      %v2274 = vpack.c.b16 %v2269, %v2268
      %v2275 = vpack.c.b16 %v2271, %v2270
      %v2281 = vsel %vm511, %v2247, 0
      %2283 = vmatpush.bf16.msra.mxu0 0
      %2284 = vmatpush.bf16.msra.mxu0 0
      %2285 = vmatpush.bf16.msra.mxu0 0
      %2286 = vmatpush.bf16.msra.mxu0 0
      %2287 = vmatpush.bf16.msra.mxu0 %v2275
      %2288 = vmatpush.bf16.msra.mxu0 %v2274
      %2289 = vmatpush.bf16.msra.mxu0 %v2273
      %2290 = vmatpush.bf16.msra.mxu0 %v2272
      %2291 = vmatmul.bf16.gmra.mxu0 %v2281
      %v2292 = vpop.f32.mrf.mxu0
      %v2293 = vadd.f32 0.0, %v2292
      %v2294 = vpop.f32.mrf.mxu0
      %2295 = vdwg.mxu0
      %v2296 = vadd.f32 %v2245, %v2293
      %v2297 = vld [vmem:[#allocation2 + $0xf0] sm:$0xff]
      %v2298 = vpack.c.bf16 %v2297, %v2297
      %v2299 = vld [vmem:[%s2 + $0x3c0] sm:$0xf]
      %v2300 = vld [vmem:[%s2 + $0x3c4] sm:$0xf]
      %v2301 = vld [vmem:[%s2 + $0x3c8] sm:$0xf]
      %v2302 = vld [vmem:[%s2 + $0x3cc] sm:$0xf]
      %v2303 = vld [vmem:[%s2 + $0x3d0] sm:$0xf]
      %v2304 = vld [vmem:[%s2 + $0x3d4] sm:$0xf]
      %v2305 = vld [vmem:[%s2 + $0x3d8] sm:$0xf]
      %v2306 = vld [vmem:[%s2 + $0x3dc] sm:$0xf]
      %v2315 = vunpack.c.l.b16 %v2299
      %v2316 = vunpack.c.l.b16 %v2300
      %v2317 = vunpack.c.l.b16 %v2301
      %v2318 = vunpack.c.l.b16 %v2302
      %v2319 = vunpack.c.l.b16 %v2303
      %v2320 = vunpack.c.l.b16 %v2304
      %v2321 = vunpack.c.l.b16 %v2305
      %v2322 = vunpack.c.l.b16 %v2306
      %v2323 = vpack.c.b16 %v2316, %v2315
      %v2324 = vpack.c.b16 %v2318, %v2317
      %v2325 = vpack.c.b16 %v2320, %v2319
      %v2326 = vpack.c.b16 %v2322, %v2321
      %v2332 = vsel %vm511, %v2298, 0
      %2334 = vmatpush.bf16.msra.mxu0 0
      %2335 = vmatpush.bf16.msra.mxu0 0
      %2336 = vmatpush.bf16.msra.mxu0 0
      %2337 = vmatpush.bf16.msra.mxu0 0
      %2338 = vmatpush.bf16.msra.mxu0 %v2326
      %2339 = vmatpush.bf16.msra.mxu0 %v2325
      %2340 = vmatpush.bf16.msra.mxu0 %v2324
      %2341 = vmatpush.bf16.msra.mxu0 %v2323
      %2342 = vmatmul.bf16.gmra.mxu0 %v2332
      %v2343 = vpop.f32.mrf.mxu0
      %v2344 = vadd.f32 0.0, %v2343
      %v2345 = vpop.f32.mrf.mxu0
      %2346 = vdwg.mxu0
      %v2347 = vadd.f32 %v2296, %v2344
      %v2348 = vld [vmem:[#allocation2 + $0xf8] sm:$0xff]
      %v2349 = vpack.c.bf16 %v2348, %v2348
      %v2350 = vld [vmem:[%s2 + $0x3e0] sm:$0xf]
      %v2351 = vld [vmem:[%s2 + $0x3e4] sm:$0xf]
      %v2352 = vld [vmem:[%s2 + $0x3e8] sm:$0xf]
      %v2353 = vld [vmem:[%s2 + $0x3ec] sm:$0xf]
      %v2354 = vld [vmem:[%s2 + $0x3f0] sm:$0xf]
      %v2355 = vld [vmem:[%s2 + $0x3f4] sm:$0xf]
      %v2356 = vld [vmem:[%s2 + $0x3f8] sm:$0xf]
      %v2357 = vld [vmem:[%s2 + $0x3fc] sm:$0xf]
      %v2366 = vunpack.c.l.b16 %v2350
      %v2367 = vunpack.c.l.b16 %v2351
      %v2368 = vunpack.c.l.b16 %v2352
      %v2369 = vunpack.c.l.b16 %v2353
      %v2370 = vunpack.c.l.b16 %v2354
      %v2371 = vunpack.c.l.b16 %v2355
      %v2372 = vunpack.c.l.b16 %v2356
      %v2373 = vunpack.c.l.b16 %v2357
      %v2374 = vpack.c.b16 %v2367, %v2366
      %v2375 = vpack.c.b16 %v2369, %v2368
      %v2376 = vpack.c.b16 %v2371, %v2370
      %v2377 = vpack.c.b16 %v2373, %v2372
      %v2383 = vsel %vm511, %v2349, 0
      %2385 = vmatpush.bf16.msra.mxu0 0
      %2386 = vmatpush.bf16.msra.mxu0 0
      %2387 = vmatpush.bf16.msra.mxu0 0
      %2388 = vmatpush.bf16.msra.mxu0 0
      %2389 = vmatpush.bf16.msra.mxu0 %v2377
      %2390 = vmatpush.bf16.msra.mxu0 %v2376
      %2391 = vmatpush.bf16.msra.mxu0 %v2375
      %2392 = vmatpush.bf16.msra.mxu0 %v2374
      %2393 = vmatmul.bf16.gmra.mxu0 %v2383
      %v2394 = vpop.f32.mrf.mxu0
      %v2395 = vadd.f32 0.0, %v2394
      %v2396 = vpop.f32.mrf.mxu0
      %2397 = vdwg.mxu0
      %v2398 = vadd.f32 %v2347, %v2395
      %v2399 = vld [vmem:[#allocation2 + $0x100] sm:$0xff]
      %v2400 = vpack.c.bf16 %v2399, %v2399
      %v2401 = vld [vmem:[%s2 + $0x400] sm:$0xf]
      %v2402 = vld [vmem:[%s2 + $0x404] sm:$0xf]
      %v2403 = vld [vmem:[%s2 + $0x408] sm:$0xf]
      %v2404 = vld [vmem:[%s2 + $0x40c] sm:$0xf]
      %v2405 = vld [vmem:[%s2 + $0x410] sm:$0xf]
      %v2406 = vld [vmem:[%s2 + $0x414] sm:$0xf]
      %v2407 = vld [vmem:[%s2 + $0x418] sm:$0xf]
      %v2408 = vld [vmem:[%s2 + $0x41c] sm:$0xf]
      %v2417 = vunpack.c.l.b16 %v2401
      %v2418 = vunpack.c.l.b16 %v2402
      %v2419 = vunpack.c.l.b16 %v2403
      %v2420 = vunpack.c.l.b16 %v2404
      %v2421 = vunpack.c.l.b16 %v2405
      %v2422 = vunpack.c.l.b16 %v2406
      %v2423 = vunpack.c.l.b16 %v2407
      %v2424 = vunpack.c.l.b16 %v2408
      %v2425 = vpack.c.b16 %v2418, %v2417
      %v2426 = vpack.c.b16 %v2420, %v2419
      %v2427 = vpack.c.b16 %v2422, %v2421
      %v2428 = vpack.c.b16 %v2424, %v2423
      %v2434 = vsel %vm511, %v2400, 0
      %2436 = vmatpush.bf16.msra.mxu0 0
      %2437 = vmatpush.bf16.msra.mxu0 0
      %2438 = vmatpush.bf16.msra.mxu0 0
      %2439 = vmatpush.bf16.msra.mxu0 0
      %2440 = vmatpush.bf16.msra.mxu0 %v2428
      %2441 = vmatpush.bf16.msra.mxu0 %v2427
      %2442 = vmatpush.bf16.msra.mxu0 %v2426
      %2443 = vmatpush.bf16.msra.mxu0 %v2425
      %2444 = vmatmul.bf16.gmra.mxu0 %v2434
      %v2445 = vpop.f32.mrf.mxu0
      %v2446 = vadd.f32 0.0, %v2445
      %v2447 = vpop.f32.mrf.mxu0
      %2448 = vdwg.mxu0
      %v2449 = vadd.f32 %v2398, %v2446
      %v2450 = vld [vmem:[#allocation2 + $0x108] sm:$0xff]
      %v2451 = vpack.c.bf16 %v2450, %v2450
      %v2452 = vld [vmem:[%s2 + $0x420] sm:$0xf]
      %v2453 = vld [vmem:[%s2 + $0x424] sm:$0xf]
      %v2454 = vld [vmem:[%s2 + $0x428] sm:$0xf]
      %v2455 = vld [vmem:[%s2 + $0x42c] sm:$0xf]
      %v2456 = vld [vmem:[%s2 + $0x430] sm:$0xf]
      %v2457 = vld [vmem:[%s2 + $0x434] sm:$0xf]
      %v2458 = vld [vmem:[%s2 + $0x438] sm:$0xf]
      %v2459 = vld [vmem:[%s2 + $0x43c] sm:$0xf]
      %v2468 = vunpack.c.l.b16 %v2452
      %v2469 = vunpack.c.l.b16 %v2453
      %v2470 = vunpack.c.l.b16 %v2454
      %v2471 = vunpack.c.l.b16 %v2455
      %v2472 = vunpack.c.l.b16 %v2456
      %v2473 = vunpack.c.l.b16 %v2457
      %v2474 = vunpack.c.l.b16 %v2458
      %v2475 = vunpack.c.l.b16 %v2459
      %v2476 = vpack.c.b16 %v2469, %v2468
      %v2477 = vpack.c.b16 %v2471, %v2470
      %v2478 = vpack.c.b16 %v2473, %v2472
      %v2479 = vpack.c.b16 %v2475, %v2474
      %v2485 = vsel %vm511, %v2451, 0
      %2487 = vmatpush.bf16.msra.mxu0 0
      %2488 = vmatpush.bf16.msra.mxu0 0
      %2489 = vmatpush.bf16.msra.mxu0 0
      %2490 = vmatpush.bf16.msra.mxu0 0
      %2491 = vmatpush.bf16.msra.mxu0 %v2479
      %2492 = vmatpush.bf16.msra.mxu0 %v2478
      %2493 = vmatpush.bf16.msra.mxu0 %v2477
      %2494 = vmatpush.bf16.msra.mxu0 %v2476
      %2495 = vmatmul.bf16.gmra.mxu0 %v2485
      %v2496 = vpop.f32.mrf.mxu0
      %v2497 = vadd.f32 0.0, %v2496
      %v2498 = vpop.f32.mrf.mxu0
      %2499 = vdwg.mxu0
      %v2500 = vadd.f32 %v2449, %v2497
      %v2501 = vld [vmem:[#allocation2 + $0x110] sm:$0xff]
      %v2502 = vpack.c.bf16 %v2501, %v2501
      %v2503 = vld [vmem:[%s2 + $0x440] sm:$0xf]
      %v2504 = vld [vmem:[%s2 + $0x444] sm:$0xf]
      %v2505 = vld [vmem:[%s2 + $0x448] sm:$0xf]
      %v2506 = vld [vmem:[%s2 + $0x44c] sm:$0xf]
      %v2507 = vld [vmem:[%s2 + $0x450] sm:$0xf]
      %v2508 = vld [vmem:[%s2 + $0x454] sm:$0xf]
      %v2509 = vld [vmem:[%s2 + $0x458] sm:$0xf]
      %v2510 = vld [vmem:[%s2 + $0x45c] sm:$0xf]
      %v2519 = vunpack.c.l.b16 %v2503
      %v2520 = vunpack.c.l.b16 %v2504
      %v2521 = vunpack.c.l.b16 %v2505
      %v2522 = vunpack.c.l.b16 %v2506
      %v2523 = vunpack.c.l.b16 %v2507
      %v2524 = vunpack.c.l.b16 %v2508
      %v2525 = vunpack.c.l.b16 %v2509
      %v2526 = vunpack.c.l.b16 %v2510
      %v2527 = vpack.c.b16 %v2520, %v2519
      %v2528 = vpack.c.b16 %v2522, %v2521
      %v2529 = vpack.c.b16 %v2524, %v2523
      %v2530 = vpack.c.b16 %v2526, %v2525
      %v2536 = vsel %vm511, %v2502, 0
      %2538 = vmatpush.bf16.msra.mxu0 0
      %2539 = vmatpush.bf16.msra.mxu0 0
      %2540 = vmatpush.bf16.msra.mxu0 0
      %2541 = vmatpush.bf16.msra.mxu0 0
      %2542 = vmatpush.bf16.msra.mxu0 %v2530
      %2543 = vmatpush.bf16.msra.mxu0 %v2529
      %2544 = vmatpush.bf16.msra.mxu0 %v2528
      %2545 = vmatpush.bf16.msra.mxu0 %v2527
      %2546 = vmatmul.bf16.gmra.mxu0 %v2536
      %v2547 = vpop.f32.mrf.mxu0
      %v2548 = vadd.f32 0.0, %v2547
      %v2549 = vpop.f32.mrf.mxu0
      %2550 = vdwg.mxu0
      %v2551 = vadd.f32 %v2500, %v2548
      %v2552 = vld [vmem:[#allocation2 + $0x118] sm:$0xff]
      %v2553 = vpack.c.bf16 %v2552, %v2552
      %v2554 = vld [vmem:[%s2 + $0x460] sm:$0xf]
      %v2555 = vld [vmem:[%s2 + $0x464] sm:$0xf]
      %v2556 = vld [vmem:[%s2 + $0x468] sm:$0xf]
      %v2557 = vld [vmem:[%s2 + $0x46c] sm:$0xf]
      %v2558 = vld [vmem:[%s2 + $0x470] sm:$0xf]
      %v2559 = vld [vmem:[%s2 + $0x474] sm:$0xf]
      %v2560 = vld [vmem:[%s2 + $0x478] sm:$0xf]
      %v2561 = vld [vmem:[%s2 + $0x47c] sm:$0xf]
      %v2570 = vunpack.c.l.b16 %v2554
      %v2571 = vunpack.c.l.b16 %v2555
      %v2572 = vunpack.c.l.b16 %v2556
      %v2573 = vunpack.c.l.b16 %v2557
      %v2574 = vunpack.c.l.b16 %v2558
      %v2575 = vunpack.c.l.b16 %v2559
      %v2576 = vunpack.c.l.b16 %v2560
      %v2577 = vunpack.c.l.b16 %v2561
      %v2578 = vpack.c.b16 %v2571, %v2570
      %v2579 = vpack.c.b16 %v2573, %v2572
      %v2580 = vpack.c.b16 %v2575, %v2574
      %v2581 = vpack.c.b16 %v2577, %v2576
      %v2587 = vsel %vm511, %v2553, 0
      %2589 = vmatpush.bf16.msra.mxu0 0
      %2590 = vmatpush.bf16.msra.mxu0 0
      %2591 = vmatpush.bf16.msra.mxu0 0
      %2592 = vmatpush.bf16.msra.mxu0 0
      %2593 = vmatpush.bf16.msra.mxu0 %v2581
      %2594 = vmatpush.bf16.msra.mxu0 %v2580
      %2595 = vmatpush.bf16.msra.mxu0 %v2579
      %2596 = vmatpush.bf16.msra.mxu0 %v2578
      %2597 = vmatmul.bf16.gmra.mxu0 %v2587
      %v2598 = vpop.f32.mrf.mxu0
      %v2599 = vadd.f32 0.0, %v2598
      %v2600 = vpop.f32.mrf.mxu0
      %2601 = vdwg.mxu0
      %v2602 = vadd.f32 %v2551, %v2599
      %v2603 = vld [vmem:[#allocation2 + $0x120] sm:$0xff]
      %v2604 = vpack.c.bf16 %v2603, %v2603
      %v2605 = vld [vmem:[%s2 + $0x480] sm:$0xf]
      %v2606 = vld [vmem:[%s2 + $0x484] sm:$0xf]
      %v2607 = vld [vmem:[%s2 + $0x488] sm:$0xf]
      %v2608 = vld [vmem:[%s2 + $0x48c] sm:$0xf]
      %v2609 = vld [vmem:[%s2 + $0x490] sm:$0xf]
      %v2610 = vld [vmem:[%s2 + $0x494] sm:$0xf]
      %v2611 = vld [vmem:[%s2 + $0x498] sm:$0xf]
      %v2612 = vld [vmem:[%s2 + $0x49c] sm:$0xf]
      %v2621 = vunpack.c.l.b16 %v2605
      %v2622 = vunpack.c.l.b16 %v2606
      %v2623 = vunpack.c.l.b16 %v2607
      %v2624 = vunpack.c.l.b16 %v2608
      %v2625 = vunpack.c.l.b16 %v2609
      %v2626 = vunpack.c.l.b16 %v2610
      %v2627 = vunpack.c.l.b16 %v2611
      %v2628 = vunpack.c.l.b16 %v2612
      %v2629 = vpack.c.b16 %v2622, %v2621
      %v2630 = vpack.c.b16 %v2624, %v2623
      %v2631 = vpack.c.b16 %v2626, %v2625
      %v2632 = vpack.c.b16 %v2628, %v2627
      %v2638 = vsel %vm511, %v2604, 0
      %2640 = vmatpush.bf16.msra.mxu0 0
      %2641 = vmatpush.bf16.msra.mxu0 0
      %2642 = vmatpush.bf16.msra.mxu0 0
      %2643 = vmatpush.bf16.msra.mxu0 0
      %2644 = vmatpush.bf16.msra.mxu0 %v2632
      %2645 = vmatpush.bf16.msra.mxu0 %v2631
      %2646 = vmatpush.bf16.msra.mxu0 %v2630
      %2647 = vmatpush.bf16.msra.mxu0 %v2629
      %2648 = vmatmul.bf16.gmra.mxu0 %v2638
      %v2649 = vpop.f32.mrf.mxu0
      %v2650 = vadd.f32 0.0, %v2649
      %v2651 = vpop.f32.mrf.mxu0
      %2652 = vdwg.mxu0
      %v2653 = vadd.f32 %v2602, %v2650
      %v2654 = vld [vmem:[#allocation2 + $0x128] sm:$0xff]
      %v2655 = vpack.c.bf16 %v2654, %v2654
      %v2656 = vld [vmem:[%s2 + $0x4a0] sm:$0xf]
      %v2657 = vld [vmem:[%s2 + $0x4a4] sm:$0xf]
      %v2658 = vld [vmem:[%s2 + $0x4a8] sm:$0xf]
      %v2659 = vld [vmem:[%s2 + $0x4ac] sm:$0xf]
      %v2660 = vld [vmem:[%s2 + $0x4b0] sm:$0xf]
      %v2661 = vld [vmem:[%s2 + $0x4b4] sm:$0xf]
      %v2662 = vld [vmem:[%s2 + $0x4b8] sm:$0xf]
      %v2663 = vld [vmem:[%s2 + $0x4bc] sm:$0xf]
      %v2672 = vunpack.c.l.b16 %v2656
      %v2673 = vunpack.c.l.b16 %v2657
      %v2674 = vunpack.c.l.b16 %v2658
      %v2675 = vunpack.c.l.b16 %v2659
      %v2676 = vunpack.c.l.b16 %v2660
      %v2677 = vunpack.c.l.b16 %v2661
      %v2678 = vunpack.c.l.b16 %v2662
      %v2679 = vunpack.c.l.b16 %v2663
      %v2680 = vpack.c.b16 %v2673, %v2672
      %v2681 = vpack.c.b16 %v2675, %v2674
      %v2682 = vpack.c.b16 %v2677, %v2676
      %v2683 = vpack.c.b16 %v2679, %v2678
      %v2689 = vsel %vm511, %v2655, 0
      %2691 = vmatpush.bf16.msra.mxu0 0
      %2692 = vmatpush.bf16.msra.mxu0 0
      %2693 = vmatpush.bf16.msra.mxu0 0
      %2694 = vmatpush.bf16.msra.mxu0 0
      %2695 = vmatpush.bf16.msra.mxu0 %v2683
      %2696 = vmatpush.bf16.msra.mxu0 %v2682
      %2697 = vmatpush.bf16.msra.mxu0 %v2681
      %2698 = vmatpush.bf16.msra.mxu0 %v2680
      %2699 = vmatmul.bf16.gmra.mxu0 %v2689
      %v2700 = vpop.f32.mrf.mxu0
      %v2701 = vadd.f32 0.0, %v2700
      %v2702 = vpop.f32.mrf.mxu0
      %2703 = vdwg.mxu0
      %v2704 = vadd.f32 %v2653, %v2701
      %v2705 = vld [vmem:[#allocation2 + $0x130] sm:$0xff]
      %v2706 = vpack.c.bf16 %v2705, %v2705
      %v2707 = vld [vmem:[%s2 + $0x4c0] sm:$0xf]
      %v2708 = vld [vmem:[%s2 + $0x4c4] sm:$0xf]
      %v2709 = vld [vmem:[%s2 + $0x4c8] sm:$0xf]
      %v2710 = vld [vmem:[%s2 + $0x4cc] sm:$0xf]
      %v2711 = vld [vmem:[%s2 + $0x4d0] sm:$0xf]
      %v2712 = vld [vmem:[%s2 + $0x4d4] sm:$0xf]
      %v2713 = vld [vmem:[%s2 + $0x4d8] sm:$0xf]
      %v2714 = vld [vmem:[%s2 + $0x4dc] sm:$0xf]
      %v2723 = vunpack.c.l.b16 %v2707
      %v2724 = vunpack.c.l.b16 %v2708
      %v2725 = vunpack.c.l.b16 %v2709
      %v2726 = vunpack.c.l.b16 %v2710
      %v2727 = vunpack.c.l.b16 %v2711
      %v2728 = vunpack.c.l.b16 %v2712
      %v2729 = vunpack.c.l.b16 %v2713
      %v2730 = vunpack.c.l.b16 %v2714
      %v2731 = vpack.c.b16 %v2724, %v2723
      %v2732 = vpack.c.b16 %v2726, %v2725
      %v2733 = vpack.c.b16 %v2728, %v2727
      %v2734 = vpack.c.b16 %v2730, %v2729
      %v2740 = vsel %vm511, %v2706, 0
      %2742 = vmatpush.bf16.msra.mxu0 0
      %2743 = vmatpush.bf16.msra.mxu0 0
      %2744 = vmatpush.bf16.msra.mxu0 0
      %2745 = vmatpush.bf16.msra.mxu0 0
      %2746 = vmatpush.bf16.msra.mxu0 %v2734
      %2747 = vmatpush.bf16.msra.mxu0 %v2733
      %2748 = vmatpush.bf16.msra.mxu0 %v2732
      %2749 = vmatpush.bf16.msra.mxu0 %v2731
      %2750 = vmatmul.bf16.gmra.mxu0 %v2740
      %v2751 = vpop.f32.mrf.mxu0
      %v2752 = vadd.f32 0.0, %v2751
      %v2753 = vpop.f32.mrf.mxu0
      %2754 = vdwg.mxu0
      %v2755 = vadd.f32 %v2704, %v2752
      %v2756 = vld [vmem:[#allocation2 + $0x138] sm:$0xff]
      %v2757 = vpack.c.bf16 %v2756, %v2756
      %v2758 = vld [vmem:[%s2 + $0x4e0] sm:$0xf]
      %v2759 = vld [vmem:[%s2 + $0x4e4] sm:$0xf]
      %v2760 = vld [vmem:[%s2 + $0x4e8] sm:$0xf]
      %v2761 = vld [vmem:[%s2 + $0x4ec] sm:$0xf]
      %v2762 = vld [vmem:[%s2 + $0x4f0] sm:$0xf]
      %v2763 = vld [vmem:[%s2 + $0x4f4] sm:$0xf]
      %v2764 = vld [vmem:[%s2 + $0x4f8] sm:$0xf]
      %v2765 = vld [vmem:[%s2 + $0x4fc] sm:$0xf]
      %v2774 = vunpack.c.l.b16 %v2758
      %v2775 = vunpack.c.l.b16 %v2759
      %v2776 = vunpack.c.l.b16 %v2760
      %v2777 = vunpack.c.l.b16 %v2761
      %v2778 = vunpack.c.l.b16 %v2762
      %v2779 = vunpack.c.l.b16 %v2763
      %v2780 = vunpack.c.l.b16 %v2764
      %v2781 = vunpack.c.l.b16 %v2765
      %v2782 = vpack.c.b16 %v2775, %v2774
      %v2783 = vpack.c.b16 %v2777, %v2776
      %v2784 = vpack.c.b16 %v2779, %v2778
      %v2785 = vpack.c.b16 %v2781, %v2780
      %v2791 = vsel %vm511, %v2757, 0
      %2793 = vmatpush.bf16.msra.mxu0 0
      %2794 = vmatpush.bf16.msra.mxu0 0
      %2795 = vmatpush.bf16.msra.mxu0 0
      %2796 = vmatpush.bf16.msra.mxu0 0
      %2797 = vmatpush.bf16.msra.mxu0 %v2785
      %2798 = vmatpush.bf16.msra.mxu0 %v2784
      %2799 = vmatpush.bf16.msra.mxu0 %v2783
      %2800 = vmatpush.bf16.msra.mxu0 %v2782
      %2801 = vmatmul.bf16.gmra.mxu0 %v2791
      %v2802 = vpop.f32.mrf.mxu0
      %v2803 = vadd.f32 0.0, %v2802
      %v2804 = vpop.f32.mrf.mxu0
      %2805 = vdwg.mxu0
      %v2806 = vadd.f32 %v2755, %v2803
      %v2807 = vld [vmem:[#allocation2 + $0x140] sm:$0xff]
      %v2808 = vpack.c.bf16 %v2807, %v2807
      %v2809 = vld [vmem:[%s2 + $0x500] sm:$0xf]
      %v2810 = vld [vmem:[%s2 + $0x504] sm:$0xf]
      %v2811 = vld [vmem:[%s2 + $0x508] sm:$0xf]
      %v2812 = vld [vmem:[%s2 + $0x50c] sm:$0xf]
      %v2813 = vld [vmem:[%s2 + $0x510] sm:$0xf]
      %v2814 = vld [vmem:[%s2 + $0x514] sm:$0xf]
      %v2815 = vld [vmem:[%s2 + $0x518] sm:$0xf]
      %v2816 = vld [vmem:[%s2 + $0x51c] sm:$0xf]
      %v2825 = vunpack.c.l.b16 %v2809
      %v2826 = vunpack.c.l.b16 %v2810
      %v2827 = vunpack.c.l.b16 %v2811
      %v2828 = vunpack.c.l.b16 %v2812
      %v2829 = vunpack.c.l.b16 %v2813
      %v2830 = vunpack.c.l.b16 %v2814
      %v2831 = vunpack.c.l.b16 %v2815
      %v2832 = vunpack.c.l.b16 %v2816
      %v2833 = vpack.c.b16 %v2826, %v2825
      %v2834 = vpack.c.b16 %v2828, %v2827
      %v2835 = vpack.c.b16 %v2830, %v2829
      %v2836 = vpack.c.b16 %v2832, %v2831
      %v2842 = vsel %vm511, %v2808, 0
      %2844 = vmatpush.bf16.msra.mxu0 0
      %2845 = vmatpush.bf16.msra.mxu0 0
      %2846 = vmatpush.bf16.msra.mxu0 0
      %2847 = vmatpush.bf16.msra.mxu0 0
      %2848 = vmatpush.bf16.msra.mxu0 %v2836
      %2849 = vmatpush.bf16.msra.mxu0 %v2835
      %2850 = vmatpush.bf16.msra.mxu0 %v2834
      %2851 = vmatpush.bf16.msra.mxu0 %v2833
      %2852 = vmatmul.bf16.gmra.mxu0 %v2842
      %v2853 = vpop.f32.mrf.mxu0
      %v2854 = vadd.f32 0.0, %v2853
      %v2855 = vpop.f32.mrf.mxu0
      %2856 = vdwg.mxu0
      %v2857 = vadd.f32 %v2806, %v2854
      %v2858 = vld [vmem:[#allocation2 + $0x148] sm:$0xff]
      %v2859 = vpack.c.bf16 %v2858, %v2858
      %v2860 = vld [vmem:[%s2 + $0x520] sm:$0xf]
      %v2861 = vld [vmem:[%s2 + $0x524] sm:$0xf]
      %v2862 = vld [vmem:[%s2 + $0x528] sm:$0xf]
      %v2863 = vld [vmem:[%s2 + $0x52c] sm:$0xf]
      %v2864 = vld [vmem:[%s2 + $0x530] sm:$0xf]
      %v2865 = vld [vmem:[%s2 + $0x534] sm:$0xf]
      %v2866 = vld [vmem:[%s2 + $0x538] sm:$0xf]
      %v2867 = vld [vmem:[%s2 + $0x53c] sm:$0xf]
      %v2876 = vunpack.c.l.b16 %v2860
      %v2877 = vunpack.c.l.b16 %v2861
      %v2878 = vunpack.c.l.b16 %v2862
      %v2879 = vunpack.c.l.b16 %v2863
      %v2880 = vunpack.c.l.b16 %v2864
      %v2881 = vunpack.c.l.b16 %v2865
      %v2882 = vunpack.c.l.b16 %v2866
      %v2883 = vunpack.c.l.b16 %v2867
      %v2884 = vpack.c.b16 %v2877, %v2876
      %v2885 = vpack.c.b16 %v2879, %v2878
      %v2886 = vpack.c.b16 %v2881, %v2880
      %v2887 = vpack.c.b16 %v2883, %v2882
      %v2893 = vsel %vm511, %v2859, 0
      %2895 = vmatpush.bf16.msra.mxu0 0
      %2896 = vmatpush.bf16.msra.mxu0 0
      %2897 = vmatpush.bf16.msra.mxu0 0
      %2898 = vmatpush.bf16.msra.mxu0 0
      %2899 = vmatpush.bf16.msra.mxu0 %v2887
      %2900 = vmatpush.bf16.msra.mxu0 %v2886
      %2901 = vmatpush.bf16.msra.mxu0 %v2885
      %2902 = vmatpush.bf16.msra.mxu0 %v2884
      %2903 = vmatmul.bf16.gmra.mxu0 %v2893
      %v2904 = vpop.f32.mrf.mxu0
      %v2905 = vadd.f32 0.0, %v2904
      %v2906 = vpop.f32.mrf.mxu0
      %2907 = vdwg.mxu0
      %v2908 = vadd.f32 %v2857, %v2905
      %v2909 = vld [vmem:[#allocation2 + $0x150] sm:$0xff]
      %v2910 = vpack.c.bf16 %v2909, %v2909
      %v2911 = vld [vmem:[%s2 + $0x540] sm:$0xf]
      %v2912 = vld [vmem:[%s2 + $0x544] sm:$0xf]
      %v2913 = vld [vmem:[%s2 + $0x548] sm:$0xf]
      %v2914 = vld [vmem:[%s2 + $0x54c] sm:$0xf]
      %v2915 = vld [vmem:[%s2 + $0x550] sm:$0xf]
      %v2916 = vld [vmem:[%s2 + $0x554] sm:$0xf]
      %v2917 = vld [vmem:[%s2 + $0x558] sm:$0xf]
      %v2918 = vld [vmem:[%s2 + $0x55c] sm:$0xf]
      %v2927 = vunpack.c.l.b16 %v2911
      %v2928 = vunpack.c.l.b16 %v2912
      %v2929 = vunpack.c.l.b16 %v2913
      %v2930 = vunpack.c.l.b16 %v2914
      %v2931 = vunpack.c.l.b16 %v2915
      %v2932 = vunpack.c.l.b16 %v2916
      %v2933 = vunpack.c.l.b16 %v2917
      %v2934 = vunpack.c.l.b16 %v2918
      %v2935 = vpack.c.b16 %v2928, %v2927
      %v2936 = vpack.c.b16 %v2930, %v2929
      %v2937 = vpack.c.b16 %v2932, %v2931
      %v2938 = vpack.c.b16 %v2934, %v2933
      %v2944 = vsel %vm511, %v2910, 0
      %2946 = vmatpush.bf16.msra.mxu0 0
      %2947 = vmatpush.bf16.msra.mxu0 0
      %2948 = vmatpush.bf16.msra.mxu0 0
      %2949 = vmatpush.bf16.msra.mxu0 0
      %2950 = vmatpush.bf16.msra.mxu0 %v2938
      %2951 = vmatpush.bf16.msra.mxu0 %v2937
      %2952 = vmatpush.bf16.msra.mxu0 %v2936
      %2953 = vmatpush.bf16.msra.mxu0 %v2935
      %2954 = vmatmul.bf16.gmra.mxu0 %v2944
      %v2955 = vpop.f32.mrf.mxu0
      %v2956 = vadd.f32 0.0, %v2955
      %v2957 = vpop.f32.mrf.mxu0
      %2958 = vdwg.mxu0
      %v2959 = vadd.f32 %v2908, %v2956
      %v2960 = vld [vmem:[#allocation2 + $0x158] sm:$0xff]
      %v2961 = vpack.c.bf16 %v2960, %v2960
      %v2962 = vld [vmem:[%s2 + $0x560] sm:$0xf]
      %v2963 = vld [vmem:[%s2 + $0x564] sm:$0xf]
      %v2964 = vld [vmem:[%s2 + $0x568] sm:$0xf]
      %v2965 = vld [vmem:[%s2 + $0x56c] sm:$0xf]
      %v2966 = vld [vmem:[%s2 + $0x570] sm:$0xf]
      %v2967 = vld [vmem:[%s2 + $0x574] sm:$0xf]
      %v2968 = vld [vmem:[%s2 + $0x578] sm:$0xf]
      %v2969 = vld [vmem:[%s2 + $0x57c] sm:$0xf]
      %v2978 = vunpack.c.l.b16 %v2962
      %v2979 = vunpack.c.l.b16 %v2963
      %v2980 = vunpack.c.l.b16 %v2964
      %v2981 = vunpack.c.l.b16 %v2965
      %v2982 = vunpack.c.l.b16 %v2966
      %v2983 = vunpack.c.l.b16 %v2967
      %v2984 = vunpack.c.l.b16 %v2968
      %v2985 = vunpack.c.l.b16 %v2969
      %v2986 = vpack.c.b16 %v2979, %v2978
      %v2987 = vpack.c.b16 %v2981, %v2980
      %v2988 = vpack.c.b16 %v2983, %v2982
      %v2989 = vpack.c.b16 %v2985, %v2984
      %v2995 = vsel %vm511, %v2961, 0
      %2997 = vmatpush.bf16.msra.mxu0 0
      %2998 = vmatpush.bf16.msra.mxu0 0
      %2999 = vmatpush.bf16.msra.mxu0 0
      %3000 = vmatpush.bf16.msra.mxu0 0
      %3001 = vmatpush.bf16.msra.mxu0 %v2989
      %3002 = vmatpush.bf16.msra.mxu0 %v2988
      %3003 = vmatpush.bf16.msra.mxu0 %v2987
      %3004 = vmatpush.bf16.msra.mxu0 %v2986
      %3005 = vmatmul.bf16.gmra.mxu0 %v2995
      %v3006 = vpop.f32.mrf.mxu0
      %v3007 = vadd.f32 0.0, %v3006
      %v3008 = vpop.f32.mrf.mxu0
      %3009 = vdwg.mxu0
      %v3010 = vadd.f32 %v2959, %v3007
      %v3011 = vld [vmem:[#allocation2 + $0x160] sm:$0xff]
      %v3012 = vpack.c.bf16 %v3011, %v3011
      %v3013 = vld [vmem:[%s2 + $0x580] sm:$0xf]
      %v3014 = vld [vmem:[%s2 + $0x584] sm:$0xf]
      %v3015 = vld [vmem:[%s2 + $0x588] sm:$0xf]
      %v3016 = vld [vmem:[%s2 + $0x58c] sm:$0xf]
      %v3017 = vld [vmem:[%s2 + $0x590] sm:$0xf]
      %v3018 = vld [vmem:[%s2 + $0x594] sm:$0xf]
      %v3019 = vld [vmem:[%s2 + $0x598] sm:$0xf]
      %v3020 = vld [vmem:[%s2 + $0x59c] sm:$0xf]
      %v3029 = vunpack.c.l.b16 %v3013
      %v3030 = vunpack.c.l.b16 %v3014
      %v3031 = vunpack.c.l.b16 %v3015
      %v3032 = vunpack.c.l.b16 %v3016
      %v3033 = vunpack.c.l.b16 %v3017
      %v3034 = vunpack.c.l.b16 %v3018
      %v3035 = vunpack.c.l.b16 %v3019
      %v3036 = vunpack.c.l.b16 %v3020
      %v3037 = vpack.c.b16 %v3030, %v3029
      %v3038 = vpack.c.b16 %v3032, %v3031
      %v3039 = vpack.c.b16 %v3034, %v3033
      %v3040 = vpack.c.b16 %v3036, %v3035
      %v3046 = vsel %vm511, %v3012, 0
      %3048 = vmatpush.bf16.msra.mxu0 0
      %3049 = vmatpush.bf16.msra.mxu0 0
      %3050 = vmatpush.bf16.msra.mxu0 0
      %3051 = vmatpush.bf16.msra.mxu0 0
      %3052 = vmatpush.bf16.msra.mxu0 %v3040
      %3053 = vmatpush.bf16.msra.mxu0 %v3039
      %3054 = vmatpush.bf16.msra.mxu0 %v3038
      %3055 = vmatpush.bf16.msra.mxu0 %v3037
      %3056 = vmatmul.bf16.gmra.mxu0 %v3046
      %v3057 = vpop.f32.mrf.mxu0
      %v3058 = vadd.f32 0.0, %v3057
      %v3059 = vpop.f32.mrf.mxu0
      %3060 = vdwg.mxu0
      %v3061 = vadd.f32 %v3010, %v3058
      %v3062 = vld [vmem:[#allocation2 + $0x168] sm:$0xff]
      %v3063 = vpack.c.bf16 %v3062, %v3062
      %v3064 = vld [vmem:[%s2 + $0x5a0] sm:$0xf]
      %v3065 = vld [vmem:[%s2 + $0x5a4] sm:$0xf]
      %v3066 = vld [vmem:[%s2 + $0x5a8] sm:$0xf]
      %v3067 = vld [vmem:[%s2 + $0x5ac] sm:$0xf]
      %v3068 = vld [vmem:[%s2 + $0x5b0] sm:$0xf]
      %v3069 = vld [vmem:[%s2 + $0x5b4] sm:$0xf]
      %v3070 = vld [vmem:[%s2 + $0x5b8] sm:$0xf]
      %v3071 = vld [vmem:[%s2 + $0x5bc] sm:$0xf]
      %v3080 = vunpack.c.l.b16 %v3064
      %v3081 = vunpack.c.l.b16 %v3065
      %v3082 = vunpack.c.l.b16 %v3066
      %v3083 = vunpack.c.l.b16 %v3067
      %v3084 = vunpack.c.l.b16 %v3068
      %v3085 = vunpack.c.l.b16 %v3069
      %v3086 = vunpack.c.l.b16 %v3070
      %v3087 = vunpack.c.l.b16 %v3071
      %v3088 = vpack.c.b16 %v3081, %v3080
      %v3089 = vpack.c.b16 %v3083, %v3082
      %v3090 = vpack.c.b16 %v3085, %v3084
      %v3091 = vpack.c.b16 %v3087, %v3086
      %v3097 = vsel %vm511, %v3063, 0
      %3099 = vmatpush.bf16.msra.mxu0 0
      %3100 = vmatpush.bf16.msra.mxu0 0
      %3101 = vmatpush.bf16.msra.mxu0 0
      %3102 = vmatpush.bf16.msra.mxu0 0
      %3103 = vmatpush.bf16.msra.mxu0 %v3091
      %3104 = vmatpush.bf16.msra.mxu0 %v3090
      %3105 = vmatpush.bf16.msra.mxu0 %v3089
      %3106 = vmatpush.bf16.msra.mxu0 %v3088
      %3107 = vmatmul.bf16.gmra.mxu0 %v3097
      %v3108 = vpop.f32.mrf.mxu0
      %v3109 = vadd.f32 0.0, %v3108
      %v3110 = vpop.f32.mrf.mxu0
      %3111 = vdwg.mxu0
      %v3112 = vadd.f32 %v3061, %v3109
      %v3113 = vld [vmem:[#allocation2 + $0x170] sm:$0xff]
      %v3114 = vpack.c.bf16 %v3113, %v3113
      %v3115 = vld [vmem:[%s2 + $0x5c0] sm:$0xf]
      %v3116 = vld [vmem:[%s2 + $0x5c4] sm:$0xf]
      %v3117 = vld [vmem:[%s2 + $0x5c8] sm:$0xf]
      %v3118 = vld [vmem:[%s2 + $0x5cc] sm:$0xf]
      %v3119 = vld [vmem:[%s2 + $0x5d0] sm:$0xf]
      %v3120 = vld [vmem:[%s2 + $0x5d4] sm:$0xf]
      %v3121 = vld [vmem:[%s2 + $0x5d8] sm:$0xf]
      %v3122 = vld [vmem:[%s2 + $0x5dc] sm:$0xf]
      %v3131 = vunpack.c.l.b16 %v3115
      %v3132 = vunpack.c.l.b16 %v3116
      %v3133 = vunpack.c.l.b16 %v3117
      %v3134 = vunpack.c.l.b16 %v3118
      %v3135 = vunpack.c.l.b16 %v3119
      %v3136 = vunpack.c.l.b16 %v3120
      %v3137 = vunpack.c.l.b16 %v3121
      %v3138 = vunpack.c.l.b16 %v3122
      %v3139 = vpack.c.b16 %v3132, %v3131
      %v3140 = vpack.c.b16 %v3134, %v3133
      %v3141 = vpack.c.b16 %v3136, %v3135
      %v3142 = vpack.c.b16 %v3138, %v3137
      %v3148 = vsel %vm511, %v3114, 0
      %3150 = vmatpush.bf16.msra.mxu0 0
      %3151 = vmatpush.bf16.msra.mxu0 0
      %3152 = vmatpush.bf16.msra.mxu0 0
      %3153 = vmatpush.bf16.msra.mxu0 0
      %3154 = vmatpush.bf16.msra.mxu0 %v3142
      %3155 = vmatpush.bf16.msra.mxu0 %v3141
      %3156 = vmatpush.bf16.msra.mxu0 %v3140
      %3157 = vmatpush.bf16.msra.mxu0 %v3139
      %3158 = vmatmul.bf16.gmra.mxu0 %v3148
      %v3159 = vpop.f32.mrf.mxu0
      %v3160 = vadd.f32 0.0, %v3159
      %v3161 = vpop.f32.mrf.mxu0
      %3162 = vdwg.mxu0
      %v3163 = vadd.f32 %v3112, %v3160
      %v3164 = vld [vmem:[#allocation2 + $0x178] sm:$0xff]
      %v3165 = vpack.c.bf16 %v3164, %v3164
      %v3166 = vld [vmem:[%s2 + $0x5e0] sm:$0xf]
      %v3167 = vld [vmem:[%s2 + $0x5e4] sm:$0xf]
      %v3168 = vld [vmem:[%s2 + $0x5e8] sm:$0xf]
      %v3169 = vld [vmem:[%s2 + $0x5ec] sm:$0xf]
      %v3170 = vld [vmem:[%s2 + $0x5f0] sm:$0xf]
      %v3171 = vld [vmem:[%s2 + $0x5f4] sm:$0xf]
      %v3172 = vld [vmem:[%s2 + $0x5f8] sm:$0xf]
      %v3173 = vld [vmem:[%s2 + $0x5fc] sm:$0xf]
      %v3182 = vunpack.c.l.b16 %v3166
      %v3183 = vunpack.c.l.b16 %v3167
      %v3184 = vunpack.c.l.b16 %v3168
      %v3185 = vunpack.c.l.b16 %v3169
      %v3186 = vunpack.c.l.b16 %v3170
      %v3187 = vunpack.c.l.b16 %v3171
      %v3188 = vunpack.c.l.b16 %v3172
      %v3189 = vunpack.c.l.b16 %v3173
      %v3190 = vpack.c.b16 %v3183, %v3182
      %v3191 = vpack.c.b16 %v3185, %v3184
      %v3192 = vpack.c.b16 %v3187, %v3186
      %v3193 = vpack.c.b16 %v3189, %v3188
      %v3199 = vsel %vm511, %v3165, 0
      %3201 = vmatpush.bf16.msra.mxu0 0
      %3202 = vmatpush.bf16.msra.mxu0 0
      %3203 = vmatpush.bf16.msra.mxu0 0
      %3204 = vmatpush.bf16.msra.mxu0 0
      %3205 = vmatpush.bf16.msra.mxu0 %v3193
      %3206 = vmatpush.bf16.msra.mxu0 %v3192
      %3207 = vmatpush.bf16.msra.mxu0 %v3191
      %3208 = vmatpush.bf16.msra.mxu0 %v3190
      %3209 = vmatmul.bf16.gmra.mxu0 %v3199
      %v3210 = vpop.f32.mrf.mxu0
      %v3211 = vadd.f32 0.0, %v3210
      %v3212 = vpop.f32.mrf.mxu0
      %3213 = vdwg.mxu0
      %v3214 = vadd.f32 %v3163, %v3211
      %v3215 = vld [vmem:[#allocation2 + $0x180] sm:$0xff]
      %v3216 = vpack.c.bf16 %v3215, %v3215
      %v3217 = vld [vmem:[%s2 + $0x600] sm:$0xf]
      %v3218 = vld [vmem:[%s2 + $0x604] sm:$0xf]
      %v3219 = vld [vmem:[%s2 + $0x608] sm:$0xf]
      %v3220 = vld [vmem:[%s2 + $0x60c] sm:$0xf]
      %v3221 = vld [vmem:[%s2 + $0x610] sm:$0xf]
      %v3222 = vld [vmem:[%s2 + $0x614] sm:$0xf]
      %v3223 = vld [vmem:[%s2 + $0x618] sm:$0xf]
      %v3224 = vld [vmem:[%s2 + $0x61c] sm:$0xf]
      %v3233 = vunpack.c.l.b16 %v3217
      %v3234 = vunpack.c.l.b16 %v3218
      %v3235 = vunpack.c.l.b16 %v3219
      %v3236 = vunpack.c.l.b16 %v3220
      %v3237 = vunpack.c.l.b16 %v3221
      %v3238 = vunpack.c.l.b16 %v3222
      %v3239 = vunpack.c.l.b16 %v3223
      %v3240 = vunpack.c.l.b16 %v3224
      %v3241 = vpack.c.b16 %v3234, %v3233
      %v3242 = vpack.c.b16 %v3236, %v3235
      %v3243 = vpack.c.b16 %v3238, %v3237
      %v3244 = vpack.c.b16 %v3240, %v3239
      %v3250 = vsel %vm511, %v3216, 0
      %3252 = vmatpush.bf16.msra.mxu0 0
      %3253 = vmatpush.bf16.msra.mxu0 0
      %3254 = vmatpush.bf16.msra.mxu0 0
      %3255 = vmatpush.bf16.msra.mxu0 0
      %3256 = vmatpush.bf16.msra.mxu0 %v3244
      %3257 = vmatpush.bf16.msra.mxu0 %v3243
      %3258 = vmatpush.bf16.msra.mxu0 %v3242
      %3259 = vmatpush.bf16.msra.mxu0 %v3241
      %3260 = vmatmul.bf16.gmra.mxu0 %v3250
      %v3261 = vpop.f32.mrf.mxu0
      %v3262 = vadd.f32 0.0, %v3261
      %v3263 = vpop.f32.mrf.mxu0
      %3264 = vdwg.mxu0
      %v3265 = vadd.f32 %v3214, %v3262
      %v3266 = vld [vmem:[%s3] sm:$0x1]
      %v3268 = vperm.slane %v3266, 0
      %v3270 = vadd.f32 %v3265, %v3268
      %v3271 = vmax.f32 %v3270, 0.0
      %v3272 = vpack.c.bf16 %v3271, %v3271
      %v3273 = vld [vmem:[%s4] sm:$0xf]
      %v3274 = vld [vmem:[%s4 + $0x4] sm:$0xf]
      %v3275 = vld [vmem:[%s4 + $0x8] sm:$0xf]
      %v3276 = vld [vmem:[%s4 + $0xc] sm:$0xf]
      %v3277 = vld [vmem:[%s4 + $0x10] sm:$0xf]
      %v3278 = vld [vmem:[%s4 + $0x14] sm:$0xf]
      %v3279 = vld [vmem:[%s4 + $0x18] sm:$0xf]
      %v3280 = vld [vmem:[%s4 + $0x1c] sm:$0xf]
      %v3281 = vld [vmem:[%s4 + $0x20] sm:$0xf]
      %v3282 = vld [vmem:[%s4 + $0x24] sm:$0xf]
      %v3283 = vld [vmem:[%s4 + $0x28] sm:$0xf]
      %v3284 = vld [vmem:[%s4 + $0x2c] sm:$0xf]
      %v3285 = vld [vmem:[%s4 + $0x30] sm:$0xf]
      %v3286 = vld [vmem:[%s4 + $0x34] sm:$0xf]
      %v3287 = vld [vmem:[%s4 + $0x38] sm:$0xf]
      %v3288 = vld [vmem:[%s4 + $0x3c] sm:$0xf]
      %v3289 = vld [vmem:[%s5] sm:$0x1]
      %v3291 = vperm.slane %v3289, 0
      %v3309 = vunpack.c.l.b16 %v3273
      %v3310 = vunpack.c.l.b16 %v3274
      %v3311 = vunpack.c.l.b16 %v3275
      %v3312 = vunpack.c.l.b16 %v3276
      %v3313 = vunpack.c.l.b16 %v3277
      %v3314 = vunpack.c.l.b16 %v3278
      %v3315 = vunpack.c.l.b16 %v3279
      %v3316 = vunpack.c.l.b16 %v3280
      %v3317 = vunpack.c.l.b16 %v3281
      %v3318 = vunpack.c.l.b16 %v3282
      %v3319 = vunpack.c.l.b16 %v3283
      %v3320 = vunpack.c.l.b16 %v3284
      %v3321 = vunpack.c.l.b16 %v3285
      %v3322 = vunpack.c.l.b16 %v3286
      %v3323 = vunpack.c.l.b16 %v3287
      %v3324 = vunpack.c.l.b16 %v3288
      %v3325 = vpack.c.b16 %v3310, %v3309
      %v3326 = vpack.c.b16 %v3312, %v3311
      %v3327 = vpack.c.b16 %v3314, %v3313
      %v3328 = vpack.c.b16 %v3316, %v3315
      %v3329 = vpack.c.b16 %v3318, %v3317
      %v3330 = vpack.c.b16 %v3320, %v3319
      %v3331 = vpack.c.b16 %v3322, %v3321
      %v3332 = vpack.c.b16 %v3324, %v3323
      %3341 = vmatpush.bf16.msra.mxu0 %v3332
      %3342 = vmatpush.bf16.msra.mxu0 %v3331
      %3343 = vmatpush.bf16.msra.mxu0 %v3330
      %3344 = vmatpush.bf16.msra.mxu0 %v3329
      %3345 = vmatpush.bf16.msra.mxu0 %v3328
      %3346 = vmatpush.bf16.msra.mxu0 %v3327
      %3347 = vmatpush.bf16.msra.mxu0 %v3326
      %3348 = vmatpush.bf16.msra.mxu0 %v3325
      %3349 = vmatmul.bf16.gmra.mxu0 %v3272
      %v3350 = vpop.f32.mrf.mxu0
      %v3351 = vadd.f32 %v3291, %v3350
      %v3352 = vpop.f32.mrf.mxu0
      %3353 = vdwg.mxu0
      %v3354 = vmax.f32 %v3351, 0.0
      %v3355 = vpack.c.bf16 %v3354, %v3354
      %v3356 = vld [vmem:[%s6] sm:$0xf]
      %v3357 = vld [vmem:[%s6 + $0x4] sm:$0xf]
      %v3358 = vld [vmem:[%s6 + $0x8] sm:$0xf]
      %v3359 = vld [vmem:[%s6 + $0xc] sm:$0xf]
      %v3360 = vld [vmem:[%s6 + $0x10] sm:$0xf]
      %v3361 = vld [vmem:[%s6 + $0x14] sm:$0xf]
      %v3362 = vld [vmem:[%s6 + $0x18] sm:$0xf]
      %v3363 = vld [vmem:[%s6 + $0x1c] sm:$0xf]
      %v3364 = vld [vmem:[%s6 + $0x20] sm:$0xf]
      %v3365 = vld [vmem:[%s6 + $0x24] sm:$0xf]
      %v3366 = vld [vmem:[%s6 + $0x28] sm:$0xf]
      %v3367 = vld [vmem:[%s6 + $0x2c] sm:$0xf]
      %v3368 = vld [vmem:[%s6 + $0x30] sm:$0xf]
      %v3369 = vld [vmem:[%s6 + $0x34] sm:$0xf]
      %v3370 = vld [vmem:[%s6 + $0x38] sm:$0xf]
      %v3371 = vld [vmem:[%s6 + $0x3c] sm:$0xf]
      %v3372 = vld [vmem:[%s7] sm:$0x1]
      %v3374 = vperm.slane %v3372, 0
      %v3392 = vunpack.c.l.b16 %v3356
      %v3393 = vunpack.c.l.b16 %v3357
      %v3394 = vunpack.c.l.b16 %v3358
      %v3395 = vunpack.c.l.b16 %v3359
      %v3396 = vunpack.c.l.b16 %v3360
      %v3397 = vunpack.c.l.b16 %v3361
      %v3398 = vunpack.c.l.b16 %v3362
      %v3399 = vunpack.c.l.b16 %v3363
      %v3400 = vunpack.c.l.b16 %v3364
      %v3401 = vunpack.c.l.b16 %v3365
      %v3402 = vunpack.c.l.b16 %v3366
      %v3403 = vunpack.c.l.b16 %v3367
      %v3404 = vunpack.c.l.b16 %v3368
      %v3405 = vunpack.c.l.b16 %v3369
      %v3406 = vunpack.c.l.b16 %v3370
      %v3407 = vunpack.c.l.b16 %v3371
      %v3408 = vpack.c.b16 %v3393, %v3392
      %v3409 = vpack.c.b16 %v3395, %v3394
      %v3410 = vpack.c.b16 %v3397, %v3396
      %v3411 = vpack.c.b16 %v3399, %v3398
      %v3412 = vpack.c.b16 %v3401, %v3400
      %v3413 = vpack.c.b16 %v3403, %v3402
      %v3414 = vpack.c.b16 %v3405, %v3404
      %v3415 = vpack.c.b16 %v3407, %v3406
      %3424 = vmatpush.bf16.msra.mxu0 %v3415
      %3425 = vmatpush.bf16.msra.mxu0 %v3414
      %3426 = vmatpush.bf16.msra.mxu0 %v3413
      %3427 = vmatpush.bf16.msra.mxu0 %v3412
      %3428 = vmatpush.bf16.msra.mxu0 %v3411
      %3429 = vmatpush.bf16.msra.mxu0 %v3410
      %3430 = vmatpush.bf16.msra.mxu0 %v3409
      %3431 = vmatpush.bf16.msra.mxu0 %v3408
      %3432 = vmatmul.bf16.gmra.mxu0 %v3355
      %v3433 = vpop.f32.mrf.mxu0
      %v3434 = vadd.f32 %v3374, %v3433
      %v3435 = vpop.f32.mrf.mxu0
      %3436 = vdwg.mxu0
      %3437 = vst [vmem:[%s305] sm:$0xff] %v3434
      %p3438 = scmp.lt.s32.totalorder %s19, 1
      %s3439 = scalar_select %p3438, %s19, 1
      %s3440 = smul.addr %s3439, 8
      %s3441 = scalar_lea.vmem %s8, %s3440
      // Predicated region
      $region53: #{roi_extractor_forward.5} parent=51 // pred_check
        %p3442 = pneg %p210
      $region54: #{roi_extractor_forward.5} parent=51 // pred_check_branch
        %3444 = sbr.rel (%p3442) target = $region56
      $region55: #{roi_extractor_forward.5} parent=51 // pred_region
        _
      $region56: #{roi_extractor_forward.5} parent=51 // pred_fallthru
        _
    $region52: #{roi_extractor_forward.5} parent=5 // pred_fallthru
      _
    %p3445 = scmp.le.s32.totalorder 2, %s14
    // Predicated region
    $region57: #{roi_extractor_forward.5} parent=5 // pred_check
      %p3446 = pneg %p3445
    $region58: #{roi_extractor_forward.5} parent=5 // pred_check_branch
      %3448 = sbr.rel (%p3446) target = $region60
    $region59: #{roi_extractor_forward.5} parent=5 // pred_region
      %s3449 = ssub.s32 %s14, 2
      // Predicated region
      $region61: #{roi_extractor_forward.5} parent=59 // pred_check
        %p3450 = pneg %p216
      $region62: #{roi_extractor_forward.5} parent=59 // pred_check_branch
        %3452 = sbr.rel (%p3450) target = $region64
      $region63: #{roi_extractor_forward.5} parent=59 // pred_region
        %p3453 = scmp.lt.s32.totalorder %s20, 1
        %s3454 = scalar_select %p3453, %s20, 1
        %s3455 = smul.addr %s3454, 8
        %s3456 = scalar_lea.vmem %s8, %s3455
      $region64: #{roi_extractor_forward.5} parent=59 // pred_fallthru
        _
    $region60: #{roi_extractor_forward.5} parent=5 // pred_fallthru
      _
  $region6: #{roi_extractor_forward.5} parent=0 // loop_footer
    %s18 = sadd.s32 1, %s14
  $region7: #{roi_extractor_forward.5} parent=0 // loop_footer_branch
    %13 = sbr.rel target = $region3
  $region8: #{roi_extractor_forward.5} parent=0 // loop_exit
    _

</llo_original>
